<compile_context>
chip_gen: v5e
topology: v5e:2x2
jax: 0.10.0
libtpu: 0.0.40
codegen_flags: <defaults>
</compile_context>

<pallas_src>
import math

import jax
import jax.numpy as jnp
import numpy as np
from jax.experimental import pallas as pl
from jax.experimental.pallas import tpu as pltpu

# ----------------------------- config ---------------------------------------
VOCAB = 16
D_MODEL = 32
NHEAD = 4
DH = D_MODEL // NHEAD
D_FF = 64
N_ENC = 2
N_DEC = 2
MAX_SEQ = 20
LN_EPS = 1e-5

MASK_FILL = -1.0e9      # torch's masked_fill value for padded / future positions
STRUCT_NEG = -1.0e30    # cross-head / cross-batch blocks of the stacked score matrix
OUT_PAD = 128           # output head padded to a full lane tile

N_ATTN = N_ENC + 2 * N_DEC        # 6 attention modules (enc self, dec self, dec cross)
N_FF = N_ENC + N_DEC              # 4 feed-forward modules
N_LN = 2 * N_ENC + 3 * N_DEC      # 10 LayerNorms

# ---- row layout of the single (N_BIAS_ROWS, 128) bias/LN parameter slab ----
ROW_BQKV = 0                      # + attn module index  (cols 0:96  = [bq|bk|bv])
ROW_BO = ROW_BQKV + N_ATTN        # + attn module index  (cols 0:32)
ROW_BFF1 = ROW_BO + N_ATTN        # + ff module index    (cols 0:64)
ROW_BFF2 = ROW_BFF1 + N_FF        # + ff module index    (cols 0:32)
ROW_LNG = ROW_BFF2 + N_FF         # + layer-norm index   (cols 0:32)
ROW_LNB = ROW_LNG + N_LN          # + layer-norm index   (cols 0:32)
ROW_OUTB = ROW_LNB + N_LN         # output bias          (cols 0:128, zero-padded)
N_BIAS_ROWS = ROW_OUTB + 1        # 41


# ----------------------------- fused Pallas kernel ---------------------------
def _fused_forward_kernel(src_ref, tgt_ref, menc_ref, mself_ref, mcross_ref,
                          wqkv_ref, wo_ref, wff1_ref, wff2_ref, bias_ref, outw_ref,
                          o_ref):
    """Single invocation == the whole batch-folded encoder-decoder forward pass."""
    scale = 1.0 / math.sqrt(D_MODEL)   # torch code divides by sqrt(d_model), not sqrt(Dh)

    def brow(i, n):
        # one lane-aligned row of the bias/LN slab, shape (1, n)
        return bias_ref[i:i + 1, :n]

    def layer_norm(y, li):
        mu = jnp.mean(y, axis=-1, keepdims=True)
        var = jnp.mean((y - mu) ** 2, axis=-1, keepdims=True)
        yn = (y - mu) * jax.lax.rsqrt(var + LN_EPS)
        return yn * brow(ROW_LNG + li, D_MODEL) + brow(ROW_LNB + li, D_MODEL)

    def head_stack(z, base):
        # (R, >=base+D_MODEL) lane-major heads -> (NHEAD*R, DH) sublane-stacked heads
        return jnp.concatenate(
            [z[:, base + h * DH: base + (h + 1) * DH] for h in range(NHEAD)], axis=0)

    def mha(x_q, x_kv, maskval, ai, is_self):
        rq = x_q.shape[0]
        wqkv = wqkv_ref[ai]                            # (32, 96) fused [Wq|Wk|Wv]
        bqkv = brow(ROW_BQKV + ai, 3 * D_MODEL)        # (1, 96)
        qkv_q = jnp.dot(x_q, wqkv, preferred_element_type=jnp.float32) + bqkv
        if is_self:
            qkv_kv = qkv_q
        else:
            qkv_kv = jnp.dot(x_kv, wqkv, preferred_element_type=jnp.float32) + bqkv

        q_st = head_stack(qkv_q, 0)                    # (H*rq, DH)
        k_st = head_stack(qkv_kv, D_MODEL)             # (H*rk, DH)
        v_st = head_stack(qkv_kv, 2 * D_MODEL)         # (H*rk, DH)

        # all heads at once: (H*rq, H*rk) scores, one softmax
        s = jnp.dot(q_st, k_st.T, preferred_element_type=jnp.float32) * scale
        # maskval: 1.0 keep, -1e9 masked (exact torch fill), -1e30 cross-head/cross-batch
        s = jnp.where(maskval > 0.0, s, maskval)
        s = s - jnp.max(s, axis=-1, keepdims=True)
        p = jnp.exp(s)
        p = p * pl.reciprocal(jnp.sum(p, axis=-1, keepdims=True), approx=False)
        ctx = jnp.dot(p, v_st, preferred_element_type=jnp.float32)   # (H*rq, DH)

        # output projection: sum_h ctx_h @ W_O[h*DH:(h+1)*DH, :]; sublane slices are tile-aligned
        wo = wo_ref[ai]                                # (32, 32)
        acc = brow(ROW_BO + ai, D_MODEL)               # (1, 32), broadcasts
        for h in range(NHEAD):
            acc = acc + jnp.dot(ctx[h * rq:(h + 1) * rq], wo[h * DH:(h + 1) * DH],
                                preferred_element_type=jnp.float32)
        return acc

    def ffn(x, fi):
        h = jnp.dot(x, wff1_ref[fi], preferred_element_type=jnp.float32) + brow(ROW_BFF1 + fi, D_FF)
        h = jnp.maximum(h, 0.0)
        return jnp.dot(h, wff2_ref[fi], preferred_element_type=jnp.float32) + brow(ROW_BFF2 + fi, D_MODEL)

    # mask tensors loaded once (hoisted out of the unrolled layer loops)
    m_enc = menc_ref[...]
    m_self = mself_ref[...]
    m_cross = mcross_ref[...]

    # -------- encoder --------
    x = src_ref[...]                                   # (B*S_src, D)
    for i in range(N_ENC):
        x = layer_norm(x + mha(x, x, m_enc, ai=i, is_self=True), li=2 * i)
        x = layer_norm(x + ffn(x, fi=i), li=2 * i + 1)
    enc_out = x

    # -------- decoder --------
    y = tgt_ref[...]                                   # (B*S_tgt, D)
    for j in range(N_DEC):
        li0 = 2 * N_ENC + 3 * j
        y = layer_norm(y + mha(y, y, m_self, ai=N_ENC + 2 * j, is_self=True), li=li0)
        y = layer_norm(y + mha(y, enc_out, m_cross, ai=N_ENC + 2 * j + 1, is_self=False), li=li0 + 1)
        y = layer_norm(y + ffn(y, fi=N_ENC + j), li=li0 + 2)

    # -------- output head (lane-dense, padded to 128) --------
    logits = jnp.dot(y, outw_ref[...], preferred_element_type=jnp.float32) + brow(ROW_OUTB, OUT_PAD)
    o_ref[...] = logits.astype(o_ref.dtype)


def _full_spec(shape):
    nd = len(shape)

    def index_map(i):
        return (0,) * nd

    return pl.BlockSpec(shape, index_map)


# ----------------------------- weight packing --------------------------------
def pack_params(params):
    """Pack all module weights into a few lane-dense VMEM slabs."""
    attn_mods = [p["self_attn"] for p in params["enc_layers"]]
    for p in params["dec_layers"]:
        attn_mods.append(p["self_attn"])
        attn_mods.append(p["cross_attn"])
    ff_mods = list(params["enc_layers"]) + list(params["dec_layers"])

    wqkv = jnp.stack([jnp.concatenate([m["wq_w"], m["wk_w"], m["wv_w"]], axis=1)
                      for m in attn_mods])                        # (6, 32, 96)
    wo = jnp.stack([m["wo_w"] for m in attn_mods])                # (6, 32, 32)
    wff1 = jnp.stack([m["ff1_w"] for m in ff_mods])               # (4, 32, 64)
    wff2 = jnp.stack([m["ff2_w"] for m in ff_mods])               # (4, 64, 32)
    outw = jnp.zeros((D_MODEL, OUT_PAD), jnp.float32).at[:, :VOCAB].set(params["out_w"])

    def pad_row(v):
        v = jnp.asarray(v, jnp.float32).reshape(1, -1)
        return jnp.zeros((1, 128), jnp.float32).at[:, :v.shape[1]].set(v)

    rows = []
    rows += [pad_row(jnp.concatenate([m["wq_b"], m["wk_b"], m["wv_b"]], axis=1)) for m in attn_mods]
    rows += [pad_row(m["wo_b"]) for m in attn_mods]
    rows += [pad_row(m["ff1_b"]) for m in ff_mods]
    rows += [pad_row(m["ff2_b"]) for m in ff_mods]
    ln_g, ln_b = [], []
    for p in params["enc_layers"]:
        for n in ("norm1", "norm2"):
            ln_g.append(p[f"{n}_g"])
            ln_b.append(p[f"{n}_b"])
    for p in params["dec_layers"]:
        for n in ("norm1", "norm2", "norm3"):
            ln_g.append(p[f"{n}_g"])
            ln_b.append(p[f"{n}_b"])
    rows += [pad_row(g) for g in ln_g]
    rows += [pad_row(b) for b in ln_b]
    rows += [pad_row(params["out_b"])]
    bias = jnp.concatenate(rows, axis=0)                          # (41, 128)
    assert bias.shape[0] == N_BIAS_ROWS

    return {"wqkv": wqkv, "wo": wo, "wff1": wff1, "wff2": wff2, "bias": bias, "outw": outw}


def build_maskval(keep):
    """keep: (B, Sq, Sk) float 0/1 -> (H*B*Sq, H*B*Sk) score-fill tensor for stacked attention.

    1.0        : keep the computed score
    MASK_FILL  : padded / future position inside the query's own (head, batch) window
    STRUCT_NEG : cross-head / cross-batch entry of the stacked layout (never attended, and
                 stronger than MASK_FILL so fully-padded query rows reproduce torch's uniform
                 attention over their own window exactly)
    """
    b, sq, sk = keep.shape
    folded = jnp.full((b * sq, b * sk), STRUCT_NEG, jnp.float32)
    for bi in range(b):
        blk = jnp.where(keep[bi] > 0, 1.0, MASK_FILL).astype(jnp.float32)
        folded = folded.at[bi * sq:(bi + 1) * sq, bi * sk:(bi + 1) * sk].set(blk)
    full = jnp.full((NHEAD * b * sq, NHEAD * b * sk), STRUCT_NEG, jnp.float32)
    for h in range(NHEAD):
        full = full.at[h * b * sq:(h + 1) * b * sq, h * b * sk:(h + 1) * b * sk].set(folded)
    return full


# ----------------------------- Pallas forward ---------------------------------
def pallas_forward(params, src, tgt):
    B, S_src = src.shape
    _, S_tgt = tgt.shape
    r_src, r_tgt = B * S_src, B * S_tgt

    # --- masks (mirrors generate_mask), precomputed as score-fill tensors ---
    src_keep = (src != 0).astype(jnp.float32)                      # (B, S_src)
    tgt_keep = (tgt != 0).astype(jnp.float32)                      # (B, S_tgt)
    nopeak = jnp.tril(jnp.ones((S_tgt, S_tgt), jnp.float32))
    enc_keep = jnp.broadcast_to(src_keep[:, None, :], (B, S_src, S_src))
    cross_keep = jnp.broadcast_to(src_keep[:, None, :], (B, S_tgt, S_src))
    self_keep = tgt_keep[:, :, None] * nopeak[None]
    m_enc = build_maskval(enc_keep)
    m_self = build_maskval(self_keep)
    m_cross = build_maskval(cross_keep)

    # --- embeddings + positional encoding, batch folded into rows (eval: dropout = identity) ---
    pe = params["pe"]
    src_emb = (jnp.take(params["enc_emb"], src, axis=0) + pe[None, :S_src]).reshape(r_src, D_MODEL)
    tgt_emb = (jnp.take(params["dec_emb"], tgt, axis=0) + pe[None, :S_tgt]).reshape(r_tgt, D_MODEL)

    packed = pack_params(params)
    args = [src_emb, tgt_emb, m_enc, m_self, m_cross,
            packed["wqkv"], packed["wo"], packed["wff1"], packed["wff2"],
            packed["bias"], packed["outw"]]

    out = pl.pallas_call(
        _fused_forward_kernel,
        grid=(1,),                                   # single step: B folded into rows
        in_specs=[_full_spec(a.shape) for a in args],
        out_specs=_full_spec((r_tgt, OUT_PAD)),
        out_shape=jax.ShapeDtypeStruct((r_tgt, OUT_PAD), jnp.float32),
        compiler_params=pltpu.CompilerParams(dimension_semantics=("arbitrary",)),
    )(*args)
    return out[:, :VOCAB].reshape(B, S_tgt, VOCAB)


# ----------------------------- pure-JAX reference ------------------------------
def ref_linear(x, w, b, activation="none"):
    y = jnp.einsum("bsd,de->bse", x, w) + b.reshape(-1)
    return jnp.maximum(y, 0.0) if activation == "relu" else y


def ref_attention(Q, K, V, mask, scale):
    scores = jnp.einsum("bhqd,bhkd->bhqk", Q, K) * scale
    scores = jnp.where(mask[:, None] == 0.0, MASK_FILL, scores)
    p = jax.nn.softmax(scores, axis=-1)
    return jnp.einsum("bhqk,bhkd->bhqd", p, V)


def ref_add_layernorm(x, resid, gamma, beta):
    y = x + resid
    mu = jnp.mean(y, axis=-1, keepdims=True)
    var = jnp.mean((y - mu) ** 2, axis=-1, keepdims=True)
    return (y - mu) / jnp.sqrt(var + LN_EPS) * gamma.reshape(-1) + beta.reshape(-1)


def ref_mha(p, q_in, k_in, v_in, mask):
    B, Sq, _ = q_in.shape
    Q = ref_linear(q_in, p["wq_w"], p["wq_b"])
    K = ref_linear(k_in, p["wk_w"], p["wk_b"])
    V = ref_linear(v_in, p["wv_w"], p["wv_b"])

    def split(x):
        b, s, _ = x.shape
        return x.reshape(b, s, NHEAD, DH).transpose(0, 2, 1, 3)

    ctx = ref_attention(split(Q), split(K), split(V), mask, 1.0 / math.sqrt(D_MODEL))
    ctx = ctx.transpose(0, 2, 1, 3).reshape(B, Sq, D_MODEL)
    return ref_linear(ctx, p["wo_w"], p["wo_b"])


def ref_encoder_layer(p, x, mask):
    x = ref_add_layernorm(ref_mha(p["self_attn"], x, x, x, mask), x, p["norm1_g"], p["norm1_b"])
    h = ref_linear(x, p["ff1_w"], p["ff1_b"], activation="relu")
    h = ref_linear(h, p["ff2_w"], p["ff2_b"])
    return ref_add_layernorm(h, x, p["norm2_g"], p["norm2_b"])


def ref_decoder_layer(p, x, enc_out, src_mask, tgt_mask):
    x = ref_add_layernorm(ref_mha(p["self_attn"], x, x, x, tgt_mask), x, p["norm1_g"], p["norm1_b"])
    x = ref_add_layernorm(ref_mha(p["cross_attn"], x, enc_out, enc_out, src_mask), x,
                          p["norm2_g"], p["norm2_b"])
    h = ref_linear(x, p["ff1_w"], p["ff1_b"], activation="relu")
    h = ref_linear(h, p["ff2_w"], p["ff2_b"])
    return ref_add_layernorm(h, x, p["norm3_g"], p["norm3_b"])


def forward_ref(params, src, tgt):
    B, S_src = src.shape
    _, S_tgt = tgt.shape
    src_keep = (src != 0).astype(jnp.float32)
    tgt_keep = (tgt != 0).astype(jnp.float32)
    nopeak = jnp.tril(jnp.ones((S_tgt, S_tgt), jnp.float32))
    enc_mask = jnp.broadcast_to(src_keep[:, None, :], (B, S_src, S_src))
    cross_mask = jnp.broadcast_to(src_keep[:, None, :], (B, S_tgt, S_src))
    tgt_mask = tgt_keep[:, :, None] * nopeak[None]

    pe = params["pe"]
    enc_out = jnp.take(params["enc_emb"], src, axis=0) + pe[None, :S_src]
    for p in params["enc_layers"]:
        enc_out = ref_encoder_layer(p, enc_out, enc_mask)

    dec_out = jnp.take(params["dec_emb"], tgt, axis=0) + pe[None, :S_tgt]
    for p in params["dec_layers"]:
        dec_out = ref_decoder_layer(p, dec_out, enc_out, cross_mask, tgt_mask)

    logits = ref_linear(dec_out, params["out_w"], params["out_b"])
    return logits.reshape(B, S_tgt, VOCAB)


# ----------------------------- parameter init --------------------------------
def positional_encoding_table(max_len, d_model):
    pos = np.arange(max_len, dtype=np.float32)[:, None]
    div = np.exp(np.arange(0, d_model, 2, dtype=np.float32)
                 * (-math.log(10000.0) / d_model))
    pe = np.zeros((max_len, d_model), dtype=np.float32)
    pe[:, 0::2] = np.sin(pos * div)
    pe[:, 1::2] = np.cos(pos * div)
    return jnp.asarray(pe)


def init_linear(key, d_in, d_out, prefix):
    kw, kb = jax.random.split(key)
    return {
        f"{prefix}_w": jax.random.normal(kw, (d_in, d_out), jnp.float32) * 0.05,
        f"{prefix}_b": jax.random.normal(kb, (1, d_out), jnp.float32) * 0.05,
    }


def init_attn(key):
    ks = jax.random.split(key, 4)
    p = {}
    for k, name in zip(ks, ("wq", "wk", "wv", "wo")):
        p.update(init_linear(k, D_MODEL, D_MODEL, name))
    return p


def init_enc_layer(key):
    k1, k2, k3 = jax.random.split(key, 3)
    p = {"self_attn": init_attn(k1)}
    p.update(init_linear(k2, D_MODEL, D_FF, "ff1"))
    p.update(init_linear(k3, D_FF, D_MODEL, "ff2"))
    for n in ("norm1", "norm2"):
        p[f"{n}_g"] = jnp.ones((1, D_MODEL), jnp.float32)
        p[f"{n}_b"] = jnp.zeros((1, D_MODEL), jnp.float32)
    return p


def init_dec_layer(key):
    k1, k2, k3, k4 = jax.random.split(key, 4)
    p = {"self_attn": init_attn(k1), "cross_attn": init_attn(k2)}
    p.update(init_linear(k3, D_MODEL, D_FF, "ff1"))
    p.update(init_linear(k4, D_FF, D_MODEL, "ff2"))
    for n in ("norm1", "norm2", "norm3"):
        p[f"{n}_g"] = jnp.ones((1, D_MODEL), jnp.float32)
        p[f"{n}_b"] = jnp.zeros((1, D_MODEL), jnp.float32)
    return p


def init_params(key):
    keys = jax.random.split(key, 4 + N_ENC + N_DEC)
    params = {
        "enc_emb": jax.random.normal(keys[0], (VOCAB, D_MODEL), jnp.float32) * 0.1,
        "dec_emb": jax.random.normal(keys[1], (VOCAB, D_MODEL), jnp.float32) * 0.1,
        "pe": positional_encoding_table(MAX_SEQ, D_MODEL),
        "enc_layers": [init_enc_layer(keys[4 + i]) for i in range(N_ENC)],
        "dec_layers": [init_dec_layer(keys[4 + N_ENC + i]) for i in range(N_DEC)],
    }
    params.update(init_linear(keys[2], D_MODEL, VOCAB, "out"))
    return params


# ----------------------------- main ------------------------------------------
if __name__ == "__main__":
    key = jax.random.PRNGKey(0)
    kp, ks, kt = jax.random.split(key, 3)

    B, S_SRC, S_TGT = 2, 8, 8
    params = init_params(kp)
    src = jax.random.randint(ks, (B, S_SRC), 0, VOCAB, dtype=jnp.int32)
    tgt = jax.random.randint(kt, (B, S_TGT), 0, VOCAB, dtype=jnp.int32)

    out = jax.block_until_ready(pallas_forward(params, src, tgt))
    assert out.shape == (B, S_TGT, VOCAB)

    # cross-check the fused Pallas forward against a pure-JAX reference forward
    ref = jax.block_until_ready(forward_ref(params, src, tgt))
    assert jnp.all(jnp.isfinite(out))
    # exact softmax reciprocal + exact masked_fill semantics -> only f32 reassociation noise left
    assert jnp.allclose(out, ref, atol=1e-3, rtol=1e-3), "Pallas output mismatch vs reference"

    print("KERNEL_OK")
</pallas_src>

<mosaic_0001>
module attributes {stable_mosaic.version = 11 : i64} {
  func.func @_fused_forward_kernel(%arg0: i32, %arg1: memref<16x32xf32, #tpu.memory_space<vmem>>, %arg2: memref<16x32xf32, #tpu.memory_space<vmem>>, %arg3: memref<64x64xf32, #tpu.memory_space<vmem>>, %arg4: memref<64x64xf32, #tpu.memory_space<vmem>>, %arg5: memref<64x64xf32, #tpu.memory_space<vmem>>, %arg6: memref<6x32x96xf32, #tpu.memory_space<vmem>>, %arg7: memref<6x32x32xf32, #tpu.memory_space<vmem>>, %arg8: memref<4x32x64xf32, #tpu.memory_space<vmem>>, %arg9: memref<4x64x32xf32, #tpu.memory_space<vmem>>, %arg10: memref<41x128xf32, #tpu.memory_space<vmem>>, %arg11: memref<32x128xf32, #tpu.memory_space<vmem>>, %arg12: memref<16x128xf32, #tpu.memory_space<vmem>>) attributes {dimension_semantics = [#tpu.dimension_semantics<arbitrary>], iteration_bounds = array<i64: 1>, scalar_prefetch = 0 : i64, scratch_operands = 0 : i64, tpu.core_type = #tpu.core_type<tc>, window_params = [{pipeline_mode = #tpu.pipeline_mode<synchronous>, transform_indices = @transform_0, window_bounds = array<i64: 16, 32>}, {pipeline_mode = #tpu.pipeline_mode<synchronous>, transform_indices = @transform_1, window_bounds = array<i64: 16, 32>}, {pipeline_mode = #tpu.pipeline_mode<synchronous>, transform_indices = @transform_2, window_bounds = array<i64: 64, 64>}, {pipeline_mode = #tpu.pipeline_mode<synchronous>, transform_indices = @transform_3, window_bounds = array<i64: 64, 64>}, {pipeline_mode = #tpu.pipeline_mode<synchronous>, transform_indices = @transform_4, window_bounds = array<i64: 64, 64>}, {pipeline_mode = #tpu.pipeline_mode<synchronous>, transform_indices = @transform_5, window_bounds = array<i64: 6, 32, 96>}, {pipeline_mode = #tpu.pipeline_mode<synchronous>, transform_indices = @transform_6, window_bounds = array<i64: 6, 32, 32>}, {pipeline_mode = #tpu.pipeline_mode<synchronous>, transform_indices = @transform_7, window_bounds = array<i64: 4, 32, 64>}, {pipeline_mode = #tpu.pipeline_mode<synchronous>, transform_indices = @transform_8, window_bounds = array<i64: 4, 64, 32>}, {pipeline_mode = #tpu.pipeline_mode<synchronous>, transform_indices = @transform_9, window_bounds = array<i64: 41, 128>}, {pipeline_mode = #tpu.pipeline_mode<synchronous>, transform_indices = @transform_10, window_bounds = array<i64: 32, 128>}, {pipeline_mode = #tpu.pipeline_mode<synchronous>, transform_indices = @transform_11, window_bounds = array<i64: 16, 128>}]} {
    %c0 = arith.constant 0 : index
    %c0_0 = arith.constant 0 : index
    %0 = vector.load %arg3[%c0, %c0_0] : memref<64x64xf32, #tpu.memory_space<vmem>>, vector<64x64xf32>
    %c0_1 = arith.constant 0 : index
    %c0_2 = arith.constant 0 : index
    %1 = vector.load %arg4[%c0_1, %c0_2] : memref<64x64xf32, #tpu.memory_space<vmem>>, vector<64x64xf32>
    %c0_3 = arith.constant 0 : index
    %c0_4 = arith.constant 0 : index
    %2 = vector.load %arg5[%c0_3, %c0_4] : memref<64x64xf32, #tpu.memory_space<vmem>>, vector<64x64xf32>
    %c0_5 = arith.constant 0 : index
    %c0_6 = arith.constant 0 : index
    %3 = vector.load %arg1[%c0_5, %c0_6] : memref<16x32xf32, #tpu.memory_space<vmem>>, vector<16x32xf32>
    %c0_7 = arith.constant 0 : index
    %c0_8 = arith.constant 0 : index
    %c0_9 = arith.constant 0 : index
    %4 = vector.load %arg6[%c0_7, %c0_8, %c0_9] : memref<6x32x96xf32, #tpu.memory_space<vmem>>, vector<1x32x96xf32>
    %5 = vector.shape_cast %4 : vector<1x32x96xf32> to vector<32x96xf32>
    %c0_10 = arith.constant 0 : index
    %c0_11 = arith.constant 0 : index
    %6 = vector.load %arg10[%c0_10, %c0_11] : memref<41x128xf32, #tpu.memory_space<vmem>>, vector<1x96xf32>
    %cst = arith.constant dense<0.000000e+00> : vector<16x96xf32>
    %7 = tpu.matmul %3, %5, %cst {dimension_numbers = #tpu.dot_dimension_numbers<[1], [0], [0], [1], [0, 0, 1, 1], [], []>} : vector<16x32xf32>, vector<32x96xf32>, vector<16x96xf32> -> vector<16x96xf32>
    %8 = vector.broadcast %6 : vector<1x96xf32> to vector<16x96xf32>
    %9 = arith.addf %7, %8 : vector<16x96xf32>
    %10 = vector.extract_strided_slice %9 {offsets = [0, 0], sizes = [16, 8], strides = [1, 1]} : vector<16x96xf32> to vector<16x8xf32>
    %11 = vector.extract_strided_slice %9 {offsets = [0, 8], sizes = [16, 8], strides = [1, 1]} : vector<16x96xf32> to vector<16x8xf32>
    %12 = vector.extract_strided_slice %9 {offsets = [0, 16], sizes = [16, 8], strides = [1, 1]} : vector<16x96xf32> to vector<16x8xf32>
    %13 = vector.extract_strided_slice %9 {offsets = [0, 24], sizes = [16, 8], strides = [1, 1]} : vector<16x96xf32> to vector<16x8xf32>
    %14 = tpu.concatenate %10, %11, %12, %13 in 0 : vector<16x8xf32>, vector<16x8xf32>, vector<16x8xf32>, vector<16x8xf32> -> vector<64x8xf32>
    %15 = vector.extract_strided_slice %9 {offsets = [0, 32], sizes = [16, 8], strides = [1, 1]} : vector<16x96xf32> to vector<16x8xf32>
    %16 = vector.extract_strided_slice %9 {offsets = [0, 40], sizes = [16, 8], strides = [1, 1]} : vector<16x96xf32> to vector<16x8xf32>
    %17 = vector.extract_strided_slice %9 {offsets = [0, 48], sizes = [16, 8], strides = [1, 1]} : vector<16x96xf32> to vector<16x8xf32>
    %18 = vector.extract_strided_slice %9 {offsets = [0, 56], sizes = [16, 8], strides = [1, 1]} : vector<16x96xf32> to vector<16x8xf32>
    %19 = tpu.concatenate %15, %16, %17, %18 in 0 : vector<16x8xf32>, vector<16x8xf32>, vector<16x8xf32>, vector<16x8xf32> -> vector<64x8xf32>
    %20 = vector.extract_strided_slice %9 {offsets = [0, 64], sizes = [16, 8], strides = [1, 1]} : vector<16x96xf32> to vector<16x8xf32>
    %21 = vector.extract_strided_slice %9 {offsets = [0, 72], sizes = [16, 8], strides = [1, 1]} : vector<16x96xf32> to vector<16x8xf32>
    %22 = vector.extract_strided_slice %9 {offsets = [0, 80], sizes = [16, 8], strides = [1, 1]} : vector<16x96xf32> to vector<16x8xf32>
    %23 = vector.extract_strided_slice %9 {offsets = [0, 88], sizes = [16, 8], strides = [1, 1]} : vector<16x96xf32> to vector<16x8xf32>
    %24 = tpu.concatenate %20, %21, %22, %23 in 0 : vector<16x8xf32>, vector<16x8xf32>, vector<16x8xf32>, vector<16x8xf32> -> vector<64x8xf32>
    %25 = tpu.transpose %19, [1, 0] : vector<64x8xf32> -> vector<8x64xf32>
    %cst_12 = arith.constant dense<0.000000e+00> : vector<64x64xf32>
    %26 = tpu.matmul %14, %25, %cst_12 {dimension_numbers = #tpu.dot_dimension_numbers<[1], [0], [0], [1], [0, 0, 1, 1], [], []>} : vector<64x8xf32>, vector<8x64xf32>, vector<64x64xf32> -> vector<64x64xf32>
    %cst_13 = arith.constant 0.176776692 : f32
    %27 = vector.broadcast %cst_13 : f32 to vector<64x64xf32>
    %28 = arith.mulf %26, %27 : vector<64x64xf32>
    %cst_14 = arith.constant 0.000000e+00 : f32
    %29 = vector.broadcast %cst_14 : f32 to vector<64x64xf32>
    %30 = arith.cmpf ogt, %0, %29 : vector<64x64xf32>
    %31 = arith.select %30, %28, %0 : vector<64x64xi1>, vector<64x64xf32>
    %cst_15 = arith.constant dense<0xFF800000> : vector<64xf32>
    %32 = vector.multi_reduction <maximumf>, %31, %cst_15 [1] : vector<64x64xf32> to vector<64xf32>
    %33 = vector.shape_cast %32 : vector<64xf32> to vector<64x1xf32>
    %34 = vector.broadcast %33 : vector<64x1xf32> to vector<64x64xf32>
    %35 = arith.subf %31, %34 : vector<64x64xf32>
    %36 = math.exp %35 : vector<64x64xf32>
    %cst_16 = arith.constant dense<0.000000e+00> : vector<64xf32>
    %37 = vector.multi_reduction <add>, %36, %cst_16 [1] : vector<64x64xf32> to vector<64xf32>
    %38 = vector.shape_cast %37 : vector<64xf32> to vector<64x1xf32>
    %39 = tpu.reciprocal %38 : vector<64x1xf32> -> vector<64x1xf32>
    %40 = vector.broadcast %39 : vector<64x1xf32> to vector<64x64xf32>
    %41 = arith.mulf %36, %40 : vector<64x64xf32>
    %cst_17 = arith.constant dense<0.000000e+00> : vector<64x8xf32>
    %42 = tpu.matmul %41, %24, %cst_17 {dimension_numbers = #tpu.dot_dimension_numbers<[1], [0], [0], [1], [0, 0, 1, 1], [], []>} : vector<64x64xf32>, vector<64x8xf32>, vector<64x8xf32> -> vector<64x8xf32>
    %c0_18 = arith.constant 0 : index
    %c0_19 = arith.constant 0 : index
    %c0_20 = arith.constant 0 : index
    %43 = vector.load %arg7[%c0_18, %c0_19, %c0_20] : memref<6x32x32xf32, #tpu.memory_space<vmem>>, vector<1x32x32xf32>
    %44 = vector.shape_cast %43 : vector<1x32x32xf32> to vector<32x32xf32>
    %c6 = arith.constant 6 : index
    %c0_21 = arith.constant 0 : index
    %45 = vector.load %arg10[%c6, %c0_21] : memref<41x128xf32, #tpu.memory_space<vmem>>, vector<1x32xf32>
    %46 = vector.extract_strided_slice %42 {offsets = [0, 0], sizes = [16, 8], strides = [1, 1]} : vector<64x8xf32> to vector<16x8xf32>
    %47 = vector.extract_strided_slice %44 {offsets = [0, 0], sizes = [8, 32], strides = [1, 1]} : vector<32x32xf32> to vector<8x32xf32>
    %cst_22 = arith.constant dense<0.000000e+00> : vector<16x32xf32>
    %48 = tpu.matmul %46, %47, %cst_22 {dimension_numbers = #tpu.dot_dimension_numbers<[1], [0], [0], [1], [0, 0, 1, 1], [], []>} : vector<16x8xf32>, vector<8x32xf32>, vector<16x32xf32> -> vector<16x32xf32>
    %49 = vector.broadcast %45 : vector<1x32xf32> to vector<16x32xf32>
    %50 = arith.addf %49, %48 : vector<16x32xf32>
    %51 = vector.extract_strided_slice %42 {offsets = [16, 0], sizes = [16, 8], strides = [1, 1]} : vector<64x8xf32> to vector<16x8xf32>
    %52 = vector.extract_strided_slice %44 {offsets = [8, 0], sizes = [8, 32], strides = [1, 1]} : vector<32x32xf32> to vector<8x32xf32>
    %cst_23 = arith.constant dense<0.000000e+00> : vector<16x32xf32>
    %53 = tpu.matmul %51, %52, %cst_23 {dimension_numbers = #tpu.dot_dimension_numbers<[1], [0], [0], [1], [0, 0, 1, 1], [], []>} : vector<16x8xf32>, vector<8x32xf32>, vector<16x32xf32> -> vector<16x32xf32>
    %54 = arith.addf %50, %53 : vector<16x32xf32>
    %55 = vector.extract_strided_slice %42 {offsets = [32, 0], sizes = [16, 8], strides = [1, 1]} : vector<64x8xf32> to vector<16x8xf32>
    %56 = vector.extract_strided_slice %44 {offsets = [16, 0], sizes = [8, 32], strides = [1, 1]} : vector<32x32xf32> to vector<8x32xf32>
    %cst_24 = arith.constant dense<0.000000e+00> : vector<16x32xf32>
    %57 = tpu.matmul %55, %56, %cst_24 {dimension_numbers = #tpu.dot_dimension_numbers<[1], [0], [0], [1], [0, 0, 1, 1], [], []>} : vector<16x8xf32>, vector<8x32xf32>, vector<16x32xf32> -> vector<16x32xf32>
    %58 = arith.addf %54, %57 : vector<16x32xf32>
    %59 = vector.extract_strided_slice %42 {offsets = [48, 0], sizes = [16, 8], strides = [1, 1]} : vector<64x8xf32> to vector<16x8xf32>
    %60 = vector.extract_strided_slice %44 {offsets = [24, 0], sizes = [8, 32], strides = [1, 1]} : vector<32x32xf32> to vector<8x32xf32>
    %cst_25 = arith.constant dense<0.000000e+00> : vector<16x32xf32>
    %61 = tpu.matmul %59, %60, %cst_25 {dimension_numbers = #tpu.dot_dimension_numbers<[1], [0], [0], [1], [0, 0, 1, 1], [], []>} : vector<16x8xf32>, vector<8x32xf32>, vector<16x32xf32> -> vector<16x32xf32>
    %62 = arith.addf %58, %61 : vector<16x32xf32>
    %63 = arith.addf %3, %62 : vector<16x32xf32>
    %cst_26 = arith.constant dense<0.000000e+00> : vector<16xf32>
    %64 = vector.multi_reduction <add>, %63, %cst_26 [1] : vector<16x32xf32> to vector<16xf32>
    %65 = vector.shape_cast %64 : vector<16xf32> to vector<16x1xf32>
    %cst_27 = arith.constant 3.200000e+01 : f32
    %66 = vector.broadcast %cst_27 : f32 to vector<16x1xf32>
    %67 = arith.divf %65, %66 : vector<16x1xf32>
    %68 = vector.broadcast %67 : vector<16x1xf32> to vector<16x32xf32>
    %69 = arith.subf %63, %68 : vector<16x32xf32>
    %70 = arith.mulf %69, %69 : vector<16x32xf32>
    %cst_28 = arith.constant dense<0.000000e+00> : vector<16xf32>
    %71 = vector.multi_reduction <add>, %70, %cst_28 [1] : vector<16x32xf32> to vector<16xf32>
    %72 = vector.shape_cast %71 : vector<16xf32> to vector<16x1xf32>
    %cst_29 = arith.constant 3.200000e+01 : f32
    %73 = vector.broadcast %cst_29 : f32 to vector<16x1xf32>
    %74 = arith.divf %72, %73 : vector<16x1xf32>
    %75 = vector.broadcast %67 : vector<16x1xf32> to vector<16x32xf32>
    %76 = arith.subf %63, %75 : vector<16x32xf32>
    %cst_30 = arith.constant 9.99999974E-6 : f32
    %77 = vector.broadcast %cst_30 : f32 to vector<16x1xf32>
    %78 = arith.addf %74, %77 : vector<16x1xf32>
    %79 = math.rsqrt %78 : vector<16x1xf32>
    %80 = vector.broadcast %79 : vector<16x1xf32> to vector<16x32xf32>
    %81 = arith.mulf %76, %80 : vector<16x32xf32>
    %c20 = arith.constant 20 : index
    %c0_31 = arith.constant 0 : index
    %82 = vector.load %arg10[%c20, %c0_31] : memref<41x128xf32, #tpu.memory_space<vmem>>, vector<1x32xf32>
    %83 = vector.broadcast %82 : vector<1x32xf32> to vector<16x32xf32>
    %84 = arith.mulf %81, %83 : vector<16x32xf32>
    %c30 = arith.constant 30 : index
    %c0_32 = arith.constant 0 : index
    %85 = vector.load %arg10[%c30, %c0_32] : memref<41x128xf32, #tpu.memory_space<vmem>>, vector<1x32xf32>
    %86 = vector.broadcast %85 : vector<1x32xf32> to vector<16x32xf32>
    %87 = arith.addf %84, %86 : vector<16x32xf32>
    %c0_33 = arith.constant 0 : index
    %c0_34 = arith.constant 0 : index
    %c0_35 = arith.constant 0 : index
    %88 = vector.load %arg8[%c0_33, %c0_34, %c0_35] : memref<4x32x64xf32, #tpu.memory_space<vmem>>, vector<1x32x64xf32>
    %89 = vector.shape_cast %88 : vector<1x32x64xf32> to vector<32x64xf32>
    %cst_36 = arith.constant dense<0.000000e+00> : vector<16x64xf32>
    %90 = tpu.matmul %87, %89, %cst_36 {dimension_numbers = #tpu.dot_dimension_numbers<[1], [0], [0], [1], [0, 0, 1, 1], [], []>} : vector<16x32xf32>, vector<32x64xf32>, vector<16x64xf32> -> vector<16x64xf32>
    %c12 = arith.constant 12 : index
    %c0_37 = arith.constant 0 : index
    %91 = vector.load %arg10[%c12, %c0_37] : memref<41x128xf32, #tpu.memory_space<vmem>>, vector<1x64xf32>
    %92 = vector.broadcast %91 : vector<1x64xf32> to vector<16x64xf32>
    %93 = arith.addf %90, %92 : vector<16x64xf32>
    %cst_38 = arith.constant 0.000000e+00 : f32
    %94 = vector.broadcast %cst_38 : f32 to vector<16x64xf32>
    %95 = arith.maximumf %93, %94 : vector<16x64xf32>
    %c0_39 = arith.constant 0 : index
    %c0_40 = arith.constant 0 : index
    %c0_41 = arith.constant 0 : index
    %96 = vector.load %arg9[%c0_39, %c0_40, %c0_41] : memref<4x64x32xf32, #tpu.memory_space<vmem>>, vector<1x64x32xf32>
    %97 = vector.shape_cast %96 : vector<1x64x32xf32> to vector<64x32xf32>
    %cst_42 = arith.constant dense<0.000000e+00> : vector<16x32xf32>
    %98 = tpu.matmul %95, %97, %cst_42 {dimension_numbers = #tpu.dot_dimension_numbers<[1], [0], [0], [1], [0, 0, 1, 1], [], []>} : vector<16x64xf32>, vector<64x32xf32>, vector<16x32xf32> -> vector<16x32xf32>
    %c16 = arith.constant 16 : index
    %c0_43 = arith.constant 0 : index
    %99 = vector.load %arg10[%c16, %c0_43] : memref<41x128xf32, #tpu.memory_space<vmem>>, vector<1x32xf32>
    %100 = vector.broadcast %99 : vector<1x32xf32> to vector<16x32xf32>
    %101 = arith.addf %98, %100 : vector<16x32xf32>
    %102 = arith.addf %87, %101 : vector<16x32xf32>
    %cst_44 = arith.constant dense<0.000000e+00> : vector<16xf32>
    %103 = vector.multi_reduction <add>, %102, %cst_44 [1] : vector<16x32xf32> to vector<16xf32>
    %104 = vector.shape_cast %103 : vector<16xf32> to vector<16x1xf32>
    %cst_45 = arith.constant 3.200000e+01 : f32
    %105 = vector.broadcast %cst_45 : f32 to vector<16x1xf32>
    %106 = arith.divf %104, %105 : vector<16x1xf32>
    %107 = vector.broadcast %106 : vector<16x1xf32> to vector<16x32xf32>
    %108 = arith.subf %102, %107 : vector<16x32xf32>
    %109 = arith.mulf %108, %108 : vector<16x32xf32>
    %cst_46 = arith.constant dense<0.000000e+00> : vector<16xf32>
    %110 = vector.multi_reduction <add>, %109, %cst_46 [1] : vector<16x32xf32> to vector<16xf32>
    %111 = vector.shape_cast %110 : vector<16xf32> to vector<16x1xf32>
    %cst_47 = arith.constant 3.200000e+01 : f32
    %112 = vector.broadcast %cst_47 : f32 to vector<16x1xf32>
    %113 = arith.divf %111, %112 : vector<16x1xf32>
    %114 = vector.broadcast %106 : vector<16x1xf32> to vector<16x32xf32>
    %115 = arith.subf %102, %114 : vector<16x32xf32>
    %cst_48 = arith.constant 9.99999974E-6 : f32
    %116 = vector.broadcast %cst_48 : f32 to vector<16x1xf32>
    %117 = arith.addf %113, %116 : vector<16x1xf32>
    %118 = math.rsqrt %117 : vector<16x1xf32>
    %119 = vector.broadcast %118 : vector<16x1xf32> to vector<16x32xf32>
    %120 = arith.mulf %115, %119 : vector<16x32xf32>
    %c21 = arith.constant 21 : index
    %c0_49 = arith.constant 0 : index
    %121 = vector.load %arg10[%c21, %c0_49] : memref<41x128xf32, #tpu.memory_space<vmem>>, vector<1x32xf32>
    %122 = vector.broadcast %121 : vector<1x32xf32> to vector<16x32xf32>
    %123 = arith.mulf %120, %122 : vector<16x32xf32>
    %c31 = arith.constant 31 : index
    %c0_50 = arith.constant 0 : index
    %124 = vector.load %arg10[%c31, %c0_50] : memref<41x128xf32, #tpu.memory_space<vmem>>, vector<1x32xf32>
    %125 = vector.broadcast %124 : vector<1x32xf32> to vector<16x32xf32>
    %126 = arith.addf %123, %125 : vector<16x32xf32>
    %c1 = arith.constant 1 : index
    %c0_51 = arith.constant 0 : index
    %c0_52 = arith.constant 0 : index
    %127 = vector.load %arg6[%c1, %c0_51, %c0_52] : memref<6x32x96xf32, #tpu.memory_space<vmem>>, vector<1x32x96xf32>
    %128 = vector.shape_cast %127 : vector<1x32x96xf32> to vector<32x96xf32>
    %c1_53 = arith.constant 1 : index
    %c0_54 = arith.constant 0 : index
    %129 = vector.load %arg10[%c1_53, %c0_54] : memref<41x128xf32, #tpu.memory_space<vmem>>, vector<1x96xf32>
    %cst_55 = arith.constant dense<0.000000e+00> : vector<16x96xf32>
    %130 = tpu.matmul %126, %128, %cst_55 {dimension_numbers = #tpu.dot_dimension_numbers<[1], [0], [0], [1], [0, 0, 1, 1], [], []>} : vector<16x32xf32>, vector<32x96xf32>, vector<16x96xf32> -> vector<16x96xf32>
    %131 = vector.broadcast %129 : vector<1x96xf32> to vector<16x96xf32>
    %132 = arith.addf %130, %131 : vector<16x96xf32>
    %133 = vector.extract_strided_slice %132 {offsets = [0, 0], sizes = [16, 8], strides = [1, 1]} : vector<16x96xf32> to vector<16x8xf32>
    %134 = vector.extract_strided_slice %132 {offsets = [0, 8], sizes = [16, 8], strides = [1, 1]} : vector<16x96xf32> to vector<16x8xf32>
    %135 = vector.extract_strided_slice %132 {offsets = [0, 16], sizes = [16, 8], strides = [1, 1]} : vector<16x96xf32> to vector<16x8xf32>
    %136 = vector.extract_strided_slice %132 {offsets = [0, 24], sizes = [16, 8], strides = [1, 1]} : vector<16x96xf32> to vector<16x8xf32>
    %137 = tpu.concatenate %133, %134, %135, %136 in 0 : vector<16x8xf32>, vector<16x8xf32>, vector<16x8xf32>, vector<16x8xf32> -> vector<64x8xf32>
    %138 = vector.extract_strided_slice %132 {offsets = [0, 32], sizes = [16, 8], strides = [1, 1]} : vector<16x96xf32> to vector<16x8xf32>
    %139 = vector.extract_strided_slice %132 {offsets = [0, 40], sizes = [16, 8], strides = [1, 1]} : vector<16x96xf32> to vector<16x8xf32>
    %140 = vector.extract_strided_slice %132 {offsets = [0, 48], sizes = [16, 8], strides = [1, 1]} : vector<16x96xf32> to vector<16x8xf32>
    %141 = vector.extract_strided_slice %132 {offsets = [0, 56], sizes = [16, 8], strides = [1, 1]} : vector<16x96xf32> to vector<16x8xf32>
    %142 = tpu.concatenate %138, %139, %140, %141 in 0 : vector<16x8xf32>, vector<16x8xf32>, vector<16x8xf32>, vector<16x8xf32> -> vector<64x8xf32>
    %143 = vector.extract_strided_slice %132 {offsets = [0, 64], sizes = [16, 8], strides = [1, 1]} : vector<16x96xf32> to vector<16x8xf32>
    %144 = vector.extract_strided_slice %132 {offsets = [0, 72], sizes = [16, 8], strides = [1, 1]} : vector<16x96xf32> to vector<16x8xf32>
    %145 = vector.extract_strided_slice %132 {offsets = [0, 80], sizes = [16, 8], strides = [1, 1]} : vector<16x96xf32> to vector<16x8xf32>
    %146 = vector.extract_strided_slice %132 {offsets = [0, 88], sizes = [16, 8], strides = [1, 1]} : vector<16x96xf32> to vector<16x8xf32>
    %147 = tpu.concatenate %143, %144, %145, %146 in 0 : vector<16x8xf32>, vector<16x8xf32>, vector<16x8xf32>, vector<16x8xf32> -> vector<64x8xf32>
    %148 = tpu.transpose %142, [1, 0] : vector<64x8xf32> -> vector<8x64xf32>
    %cst_56 = arith.constant dense<0.000000e+00> : vector<64x64xf32>
    %149 = tpu.matmul %137, %148, %cst_56 {dimension_numbers = #tpu.dot_dimension_numbers<[1], [0], [0], [1], [0, 0, 1, 1], [], []>} : vector<64x8xf32>, vector<8x64xf32>, vector<64x64xf32> -> vector<64x64xf32>
    %cst_57 = arith.constant 0.176776692 : f32
    %150 = vector.broadcast %cst_57 : f32 to vector<64x64xf32>
    %151 = arith.mulf %149, %150 : vector<64x64xf32>
    %cst_58 = arith.constant 0.000000e+00 : f32
    %152 = vector.broadcast %cst_58 : f32 to vector<64x64xf32>
    %153 = arith.cmpf ogt, %0, %152 : vector<64x64xf32>
    %154 = arith.select %153, %151, %0 : vector<64x64xi1>, vector<64x64xf32>
    %cst_59 = arith.constant dense<0xFF800000> : vector<64xf32>
    %155 = vector.multi_reduction <maximumf>, %154, %cst_59 [1] : vector<64x64xf32> to vector<64xf32>
    %156 = vector.shape_cast %155 : vector<64xf32> to vector<64x1xf32>
    %157 = vector.broadcast %156 : vector<64x1xf32> to vector<64x64xf32>
    %158 = arith.subf %154, %157 : vector<64x64xf32>
    %159 = math.exp %158 : vector<64x64xf32>
    %cst_60 = arith.constant dense<0.000000e+00> : vector<64xf32>
    %160 = vector.multi_reduction <add>, %159, %cst_60 [1] : vector<64x64xf32> to vector<64xf32>
    %161 = vector.shape_cast %160 : vector<64xf32> to vector<64x1xf32>
    %162 = tpu.reciprocal %161 : vector<64x1xf32> -> vector<64x1xf32>
    %163 = vector.broadcast %162 : vector<64x1xf32> to vector<64x64xf32>
    %164 = arith.mulf %159, %163 : vector<64x64xf32>
    %cst_61 = arith.constant dense<0.000000e+00> : vector<64x8xf32>
    %165 = tpu.matmul %164, %147, %cst_61 {dimension_numbers = #tpu.dot_dimension_numbers<[1], [0], [0], [1], [0, 0, 1, 1], [], []>} : vector<64x64xf32>, vector<64x8xf32>, vector<64x8xf32> -> vector<64x8xf32>
    %c1_62 = arith.constant 1 : index
    %c0_63 = arith.constant 0 : index
    %c0_64 = arith.constant 0 : index
    %166 = vector.load %arg7[%c1_62, %c0_63, %c0_64] : memref<6x32x32xf32, #tpu.memory_space<vmem>>, vector<1x32x32xf32>
    %167 = vector.shape_cast %166 : vector<1x32x32xf32> to vector<32x32xf32>
    %c7 = arith.constant 7 : index
    %c0_65 = arith.constant 0 : index
    %168 = vector.load %arg10[%c7, %c0_65] : memref<41x128xf32, #tpu.memory_space<vmem>>, vector<1x32xf32>
    %169 = vector.extract_strided_slice %165 {offsets = [0, 0], sizes = [16, 8], strides = [1, 1]} : vector<64x8xf32> to vector<16x8xf32>
    %170 = vector.extract_strided_slice %167 {offsets = [0, 0], sizes = [8, 32], strides = [1, 1]} : vector<32x32xf32> to vector<8x32xf32>
    %cst_66 = arith.constant dense<0.000000e+00> : vector<16x32xf32>
    %171 = tpu.matmul %169, %170, %cst_66 {dimension_numbers = #tpu.dot_dimension_numbers<[1], [0], [0], [1], [0, 0, 1, 1], [], []>} : vector<16x8xf32>, vector<8x32xf32>, vector<16x32xf32> -> vector<16x32xf32>
    %172 = vector.broadcast %168 : vector<1x32xf32> to vector<16x32xf32>
    %173 = arith.addf %172, %171 : vector<16x32xf32>
    %174 = vector.extract_strided_slice %165 {offsets = [16, 0], sizes = [16, 8], strides = [1, 1]} : vector<64x8xf32> to vector<16x8xf32>
    %175 = vector.extract_strided_slice %167 {offsets = [8, 0], sizes = [8, 32], strides = [1, 1]} : vector<32x32xf32> to vector<8x32xf32>
    %cst_67 = arith.constant dense<0.000000e+00> : vector<16x32xf32>
    %176 = tpu.matmul %174, %175, %cst_67 {dimension_numbers = #tpu.dot_dimension_numbers<[1], [0], [0], [1], [0, 0, 1, 1], [], []>} : vector<16x8xf32>, vector<8x32xf32>, vector<16x32xf32> -> vector<16x32xf32>
    %177 = arith.addf %173, %176 : vector<16x32xf32>
    %178 = vector.extract_strided_slice %165 {offsets = [32, 0], sizes = [16, 8], strides = [1, 1]} : vector<64x8xf32> to vector<16x8xf32>
    %179 = vector.extract_strided_slice %167 {offsets = [16, 0], sizes = [8, 32], strides = [1, 1]} : vector<32x32xf32> to vector<8x32xf32>
    %cst_68 = arith.constant dense<0.000000e+00> : vector<16x32xf32>
    %180 = tpu.matmul %178, %179, %cst_68 {dimension_numbers = #tpu.dot_dimension_numbers<[1], [0], [0], [1], [0, 0, 1, 1], [], []>} : vector<16x8xf32>, vector<8x32xf32>, vector<16x32xf32> -> vector<16x32xf32>
    %181 = arith.addf %177, %180 : vector<16x32xf32>
    %182 = vector.extract_strided_slice %165 {offsets = [48, 0], sizes = [16, 8], strides = [1, 1]} : vector<64x8xf32> to vector<16x8xf32>
    %183 = vector.extract_strided_slice %167 {offsets = [24, 0], sizes = [8, 32], strides = [1, 1]} : vector<32x32xf32> to vector<8x32xf32>
    %cst_69 = arith.constant dense<0.000000e+00> : vector<16x32xf32>
    %184 = tpu.matmul %182, %183, %cst_69 {dimension_numbers = #tpu.dot_dimension_numbers<[1], [0], [0], [1], [0, 0, 1, 1], [], []>} : vector<16x8xf32>, vector<8x32xf32>, vector<16x32xf32> -> vector<16x32xf32>
    %185 = arith.addf %181, %184 : vector<16x32xf32>
    %186 = arith.addf %126, %185 : vector<16x32xf32>
    %cst_70 = arith.constant dense<0.000000e+00> : vector<16xf32>
    %187 = vector.multi_reduction <add>, %186, %cst_70 [1] : vector<16x32xf32> to vector<16xf32>
    %188 = vector.shape_cast %187 : vector<16xf32> to vector<16x1xf32>
    %cst_71 = arith.constant 3.200000e+01 : f32
    %189 = vector.broadcast %cst_71 : f32 to vector<16x1xf32>
    %190 = arith.divf %188, %189 : vector<16x1xf32>
    %191 = vector.broadcast %190 : vector<16x1xf32> to vector<16x32xf32>
    %192 = arith.subf %186, %191 : vector<16x32xf32>
    %193 = arith.mulf %192, %192 : vector<16x32xf32>
    %cst_72 = arith.constant dense<0.000000e+00> : vector<16xf32>
    %194 = vector.multi_reduction <add>, %193, %cst_72 [1] : vector<16x32xf32> to vector<16xf32>
    %195 = vector.shape_cast %194 : vector<16xf32> to vector<16x1xf32>
    %cst_73 = arith.constant 3.200000e+01 : f32
    %196 = vector.broadcast %cst_73 : f32 to vector<16x1xf32>
    %197 = arith.divf %195, %196 : vector<16x1xf32>
    %198 = vector.broadcast %190 : vector<16x1xf32> to vector<16x32xf32>
    %199 = arith.subf %186, %198 : vector<16x32xf32>
    %cst_74 = arith.constant 9.99999974E-6 : f32
    %200 = vector.broadcast %cst_74 : f32 to vector<16x1xf32>
    %201 = arith.addf %197, %200 : vector<16x1xf32>
    %202 = math.rsqrt %201 : vector<16x1xf32>
    %203 = vector.broadcast %202 : vector<16x1xf32> to vector<16x32xf32>
    %204 = arith.mulf %199, %203 : vector<16x32xf32>
    %c22 = arith.constant 22 : index
    %c0_75 = arith.constant 0 : index
    %205 = vector.load %arg10[%c22, %c0_75] : memref<41x128xf32, #tpu.memory_space<vmem>>, vector<1x32xf32>
    %206 = vector.broadcast %205 : vector<1x32xf32> to vector<16x32xf32>
    %207 = arith.mulf %204, %206 : vector<16x32xf32>
    %c32 = arith.constant 32 : index
    %c0_76 = arith.constant 0 : index
    %208 = vector.load %arg10[%c32, %c0_76] : memref<41x128xf32, #tpu.memory_space<vmem>>, vector<1x32xf32>
    %209 = vector.broadcast %208 : vector<1x32xf32> to vector<16x32xf32>
    %210 = arith.addf %207, %209 : vector<16x32xf32>
    %c1_77 = arith.constant 1 : index
    %c0_78 = arith.constant 0 : index
    %c0_79 = arith.constant 0 : index
    %211 = vector.load %arg8[%c1_77, %c0_78, %c0_79] : memref<4x32x64xf32, #tpu.memory_space<vmem>>, vector<1x32x64xf32>
    %212 = vector.shape_cast %211 : vector<1x32x64xf32> to vector<32x64xf32>
    %cst_80 = arith.constant dense<0.000000e+00> : vector<16x64xf32>
    %213 = tpu.matmul %210, %212, %cst_80 {dimension_numbers = #tpu.dot_dimension_numbers<[1], [0], [0], [1], [0, 0, 1, 1], [], []>} : vector<16x32xf32>, vector<32x64xf32>, vector<16x64xf32> -> vector<16x64xf32>
    %c13 = arith.constant 13 : index
    %c0_81 = arith.constant 0 : index
    %214 = vector.load %arg10[%c13, %c0_81] : memref<41x128xf32, #tpu.memory_space<vmem>>, vector<1x64xf32>
    %215 = vector.broadcast %214 : vector<1x64xf32> to vector<16x64xf32>
    %216 = arith.addf %213, %215 : vector<16x64xf32>
    %cst_82 = arith.constant 0.000000e+00 : f32
    %217 = vector.broadcast %cst_82 : f32 to vector<16x64xf32>
    %218 = arith.maximumf %216, %217 : vector<16x64xf32>
    %c1_83 = arith.constant 1 : index
    %c0_84 = arith.constant 0 : index
    %c0_85 = arith.constant 0 : index
    %219 = vector.load %arg9[%c1_83, %c0_84, %c0_85] : memref<4x64x32xf32, #tpu.memory_space<vmem>>, vector<1x64x32xf32>
    %220 = vector.shape_cast %219 : vector<1x64x32xf32> to vector<64x32xf32>
    %cst_86 = arith.constant dense<0.000000e+00> : vector<16x32xf32>
    %221 = tpu.matmul %218, %220, %cst_86 {dimension_numbers = #tpu.dot_dimension_numbers<[1], [0], [0], [1], [0, 0, 1, 1], [], []>} : vector<16x64xf32>, vector<64x32xf32>, vector<16x32xf32> -> vector<16x32xf32>
    %c17 = arith.constant 17 : index
    %c0_87 = arith.constant 0 : index
    %222 = vector.load %arg10[%c17, %c0_87] : memref<41x128xf32, #tpu.memory_space<vmem>>, vector<1x32xf32>
    %223 = vector.broadcast %222 : vector<1x32xf32> to vector<16x32xf32>
    %224 = arith.addf %221, %223 : vector<16x32xf32>
    %225 = arith.addf %210, %224 : vector<16x32xf32>
    %cst_88 = arith.constant dense<0.000000e+00> : vector<16xf32>
    %226 = vector.multi_reduction <add>, %225, %cst_88 [1] : vector<16x32xf32> to vector<16xf32>
    %227 = vector.shape_cast %226 : vector<16xf32> to vector<16x1xf32>
    %cst_89 = arith.constant 3.200000e+01 : f32
    %228 = vector.broadcast %cst_89 : f32 to vector<16x1xf32>
    %229 = arith.divf %227, %228 : vector<16x1xf32>
    %230 = vector.broadcast %229 : vector<16x1xf32> to vector<16x32xf32>
    %231 = arith.subf %225, %230 : vector<16x32xf32>
    %232 = arith.mulf %231, %231 : vector<16x32xf32>
    %cst_90 = arith.constant dense<0.000000e+00> : vector<16xf32>
    %233 = vector.multi_reduction <add>, %232, %cst_90 [1] : vector<16x32xf32> to vector<16xf32>
    %234 = vector.shape_cast %233 : vector<16xf32> to vector<16x1xf32>
    %cst_91 = arith.constant 3.200000e+01 : f32
    %235 = vector.broadcast %cst_91 : f32 to vector<16x1xf32>
    %236 = arith.divf %234, %235 : vector<16x1xf32>
    %237 = vector.broadcast %229 : vector<16x1xf32> to vector<16x32xf32>
    %238 = arith.subf %225, %237 : vector<16x32xf32>
    %cst_92 = arith.constant 9.99999974E-6 : f32
    %239 = vector.broadcast %cst_92 : f32 to vector<16x1xf32>
    %240 = arith.addf %236, %239 : vector<16x1xf32>
    %241 = math.rsqrt %240 : vector<16x1xf32>
    %242 = vector.broadcast %241 : vector<16x1xf32> to vector<16x32xf32>
    %243 = arith.mulf %238, %242 : vector<16x32xf32>
    %c23 = arith.constant 23 : index
    %c0_93 = arith.constant 0 : index
    %244 = vector.load %arg10[%c23, %c0_93] : memref<41x128xf32, #tpu.memory_space<vmem>>, vector<1x32xf32>
    %245 = vector.broadcast %244 : vector<1x32xf32> to vector<16x32xf32>
    %246 = arith.mulf %243, %245 : vector<16x32xf32>
    %c33 = arith.constant 33 : index
    %c0_94 = arith.constant 0 : index
    %247 = vector.load %arg10[%c33, %c0_94] : memref<41x128xf32, #tpu.memory_space<vmem>>, vector<1x32xf32>
    %248 = vector.broadcast %247 : vector<1x32xf32> to vector<16x32xf32>
    %249 = arith.addf %246, %248 : vector<16x32xf32>
    %c0_95 = arith.constant 0 : index
    %c0_96 = arith.constant 0 : index
    %250 = vector.load %arg2[%c0_95, %c0_96] : memref<16x32xf32, #tpu.memory_space<vmem>>, vector<16x32xf32>
    %c2 = arith.constant 2 : index
    %c0_97 = arith.constant 0 : index
    %c0_98 = arith.constant 0 : index
    %251 = vector.load %arg6[%c2, %c0_97, %c0_98] : memref<6x32x96xf32, #tpu.memory_space<vmem>>, vector<1x32x96xf32>
    %252 = vector.shape_cast %251 : vector<1x32x96xf32> to vector<32x96xf32>
    %c2_99 = arith.constant 2 : index
    %c0_100 = arith.constant 0 : index
    %253 = vector.load %arg10[%c2_99, %c0_100] : memref<41x128xf32, #tpu.memory_space<vmem>>, vector<1x96xf32>
    %cst_101 = arith.constant dense<0.000000e+00> : vector<16x96xf32>
    %254 = tpu.matmul %250, %252, %cst_101 {dimension_numbers = #tpu.dot_dimension_numbers<[1], [0], [0], [1], [0, 0, 1, 1], [], []>} : vector<16x32xf32>, vector<32x96xf32>, vector<16x96xf32> -> vector<16x96xf32>
    %255 = vector.broadcast %253 : vector<1x96xf32> to vector<16x96xf32>
    %256 = arith.addf %254, %255 : vector<16x96xf32>
    %257 = vector.extract_strided_slice %256 {offsets = [0, 0], sizes = [16, 8], strides = [1, 1]} : vector<16x96xf32> to vector<16x8xf32>
    %258 = vector.extract_strided_slice %256 {offsets = [0, 8], sizes = [16, 8], strides = [1, 1]} : vector<16x96xf32> to vector<16x8xf32>
    %259 = vector.extract_strided_slice %256 {offsets = [0, 16], sizes = [16, 8], strides = [1, 1]} : vector<16x96xf32> to vector<16x8xf32>
    %260 = vector.extract_strided_slice %256 {offsets = [0, 24], sizes = [16, 8], strides = [1, 1]} : vector<16x96xf32> to vector<16x8xf32>
    %261 = tpu.concatenate %257, %258, %259, %260 in 0 : vector<16x8xf32>, vector<16x8xf32>, vector<16x8xf32>, vector<16x8xf32> -> vector<64x8xf32>
    %262 = vector.extract_strided_slice %256 {offsets = [0, 32], sizes = [16, 8], strides = [1, 1]} : vector<16x96xf32> to vector<16x8xf32>
    %263 = vector.extract_strided_slice %256 {offsets = [0, 40], sizes = [16, 8], strides = [1, 1]} : vector<16x96xf32> to vector<16x8xf32>
    %264 = vector.extract_strided_slice %256 {offsets = [0, 48], sizes = [16, 8], strides = [1, 1]} : vector<16x96xf32> to vector<16x8xf32>
    %265 = vector.extract_strided_slice %256 {offsets = [0, 56], sizes = [16, 8], strides = [1, 1]} : vector<16x96xf32> to vector<16x8xf32>
    %266 = tpu.concatenate %262, %263, %264, %265 in 0 : vector<16x8xf32>, vector<16x8xf32>, vector<16x8xf32>, vector<16x8xf32> -> vector<64x8xf32>
    %267 = vector.extract_strided_slice %256 {offsets = [0, 64], sizes = [16, 8], strides = [1, 1]} : vector<16x96xf32> to vector<16x8xf32>
    %268 = vector.extract_strided_slice %256 {offsets = [0, 72], sizes = [16, 8], strides = [1, 1]} : vector<16x96xf32> to vector<16x8xf32>
    %269 = vector.extract_strided_slice %256 {offsets = [0, 80], sizes = [16, 8], strides = [1, 1]} : vector<16x96xf32> to vector<16x8xf32>
    %270 = vector.extract_strided_slice %256 {offsets = [0, 88], sizes = [16, 8], strides = [1, 1]} : vector<16x96xf32> to vector<16x8xf32>
    %271 = tpu.concatenate %267, %268, %269, %270 in 0 : vector<16x8xf32>, vector<16x8xf32>, vector<16x8xf32>, vector<16x8xf32> -> vector<64x8xf32>
    %272 = tpu.transpose %266, [1, 0] : vector<64x8xf32> -> vector<8x64xf32>
    %cst_102 = arith.constant dense<0.000000e+00> : vector<64x64xf32>
    %273 = tpu.matmul %261, %272, %cst_102 {dimension_numbers = #tpu.dot_dimension_numbers<[1], [0], [0], [1], [0, 0, 1, 1], [], []>} : vector<64x8xf32>, vector<8x64xf32>, vector<64x64xf32> -> vector<64x64xf32>
    %cst_103 = arith.constant 0.176776692 : f32
    %274 = vector.broadcast %cst_103 : f32 to vector<64x64xf32>
    %275 = arith.mulf %273, %274 : vector<64x64xf32>
    %cst_104 = arith.constant 0.000000e+00 : f32
    %276 = vector.broadcast %cst_104 : f32 to vector<64x64xf32>
    %277 = arith.cmpf ogt, %1, %276 : vector<64x64xf32>
    %278 = arith.select %277, %275, %1 : vector<64x64xi1>, vector<64x64xf32>
    %cst_105 = arith.constant dense<0xFF800000> : vector<64xf32>
    %279 = vector.multi_reduction <maximumf>, %278, %cst_105 [1] : vector<64x64xf32> to vector<64xf32>
    %280 = vector.shape_cast %279 : vector<64xf32> to vector<64x1xf32>
    %281 = vector.broadcast %280 : vector<64x1xf32> to vector<64x64xf32>
    %282 = arith.subf %278, %281 : vector<64x64xf32>
    %283 = math.exp %282 : vector<64x64xf32>
    %cst_106 = arith.constant dense<0.000000e+00> : vector<64xf32>
    %284 = vector.multi_reduction <add>, %283, %cst_106 [1] : vector<64x64xf32> to vector<64xf32>
    %285 = vector.shape_cast %284 : vector<64xf32> to vector<64x1xf32>
    %286 = tpu.reciprocal %285 : vector<64x1xf32> -> vector<64x1xf32>
    %287 = vector.broadcast %286 : vector<64x1xf32> to vector<64x64xf32>
    %288 = arith.mulf %283, %287 : vector<64x64xf32>
    %cst_107 = arith.constant dense<0.000000e+00> : vector<64x8xf32>
    %289 = tpu.matmul %288, %271, %cst_107 {dimension_numbers = #tpu.dot_dimension_numbers<[1], [0], [0], [1], [0, 0, 1, 1], [], []>} : vector<64x64xf32>, vector<64x8xf32>, vector<64x8xf32> -> vector<64x8xf32>
    %c2_108 = arith.constant 2 : index
    %c0_109 = arith.constant 0 : index
    %c0_110 = arith.constant 0 : index
    %290 = vector.load %arg7[%c2_108, %c0_109, %c0_110] : memref<6x32x32xf32, #tpu.memory_space<vmem>>, vector<1x32x32xf32>
    %291 = vector.shape_cast %290 : vector<1x32x32xf32> to vector<32x32xf32>
    %c8 = arith.constant 8 : index
    %c0_111 = arith.constant 0 : index
    %292 = vector.load %arg10[%c8, %c0_111] : memref<41x128xf32, #tpu.memory_space<vmem>>, vector<1x32xf32>
    %293 = vector.extract_strided_slice %289 {offsets = [0, 0], sizes = [16, 8], strides = [1, 1]} : vector<64x8xf32> to vector<16x8xf32>
    %294 = vector.extract_strided_slice %291 {offsets = [0, 0], sizes = [8, 32], strides = [1, 1]} : vector<32x32xf32> to vector<8x32xf32>
    %cst_112 = arith.constant dense<0.000000e+00> : vector<16x32xf32>
    %295 = tpu.matmul %293, %294, %cst_112 {dimension_numbers = #tpu.dot_dimension_numbers<[1], [0], [0], [1], [0, 0, 1, 1], [], []>} : vector<16x8xf32>, vector<8x32xf32>, vector<16x32xf32> -> vector<16x32xf32>
    %296 = vector.broadcast %292 : vector<1x32xf32> to vector<16x32xf32>
    %297 = arith.addf %296, %295 : vector<16x32xf32>
    %298 = vector.extract_strided_slice %289 {offsets = [16, 0], sizes = [16, 8], strides = [1, 1]} : vector<64x8xf32> to vector<16x8xf32>
    %299 = vector.extract_strided_slice %291 {offsets = [8, 0], sizes = [8, 32], strides = [1, 1]} : vector<32x32xf32> to vector<8x32xf32>
    %cst_113 = arith.constant dense<0.000000e+00> : vector<16x32xf32>
    %300 = tpu.matmul %298, %299, %cst_113 {dimension_numbers = #tpu.dot_dimension_numbers<[1], [0], [0], [1], [0, 0, 1, 1], [], []>} : vector<16x8xf32>, vector<8x32xf32>, vector<16x32xf32> -> vector<16x32xf32>
    %301 = arith.addf %297, %300 : vector<16x32xf32>
    %302 = vector.extract_strided_slice %289 {offsets = [32, 0], sizes = [16, 8], strides = [1, 1]} : vector<64x8xf32> to vector<16x8xf32>
    %303 = vector.extract_strided_slice %291 {offsets = [16, 0], sizes = [8, 32], strides = [1, 1]} : vector<32x32xf32> to vector<8x32xf32>
    %cst_114 = arith.constant dense<0.000000e+00> : vector<16x32xf32>
    %304 = tpu.matmul %302, %303, %cst_114 {dimension_numbers = #tpu.dot_dimension_numbers<[1], [0], [0], [1], [0, 0, 1, 1], [], []>} : vector<16x8xf32>, vector<8x32xf32>, vector<16x32xf32> -> vector<16x32xf32>
    %305 = arith.addf %301, %304 : vector<16x32xf32>
    %306 = vector.extract_strided_slice %289 {offsets = [48, 0], sizes = [16, 8], strides = [1, 1]} : vector<64x8xf32> to vector<16x8xf32>
    %307 = vector.extract_strided_slice %291 {offsets = [24, 0], sizes = [8, 32], strides = [1, 1]} : vector<32x32xf32> to vector<8x32xf32>
    %cst_115 = arith.constant dense<0.000000e+00> : vector<16x32xf32>
    %308 = tpu.matmul %306, %307, %cst_115 {dimension_numbers = #tpu.dot_dimension_numbers<[1], [0], [0], [1], [0, 0, 1, 1], [], []>} : vector<16x8xf32>, vector<8x32xf32>, vector<16x32xf32> -> vector<16x32xf32>
    %309 = arith.addf %305, %308 : vector<16x32xf32>
    %310 = arith.addf %250, %309 : vector<16x32xf32>
    %cst_116 = arith.constant dense<0.000000e+00> : vector<16xf32>
    %311 = vector.multi_reduction <add>, %310, %cst_116 [1] : vector<16x32xf32> to vector<16xf32>
    %312 = vector.shape_cast %311 : vector<16xf32> to vector<16x1xf32>
    %cst_117 = arith.constant 3.200000e+01 : f32
    %313 = vector.broadcast %cst_117 : f32 to vector<16x1xf32>
    %314 = arith.divf %312, %313 : vector<16x1xf32>
    %315 = vector.broadcast %314 : vector<16x1xf32> to vector<16x32xf32>
    %316 = arith.subf %310, %315 : vector<16x32xf32>
    %317 = arith.mulf %316, %316 : vector<16x32xf32>
    %cst_118 = arith.constant dense<0.000000e+00> : vector<16xf32>
    %318 = vector.multi_reduction <add>, %317, %cst_118 [1] : vector<16x32xf32> to vector<16xf32>
    %319 = vector.shape_cast %318 : vector<16xf32> to vector<16x1xf32>
    %cst_119 = arith.constant 3.200000e+01 : f32
    %320 = vector.broadcast %cst_119 : f32 to vector<16x1xf32>
    %321 = arith.divf %319, %320 : vector<16x1xf32>
    %322 = vector.broadcast %314 : vector<16x1xf32> to vector<16x32xf32>
    %323 = arith.subf %310, %322 : vector<16x32xf32>
    %cst_120 = arith.constant 9.99999974E-6 : f32
    %324 = vector.broadcast %cst_120 : f32 to vector<16x1xf32>
    %325 = arith.addf %321, %324 : vector<16x1xf32>
    %326 = math.rsqrt %325 : vector<16x1xf32>
    %327 = vector.broadcast %326 : vector<16x1xf32> to vector<16x32xf32>
    %328 = arith.mulf %323, %327 : vector<16x32xf32>
    %c24 = arith.constant 24 : index
    %c0_121 = arith.constant 0 : index
    %329 = vector.load %arg10[%c24, %c0_121] : memref<41x128xf32, #tpu.memory_space<vmem>>, vector<1x32xf32>
    %330 = vector.broadcast %329 : vector<1x32xf32> to vector<16x32xf32>
    %331 = arith.mulf %328, %330 : vector<16x32xf32>
    %c34 = arith.constant 34 : index
    %c0_122 = arith.constant 0 : index
    %332 = vector.load %arg10[%c34, %c0_122] : memref<41x128xf32, #tpu.memory_space<vmem>>, vector<1x32xf32>
    %333 = vector.broadcast %332 : vector<1x32xf32> to vector<16x32xf32>
    %334 = arith.addf %331, %333 : vector<16x32xf32>
    %c3 = arith.constant 3 : index
    %c0_123 = arith.constant 0 : index
    %c0_124 = arith.constant 0 : index
    %335 = vector.load %arg6[%c3, %c0_123, %c0_124] : memref<6x32x96xf32, #tpu.memory_space<vmem>>, vector<1x32x96xf32>
    %336 = vector.shape_cast %335 : vector<1x32x96xf32> to vector<32x96xf32>
    %c3_125 = arith.constant 3 : index
    %c0_126 = arith.constant 0 : index
    %337 = vector.load %arg10[%c3_125, %c0_126] : memref<41x128xf32, #tpu.memory_space<vmem>>, vector<1x96xf32>
    %cst_127 = arith.constant dense<0.000000e+00> : vector<16x96xf32>
    %338 = tpu.matmul %334, %336, %cst_127 {dimension_numbers = #tpu.dot_dimension_numbers<[1], [0], [0], [1], [0, 0, 1, 1], [], []>} : vector<16x32xf32>, vector<32x96xf32>, vector<16x96xf32> -> vector<16x96xf32>
    %339 = vector.broadcast %337 : vector<1x96xf32> to vector<16x96xf32>
    %340 = arith.addf %338, %339 : vector<16x96xf32>
    %cst_128 = arith.constant dense<0.000000e+00> : vector<16x96xf32>
    %341 = tpu.matmul %249, %336, %cst_128 {dimension_numbers = #tpu.dot_dimension_numbers<[1], [0], [0], [1], [0, 0, 1, 1], [], []>} : vector<16x32xf32>, vector<32x96xf32>, vector<16x96xf32> -> vector<16x96xf32>
    %342 = vector.broadcast %337 : vector<1x96xf32> to vector<16x96xf32>
    %343 = arith.addf %341, %342 : vector<16x96xf32>
    %344 = vector.extract_strided_slice %340 {offsets = [0, 0], sizes = [16, 8], strides = [1, 1]} : vector<16x96xf32> to vector<16x8xf32>
    %345 = vector.extract_strided_slice %340 {offsets = [0, 8], sizes = [16, 8], strides = [1, 1]} : vector<16x96xf32> to vector<16x8xf32>
    %346 = vector.extract_strided_slice %340 {offsets = [0, 16], sizes = [16, 8], strides = [1, 1]} : vector<16x96xf32> to vector<16x8xf32>
    %347 = vector.extract_strided_slice %340 {offsets = [0, 24], sizes = [16, 8], strides = [1, 1]} : vector<16x96xf32> to vector<16x8xf32>
    %348 = tpu.concatenate %344, %345, %346, %347 in 0 : vector<16x8xf32>, vector<16x8xf32>, vector<16x8xf32>, vector<16x8xf32> -> vector<64x8xf32>
    %349 = vector.extract_strided_slice %343 {offsets = [0, 32], sizes = [16, 8], strides = [1, 1]} : vector<16x96xf32> to vector<16x8xf32>
    %350 = vector.extract_strided_slice %343 {offsets = [0, 40], sizes = [16, 8], strides = [1, 1]} : vector<16x96xf32> to vector<16x8xf32>
    %351 = vector.extract_strided_slice %343 {offsets = [0, 48], sizes = [16, 8], strides = [1, 1]} : vector<16x96xf32> to vector<16x8xf32>
    %352 = vector.extract_strided_slice %343 {offsets = [0, 56], sizes = [16, 8], strides = [1, 1]} : vector<16x96xf32> to vector<16x8xf32>
    %353 = tpu.concatenate %349, %350, %351, %352 in 0 : vector<16x8xf32>, vector<16x8xf32>, vector<16x8xf32>, vector<16x8xf32> -> vector<64x8xf32>
    %354 = vector.extract_strided_slice %343 {offsets = [0, 64], sizes = [16, 8], strides = [1, 1]} : vector<16x96xf32> to vector<16x8xf32>
    %355 = vector.extract_strided_slice %343 {offsets = [0, 72], sizes = [16, 8], strides = [1, 1]} : vector<16x96xf32> to vector<16x8xf32>
    %356 = vector.extract_strided_slice %343 {offsets = [0, 80], sizes = [16, 8], strides = [1, 1]} : vector<16x96xf32> to vector<16x8xf32>
    %357 = vector.extract_strided_slice %343 {offsets = [0, 88], sizes = [16, 8], strides = [1, 1]} : vector<16x96xf32> to vector<16x8xf32>
    %358 = tpu.concatenate %354, %355, %356, %357 in 0 : vector<16x8xf32>, vector<16x8xf32>, vector<16x8xf32>, vector<16x8xf32> -> vector<64x8xf32>
    %359 = tpu.transpose %353, [1, 0] : vector<64x8xf32> -> vector<8x64xf32>
    %cst_129 = arith.constant dense<0.000000e+00> : vector<64x64xf32>
    %360 = tpu.matmul %348, %359, %cst_129 {dimension_numbers = #tpu.dot_dimension_numbers<[1], [0], [0], [1], [0, 0, 1, 1], [], []>} : vector<64x8xf32>, vector<8x64xf32>, vector<64x64xf32> -> vector<64x64xf32>
    %cst_130 = arith.constant 0.176776692 : f32
    %361 = vector.broadcast %cst_130 : f32 to vector<64x64xf32>
    %362 = arith.mulf %360, %361 : vector<64x64xf32>
    %cst_131 = arith.constant 0.000000e+00 : f32
    %363 = vector.broadcast %cst_131 : f32 to vector<64x64xf32>
    %364 = arith.cmpf ogt, %2, %363 : vector<64x64xf32>
    %365 = arith.select %364, %362, %2 : vector<64x64xi1>, vector<64x64xf32>
    %cst_132 = arith.constant dense<0xFF800000> : vector<64xf32>
    %366 = vector.multi_reduction <maximumf>, %365, %cst_132 [1] : vector<64x64xf32> to vector<64xf32>
    %367 = vector.shape_cast %366 : vector<64xf32> to vector<64x1xf32>
    %368 = vector.broadcast %367 : vector<64x1xf32> to vector<64x64xf32>
    %369 = arith.subf %365, %368 : vector<64x64xf32>
    %370 = math.exp %369 : vector<64x64xf32>
    %cst_133 = arith.constant dense<0.000000e+00> : vector<64xf32>
    %371 = vector.multi_reduction <add>, %370, %cst_133 [1] : vector<64x64xf32> to vector<64xf32>
    %372 = vector.shape_cast %371 : vector<64xf32> to vector<64x1xf32>
    %373 = tpu.reciprocal %372 : vector<64x1xf32> -> vector<64x1xf32>
    %374 = vector.broadcast %373 : vector<64x1xf32> to vector<64x64xf32>
    %375 = arith.mulf %370, %374 : vector<64x64xf32>
    %cst_134 = arith.constant dense<0.000000e+00> : vector<64x8xf32>
    %376 = tpu.matmul %375, %358, %cst_134 {dimension_numbers = #tpu.dot_dimension_numbers<[1], [0], [0], [1], [0, 0, 1, 1], [], []>} : vector<64x64xf32>, vector<64x8xf32>, vector<64x8xf32> -> vector<64x8xf32>
    %c3_135 = arith.constant 3 : index
    %c0_136 = arith.constant 0 : index
    %c0_137 = arith.constant 0 : index
    %377 = vector.load %arg7[%c3_135, %c0_136, %c0_137] : memref<6x32x32xf32, #tpu.memory_space<vmem>>, vector<1x32x32xf32>
    %378 = vector.shape_cast %377 : vector<1x32x32xf32> to vector<32x32xf32>
    %c9 = arith.constant 9 : index
    %c0_138 = arith.constant 0 : index
    %379 = vector.load %arg10[%c9, %c0_138] : memref<41x128xf32, #tpu.memory_space<vmem>>, vector<1x32xf32>
    %380 = vector.extract_strided_slice %376 {offsets = [0, 0], sizes = [16, 8], strides = [1, 1]} : vector<64x8xf32> to vector<16x8xf32>
    %381 = vector.extract_strided_slice %378 {offsets = [0, 0], sizes = [8, 32], strides = [1, 1]} : vector<32x32xf32> to vector<8x32xf32>
    %cst_139 = arith.constant dense<0.000000e+00> : vector<16x32xf32>
    %382 = tpu.matmul %380, %381, %cst_139 {dimension_numbers = #tpu.dot_dimension_numbers<[1], [0], [0], [1], [0, 0, 1, 1], [], []>} : vector<16x8xf32>, vector<8x32xf32>, vector<16x32xf32> -> vector<16x32xf32>
    %383 = vector.broadcast %379 : vector<1x32xf32> to vector<16x32xf32>
    %384 = arith.addf %383, %382 : vector<16x32xf32>
    %385 = vector.extract_strided_slice %376 {offsets = [16, 0], sizes = [16, 8], strides = [1, 1]} : vector<64x8xf32> to vector<16x8xf32>
    %386 = vector.extract_strided_slice %378 {offsets = [8, 0], sizes = [8, 32], strides = [1, 1]} : vector<32x32xf32> to vector<8x32xf32>
    %cst_140 = arith.constant dense<0.000000e+00> : vector<16x32xf32>
    %387 = tpu.matmul %385, %386, %cst_140 {dimension_numbers = #tpu.dot_dimension_numbers<[1], [0], [0], [1], [0, 0, 1, 1], [], []>} : vector<16x8xf32>, vector<8x32xf32>, vector<16x32xf32> -> vector<16x32xf32>
    %388 = arith.addf %384, %387 : vector<16x32xf32>
    %389 = vector.extract_strided_slice %376 {offsets = [32, 0], sizes = [16, 8], strides = [1, 1]} : vector<64x8xf32> to vector<16x8xf32>
    %390 = vector.extract_strided_slice %378 {offsets = [16, 0], sizes = [8, 32], strides = [1, 1]} : vector<32x32xf32> to vector<8x32xf32>
    %cst_141 = arith.constant dense<0.000000e+00> : vector<16x32xf32>
    %391 = tpu.matmul %389, %390, %cst_141 {dimension_numbers = #tpu.dot_dimension_numbers<[1], [0], [0], [1], [0, 0, 1, 1], [], []>} : vector<16x8xf32>, vector<8x32xf32>, vector<16x32xf32> -> vector<16x32xf32>
    %392 = arith.addf %388, %391 : vector<16x32xf32>
    %393 = vector.extract_strided_slice %376 {offsets = [48, 0], sizes = [16, 8], strides = [1, 1]} : vector<64x8xf32> to vector<16x8xf32>
    %394 = vector.extract_strided_slice %378 {offsets = [24, 0], sizes = [8, 32], strides = [1, 1]} : vector<32x32xf32> to vector<8x32xf32>
    %cst_142 = arith.constant dense<0.000000e+00> : vector<16x32xf32>
    %395 = tpu.matmul %393, %394, %cst_142 {dimension_numbers = #tpu.dot_dimension_numbers<[1], [0], [0], [1], [0, 0, 1, 1], [], []>} : vector<16x8xf32>, vector<8x32xf32>, vector<16x32xf32> -> vector<16x32xf32>
    %396 = arith.addf %392, %395 : vector<16x32xf32>
    %397 = arith.addf %334, %396 : vector<16x32xf32>
    %cst_143 = arith.constant dense<0.000000e+00> : vector<16xf32>
    %398 = vector.multi_reduction <add>, %397, %cst_143 [1] : vector<16x32xf32> to vector<16xf32>
    %399 = vector.shape_cast %398 : vector<16xf32> to vector<16x1xf32>
    %cst_144 = arith.constant 3.200000e+01 : f32
    %400 = vector.broadcast %cst_144 : f32 to vector<16x1xf32>
    %401 = arith.divf %399, %400 : vector<16x1xf32>
    %402 = vector.broadcast %401 : vector<16x1xf32> to vector<16x32xf32>
    %403 = arith.subf %397, %402 : vector<16x32xf32>
    %404 = arith.mulf %403, %403 : vector<16x32xf32>
    %cst_145 = arith.constant dense<0.000000e+00> : vector<16xf32>
    %405 = vector.multi_reduction <add>, %404, %cst_145 [1] : vector<16x32xf32> to vector<16xf32>
    %406 = vector.shape_cast %405 : vector<16xf32> to vector<16x1xf32>
    %cst_146 = arith.constant 3.200000e+01 : f32
    %407 = vector.broadcast %cst_146 : f32 to vector<16x1xf32>
    %408 = arith.divf %406, %407 : vector<16x1xf32>
    %409 = vector.broadcast %401 : vector<16x1xf32> to vector<16x32xf32>
    %410 = arith.subf %397, %409 : vector<16x32xf32>
    %cst_147 = arith.constant 9.99999974E-6 : f32
    %411 = vector.broadcast %cst_147 : f32 to vector<16x1xf32>
    %412 = arith.addf %408, %411 : vector<16x1xf32>
    %413 = math.rsqrt %412 : vector<16x1xf32>
    %414 = vector.broadcast %413 : vector<16x1xf32> to vector<16x32xf32>
    %415 = arith.mulf %410, %414 : vector<16x32xf32>
    %c25 = arith.constant 25 : index
    %c0_148 = arith.constant 0 : index
    %416 = vector.load %arg10[%c25, %c0_148] : memref<41x128xf32, #tpu.memory_space<vmem>>, vector<1x32xf32>
    %417 = vector.broadcast %416 : vector<1x32xf32> to vector<16x32xf32>
    %418 = arith.mulf %415, %417 : vector<16x32xf32>
    %c35 = arith.constant 35 : index
    %c0_149 = arith.constant 0 : index
    %419 = vector.load %arg10[%c35, %c0_149] : memref<41x128xf32, #tpu.memory_space<vmem>>, vector<1x32xf32>
    %420 = vector.broadcast %419 : vector<1x32xf32> to vector<16x32xf32>
    %421 = arith.addf %418, %420 : vector<16x32xf32>
    %c2_150 = arith.constant 2 : index
    %c0_151 = arith.constant 0 : index
    %c0_152 = arith.constant 0 : index
    %422 = vector.load %arg8[%c2_150, %c0_151, %c0_152] : memref<4x32x64xf32, #tpu.memory_space<vmem>>, vector<1x32x64xf32>
    %423 = vector.shape_cast %422 : vector<1x32x64xf32> to vector<32x64xf32>
    %cst_153 = arith.constant dense<0.000000e+00> : vector<16x64xf32>
    %424 = tpu.matmul %421, %423, %cst_153 {dimension_numbers = #tpu.dot_dimension_numbers<[1], [0], [0], [1], [0, 0, 1, 1], [], []>} : vector<16x32xf32>, vector<32x64xf32>, vector<16x64xf32> -> vector<16x64xf32>
    %c14 = arith.constant 14 : index
    %c0_154 = arith.constant 0 : index
    %425 = vector.load %arg10[%c14, %c0_154] : memref<41x128xf32, #tpu.memory_space<vmem>>, vector<1x64xf32>
    %426 = vector.broadcast %425 : vector<1x64xf32> to vector<16x64xf32>
    %427 = arith.addf %424, %426 : vector<16x64xf32>
    %cst_155 = arith.constant 0.000000e+00 : f32
    %428 = vector.broadcast %cst_155 : f32 to vector<16x64xf32>
    %429 = arith.maximumf %427, %428 : vector<16x64xf32>
    %c2_156 = arith.constant 2 : index
    %c0_157 = arith.constant 0 : index
    %c0_158 = arith.constant 0 : index
    %430 = vector.load %arg9[%c2_156, %c0_157, %c0_158] : memref<4x64x32xf32, #tpu.memory_space<vmem>>, vector<1x64x32xf32>
    %431 = vector.shape_cast %430 : vector<1x64x32xf32> to vector<64x32xf32>
    %cst_159 = arith.constant dense<0.000000e+00> : vector<16x32xf32>
    %432 = tpu.matmul %429, %431, %cst_159 {dimension_numbers = #tpu.dot_dimension_numbers<[1], [0], [0], [1], [0, 0, 1, 1], [], []>} : vector<16x64xf32>, vector<64x32xf32>, vector<16x32xf32> -> vector<16x32xf32>
    %c18 = arith.constant 18 : index
    %c0_160 = arith.constant 0 : index
    %433 = vector.load %arg10[%c18, %c0_160] : memref<41x128xf32, #tpu.memory_space<vmem>>, vector<1x32xf32>
    %434 = vector.broadcast %433 : vector<1x32xf32> to vector<16x32xf32>
    %435 = arith.addf %432, %434 : vector<16x32xf32>
    %436 = arith.addf %421, %435 : vector<16x32xf32>
    %cst_161 = arith.constant dense<0.000000e+00> : vector<16xf32>
    %437 = vector.multi_reduction <add>, %436, %cst_161 [1] : vector<16x32xf32> to vector<16xf32>
    %438 = vector.shape_cast %437 : vector<16xf32> to vector<16x1xf32>
    %cst_162 = arith.constant 3.200000e+01 : f32
    %439 = vector.broadcast %cst_162 : f32 to vector<16x1xf32>
    %440 = arith.divf %438, %439 : vector<16x1xf32>
    %441 = vector.broadcast %440 : vector<16x1xf32> to vector<16x32xf32>
    %442 = arith.subf %436, %441 : vector<16x32xf32>
    %443 = arith.mulf %442, %442 : vector<16x32xf32>
    %cst_163 = arith.constant dense<0.000000e+00> : vector<16xf32>
    %444 = vector.multi_reduction <add>, %443, %cst_163 [1] : vector<16x32xf32> to vector<16xf32>
    %445 = vector.shape_cast %444 : vector<16xf32> to vector<16x1xf32>
    %cst_164 = arith.constant 3.200000e+01 : f32
    %446 = vector.broadcast %cst_164 : f32 to vector<16x1xf32>
    %447 = arith.divf %445, %446 : vector<16x1xf32>
    %448 = vector.broadcast %440 : vector<16x1xf32> to vector<16x32xf32>
    %449 = arith.subf %436, %448 : vector<16x32xf32>
    %cst_165 = arith.constant 9.99999974E-6 : f32
    %450 = vector.broadcast %cst_165 : f32 to vector<16x1xf32>
    %451 = arith.addf %447, %450 : vector<16x1xf32>
    %452 = math.rsqrt %451 : vector<16x1xf32>
    %453 = vector.broadcast %452 : vector<16x1xf32> to vector<16x32xf32>
    %454 = arith.mulf %449, %453 : vector<16x32xf32>
    %c26 = arith.constant 26 : index
    %c0_166 = arith.constant 0 : index
    %455 = vector.load %arg10[%c26, %c0_166] : memref<41x128xf32, #tpu.memory_space<vmem>>, vector<1x32xf32>
    %456 = vector.broadcast %455 : vector<1x32xf32> to vector<16x32xf32>
    %457 = arith.mulf %454, %456 : vector<16x32xf32>
    %c36 = arith.constant 36 : index
    %c0_167 = arith.constant 0 : index
    %458 = vector.load %arg10[%c36, %c0_167] : memref<41x128xf32, #tpu.memory_space<vmem>>, vector<1x32xf32>
    %459 = vector.broadcast %458 : vector<1x32xf32> to vector<16x32xf32>
    %460 = arith.addf %457, %459 : vector<16x32xf32>
    %c4 = arith.constant 4 : index
    %c0_168 = arith.constant 0 : index
    %c0_169 = arith.constant 0 : index
    %461 = vector.load %arg6[%c4, %c0_168, %c0_169] : memref<6x32x96xf32, #tpu.memory_space<vmem>>, vector<1x32x96xf32>
    %462 = vector.shape_cast %461 : vector<1x32x96xf32> to vector<32x96xf32>
    %c4_170 = arith.constant 4 : index
    %c0_171 = arith.constant 0 : index
    %463 = vector.load %arg10[%c4_170, %c0_171] : memref<41x128xf32, #tpu.memory_space<vmem>>, vector<1x96xf32>
    %cst_172 = arith.constant dense<0.000000e+00> : vector<16x96xf32>
    %464 = tpu.matmul %460, %462, %cst_172 {dimension_numbers = #tpu.dot_dimension_numbers<[1], [0], [0], [1], [0, 0, 1, 1], [], []>} : vector<16x32xf32>, vector<32x96xf32>, vector<16x96xf32> -> vector<16x96xf32>
    %465 = vector.broadcast %463 : vector<1x96xf32> to vector<16x96xf32>
    %466 = arith.addf %464, %465 : vector<16x96xf32>
    %467 = vector.extract_strided_slice %466 {offsets = [0, 0], sizes = [16, 8], strides = [1, 1]} : vector<16x96xf32> to vector<16x8xf32>
    %468 = vector.extract_strided_slice %466 {offsets = [0, 8], sizes = [16, 8], strides = [1, 1]} : vector<16x96xf32> to vector<16x8xf32>
    %469 = vector.extract_strided_slice %466 {offsets = [0, 16], sizes = [16, 8], strides = [1, 1]} : vector<16x96xf32> to vector<16x8xf32>
    %470 = vector.extract_strided_slice %466 {offsets = [0, 24], sizes = [16, 8], strides = [1, 1]} : vector<16x96xf32> to vector<16x8xf32>
    %471 = tpu.concatenate %467, %468, %469, %470 in 0 : vector<16x8xf32>, vector<16x8xf32>, vector<16x8xf32>, vector<16x8xf32> -> vector<64x8xf32>
    %472 = vector.extract_strided_slice %466 {offsets = [0, 32], sizes = [16, 8], strides = [1, 1]} : vector<16x96xf32> to vector<16x8xf32>
    %473 = vector.extract_strided_slice %466 {offsets = [0, 40], sizes = [16, 8], strides = [1, 1]} : vector<16x96xf32> to vector<16x8xf32>
    %474 = vector.extract_strided_slice %466 {offsets = [0, 48], sizes = [16, 8], strides = [1, 1]} : vector<16x96xf32> to vector<16x8xf32>
    %475 = vector.extract_strided_slice %466 {offsets = [0, 56], sizes = [16, 8], strides = [1, 1]} : vector<16x96xf32> to vector<16x8xf32>
    %476 = tpu.concatenate %472, %473, %474, %475 in 0 : vector<16x8xf32>, vector<16x8xf32>, vector<16x8xf32>, vector<16x8xf32> -> vector<64x8xf32>
    %477 = vector.extract_strided_slice %466 {offsets = [0, 64], sizes = [16, 8], strides = [1, 1]} : vector<16x96xf32> to vector<16x8xf32>
    %478 = vector.extract_strided_slice %466 {offsets = [0, 72], sizes = [16, 8], strides = [1, 1]} : vector<16x96xf32> to vector<16x8xf32>
    %479 = vector.extract_strided_slice %466 {offsets = [0, 80], sizes = [16, 8], strides = [1, 1]} : vector<16x96xf32> to vector<16x8xf32>
    %480 = vector.extract_strided_slice %466 {offsets = [0, 88], sizes = [16, 8], strides = [1, 1]} : vector<16x96xf32> to vector<16x8xf32>
    %481 = tpu.concatenate %477, %478, %479, %480 in 0 : vector<16x8xf32>, vector<16x8xf32>, vector<16x8xf32>, vector<16x8xf32> -> vector<64x8xf32>
    %482 = tpu.transpose %476, [1, 0] : vector<64x8xf32> -> vector<8x64xf32>
    %cst_173 = arith.constant dense<0.000000e+00> : vector<64x64xf32>
    %483 = tpu.matmul %471, %482, %cst_173 {dimension_numbers = #tpu.dot_dimension_numbers<[1], [0], [0], [1], [0, 0, 1, 1], [], []>} : vector<64x8xf32>, vector<8x64xf32>, vector<64x64xf32> -> vector<64x64xf32>
    %cst_174 = arith.constant 0.176776692 : f32
    %484 = vector.broadcast %cst_174 : f32 to vector<64x64xf32>
    %485 = arith.mulf %483, %484 : vector<64x64xf32>
    %cst_175 = arith.constant 0.000000e+00 : f32
    %486 = vector.broadcast %cst_175 : f32 to vector<64x64xf32>
    %487 = arith.cmpf ogt, %1, %486 : vector<64x64xf32>
    %488 = arith.select %487, %485, %1 : vector<64x64xi1>, vector<64x64xf32>
    %cst_176 = arith.constant dense<0xFF800000> : vector<64xf32>
    %489 = vector.multi_reduction <maximumf>, %488, %cst_176 [1] : vector<64x64xf32> to vector<64xf32>
    %490 = vector.shape_cast %489 : vector<64xf32> to vector<64x1xf32>
    %491 = vector.broadcast %490 : vector<64x1xf32> to vector<64x64xf32>
    %492 = arith.subf %488, %491 : vector<64x64xf32>
    %493 = math.exp %492 : vector<64x64xf32>
    %cst_177 = arith.constant dense<0.000000e+00> : vector<64xf32>
    %494 = vector.multi_reduction <add>, %493, %cst_177 [1] : vector<64x64xf32> to vector<64xf32>
    %495 = vector.shape_cast %494 : vector<64xf32> to vector<64x1xf32>
    %496 = tpu.reciprocal %495 : vector<64x1xf32> -> vector<64x1xf32>
    %497 = vector.broadcast %496 : vector<64x1xf32> to vector<64x64xf32>
    %498 = arith.mulf %493, %497 : vector<64x64xf32>
    %cst_178 = arith.constant dense<0.000000e+00> : vector<64x8xf32>
    %499 = tpu.matmul %498, %481, %cst_178 {dimension_numbers = #tpu.dot_dimension_numbers<[1], [0], [0], [1], [0, 0, 1, 1], [], []>} : vector<64x64xf32>, vector<64x8xf32>, vector<64x8xf32> -> vector<64x8xf32>
    %c4_179 = arith.constant 4 : index
    %c0_180 = arith.constant 0 : index
    %c0_181 = arith.constant 0 : index
    %500 = vector.load %arg7[%c4_179, %c0_180, %c0_181] : memref<6x32x32xf32, #tpu.memory_space<vmem>>, vector<1x32x32xf32>
    %501 = vector.shape_cast %500 : vector<1x32x32xf32> to vector<32x32xf32>
    %c10 = arith.constant 10 : index
    %c0_182 = arith.constant 0 : index
    %502 = vector.load %arg10[%c10, %c0_182] : memref<41x128xf32, #tpu.memory_space<vmem>>, vector<1x32xf32>
    %503 = vector.extract_strided_slice %499 {offsets = [0, 0], sizes = [16, 8], strides = [1, 1]} : vector<64x8xf32> to vector<16x8xf32>
    %504 = vector.extract_strided_slice %501 {offsets = [0, 0], sizes = [8, 32], strides = [1, 1]} : vector<32x32xf32> to vector<8x32xf32>
    %cst_183 = arith.constant dense<0.000000e+00> : vector<16x32xf32>
    %505 = tpu.matmul %503, %504, %cst_183 {dimension_numbers = #tpu.dot_dimension_numbers<[1], [0], [0], [1], [0, 0, 1, 1], [], []>} : vector<16x8xf32>, vector<8x32xf32>, vector<16x32xf32> -> vector<16x32xf32>
    %506 = vector.broadcast %502 : vector<1x32xf32> to vector<16x32xf32>
    %507 = arith.addf %506, %505 : vector<16x32xf32>
    %508 = vector.extract_strided_slice %499 {offsets = [16, 0], sizes = [16, 8], strides = [1, 1]} : vector<64x8xf32> to vector<16x8xf32>
    %509 = vector.extract_strided_slice %501 {offsets = [8, 0], sizes = [8, 32], strides = [1, 1]} : vector<32x32xf32> to vector<8x32xf32>
    %cst_184 = arith.constant dense<0.000000e+00> : vector<16x32xf32>
    %510 = tpu.matmul %508, %509, %cst_184 {dimension_numbers = #tpu.dot_dimension_numbers<[1], [0], [0], [1], [0, 0, 1, 1], [], []>} : vector<16x8xf32>, vector<8x32xf32>, vector<16x32xf32> -> vector<16x32xf32>
    %511 = arith.addf %507, %510 : vector<16x32xf32>
    %512 = vector.extract_strided_slice %499 {offsets = [32, 0], sizes = [16, 8], strides = [1, 1]} : vector<64x8xf32> to vector<16x8xf32>
    %513 = vector.extract_strided_slice %501 {offsets = [16, 0], sizes = [8, 32], strides = [1, 1]} : vector<32x32xf32> to vector<8x32xf32>
    %cst_185 = arith.constant dense<0.000000e+00> : vector<16x32xf32>
    %514 = tpu.matmul %512, %513, %cst_185 {dimension_numbers = #tpu.dot_dimension_numbers<[1], [0], [0], [1], [0, 0, 1, 1], [], []>} : vector<16x8xf32>, vector<8x32xf32>, vector<16x32xf32> -> vector<16x32xf32>
    %515 = arith.addf %511, %514 : vector<16x32xf32>
    %516 = vector.extract_strided_slice %499 {offsets = [48, 0], sizes = [16, 8], strides = [1, 1]} : vector<64x8xf32> to vector<16x8xf32>
    %517 = vector.extract_strided_slice %501 {offsets = [24, 0], sizes = [8, 32], strides = [1, 1]} : vector<32x32xf32> to vector<8x32xf32>
    %cst_186 = arith.constant dense<0.000000e+00> : vector<16x32xf32>
    %518 = tpu.matmul %516, %517, %cst_186 {dimension_numbers = #tpu.dot_dimension_numbers<[1], [0], [0], [1], [0, 0, 1, 1], [], []>} : vector<16x8xf32>, vector<8x32xf32>, vector<16x32xf32> -> vector<16x32xf32>
    %519 = arith.addf %515, %518 : vector<16x32xf32>
    %520 = arith.addf %460, %519 : vector<16x32xf32>
    %cst_187 = arith.constant dense<0.000000e+00> : vector<16xf32>
    %521 = vector.multi_reduction <add>, %520, %cst_187 [1] : vector<16x32xf32> to vector<16xf32>
    %522 = vector.shape_cast %521 : vector<16xf32> to vector<16x1xf32>
    %cst_188 = arith.constant 3.200000e+01 : f32
    %523 = vector.broadcast %cst_188 : f32 to vector<16x1xf32>
    %524 = arith.divf %522, %523 : vector<16x1xf32>
    %525 = vector.broadcast %524 : vector<16x1xf32> to vector<16x32xf32>
    %526 = arith.subf %520, %525 : vector<16x32xf32>
    %527 = arith.mulf %526, %526 : vector<16x32xf32>
    %cst_189 = arith.constant dense<0.000000e+00> : vector<16xf32>
    %528 = vector.multi_reduction <add>, %527, %cst_189 [1] : vector<16x32xf32> to vector<16xf32>
    %529 = vector.shape_cast %528 : vector<16xf32> to vector<16x1xf32>
    %cst_190 = arith.constant 3.200000e+01 : f32
    %530 = vector.broadcast %cst_190 : f32 to vector<16x1xf32>
    %531 = arith.divf %529, %530 : vector<16x1xf32>
    %532 = vector.broadcast %524 : vector<16x1xf32> to vector<16x32xf32>
    %533 = arith.subf %520, %532 : vector<16x32xf32>
    %cst_191 = arith.constant 9.99999974E-6 : f32
    %534 = vector.broadcast %cst_191 : f32 to vector<16x1xf32>
    %535 = arith.addf %531, %534 : vector<16x1xf32>
    %536 = math.rsqrt %535 : vector<16x1xf32>
    %537 = vector.broadcast %536 : vector<16x1xf32> to vector<16x32xf32>
    %538 = arith.mulf %533, %537 : vector<16x32xf32>
    %c27 = arith.constant 27 : index
    %c0_192 = arith.constant 0 : index
    %539 = vector.load %arg10[%c27, %c0_192] : memref<41x128xf32, #tpu.memory_space<vmem>>, vector<1x32xf32>
    %540 = vector.broadcast %539 : vector<1x32xf32> to vector<16x32xf32>
    %541 = arith.mulf %538, %540 : vector<16x32xf32>
    %c37 = arith.constant 37 : index
    %c0_193 = arith.constant 0 : index
    %542 = vector.load %arg10[%c37, %c0_193] : memref<41x128xf32, #tpu.memory_space<vmem>>, vector<1x32xf32>
    %543 = vector.broadcast %542 : vector<1x32xf32> to vector<16x32xf32>
    %544 = arith.addf %541, %543 : vector<16x32xf32>
    %c5 = arith.constant 5 : index
    %c0_194 = arith.constant 0 : index
    %c0_195 = arith.constant 0 : index
    %545 = vector.load %arg6[%c5, %c0_194, %c0_195] : memref<6x32x96xf32, #tpu.memory_space<vmem>>, vector<1x32x96xf32>
    %546 = vector.shape_cast %545 : vector<1x32x96xf32> to vector<32x96xf32>
    %c5_196 = arith.constant 5 : index
    %c0_197 = arith.constant 0 : index
    %547 = vector.load %arg10[%c5_196, %c0_197] : memref<41x128xf32, #tpu.memory_space<vmem>>, vector<1x96xf32>
    %cst_198 = arith.constant dense<0.000000e+00> : vector<16x96xf32>
    %548 = tpu.matmul %544, %546, %cst_198 {dimension_numbers = #tpu.dot_dimension_numbers<[1], [0], [0], [1], [0, 0, 1, 1], [], []>} : vector<16x32xf32>, vector<32x96xf32>, vector<16x96xf32> -> vector<16x96xf32>
    %549 = vector.broadcast %547 : vector<1x96xf32> to vector<16x96xf32>
    %550 = arith.addf %548, %549 : vector<16x96xf32>
    %cst_199 = arith.constant dense<0.000000e+00> : vector<16x96xf32>
    %551 = tpu.matmul %249, %546, %cst_199 {dimension_numbers = #tpu.dot_dimension_numbers<[1], [0], [0], [1], [0, 0, 1, 1], [], []>} : vector<16x32xf32>, vector<32x96xf32>, vector<16x96xf32> -> vector<16x96xf32>
    %552 = vector.broadcast %547 : vector<1x96xf32> to vector<16x96xf32>
    %553 = arith.addf %551, %552 : vector<16x96xf32>
    %554 = vector.extract_strided_slice %550 {offsets = [0, 0], sizes = [16, 8], strides = [1, 1]} : vector<16x96xf32> to vector<16x8xf32>
    %555 = vector.extract_strided_slice %550 {offsets = [0, 8], sizes = [16, 8], strides = [1, 1]} : vector<16x96xf32> to vector<16x8xf32>
    %556 = vector.extract_strided_slice %550 {offsets = [0, 16], sizes = [16, 8], strides = [1, 1]} : vector<16x96xf32> to vector<16x8xf32>
    %557 = vector.extract_strided_slice %550 {offsets = [0, 24], sizes = [16, 8], strides = [1, 1]} : vector<16x96xf32> to vector<16x8xf32>
    %558 = tpu.concatenate %554, %555, %556, %557 in 0 : vector<16x8xf32>, vector<16x8xf32>, vector<16x8xf32>, vector<16x8xf32> -> vector<64x8xf32>
    %559 = vector.extract_strided_slice %553 {offsets = [0, 32], sizes = [16, 8], strides = [1, 1]} : vector<16x96xf32> to vector<16x8xf32>
    %560 = vector.extract_strided_slice %553 {offsets = [0, 40], sizes = [16, 8], strides = [1, 1]} : vector<16x96xf32> to vector<16x8xf32>
    %561 = vector.extract_strided_slice %553 {offsets = [0, 48], sizes = [16, 8], strides = [1, 1]} : vector<16x96xf32> to vector<16x8xf32>
    %562 = vector.extract_strided_slice %553 {offsets = [0, 56], sizes = [16, 8], strides = [1, 1]} : vector<16x96xf32> to vector<16x8xf32>
    %563 = tpu.concatenate %559, %560, %561, %562 in 0 : vector<16x8xf32>, vector<16x8xf32>, vector<16x8xf32>, vector<16x8xf32> -> vector<64x8xf32>
    %564 = vector.extract_strided_slice %553 {offsets = [0, 64], sizes = [16, 8], strides = [1, 1]} : vector<16x96xf32> to vector<16x8xf32>
    %565 = vector.extract_strided_slice %553 {offsets = [0, 72], sizes = [16, 8], strides = [1, 1]} : vector<16x96xf32> to vector<16x8xf32>
    %566 = vector.extract_strided_slice %553 {offsets = [0, 80], sizes = [16, 8], strides = [1, 1]} : vector<16x96xf32> to vector<16x8xf32>
    %567 = vector.extract_strided_slice %553 {offsets = [0, 88], sizes = [16, 8], strides = [1, 1]} : vector<16x96xf32> to vector<16x8xf32>
    %568 = tpu.concatenate %564, %565, %566, %567 in 0 : vector<16x8xf32>, vector<16x8xf32>, vector<16x8xf32>, vector<16x8xf32> -> vector<64x8xf32>
    %569 = tpu.transpose %563, [1, 0] : vector<64x8xf32> -> vector<8x64xf32>
    %cst_200 = arith.constant dense<0.000000e+00> : vector<64x64xf32>
    %570 = tpu.matmul %558, %569, %cst_200 {dimension_numbers = #tpu.dot_dimension_numbers<[1], [0], [0], [1], [0, 0, 1, 1], [], []>} : vector<64x8xf32>, vector<8x64xf32>, vector<64x64xf32> -> vector<64x64xf32>
    %cst_201 = arith.constant 0.176776692 : f32
    %571 = vector.broadcast %cst_201 : f32 to vector<64x64xf32>
    %572 = arith.mulf %570, %571 : vector<64x64xf32>
    %cst_202 = arith.constant 0.000000e+00 : f32
    %573 = vector.broadcast %cst_202 : f32 to vector<64x64xf32>
    %574 = arith.cmpf ogt, %2, %573 : vector<64x64xf32>
    %575 = arith.select %574, %572, %2 : vector<64x64xi1>, vector<64x64xf32>
    %cst_203 = arith.constant dense<0xFF800000> : vector<64xf32>
    %576 = vector.multi_reduction <maximumf>, %575, %cst_203 [1] : vector<64x64xf32> to vector<64xf32>
    %577 = vector.shape_cast %576 : vector<64xf32> to vector<64x1xf32>
    %578 = vector.broadcast %577 : vector<64x1xf32> to vector<64x64xf32>
    %579 = arith.subf %575, %578 : vector<64x64xf32>
    %580 = math.exp %579 : vector<64x64xf32>
    %cst_204 = arith.constant dense<0.000000e+00> : vector<64xf32>
    %581 = vector.multi_reduction <add>, %580, %cst_204 [1] : vector<64x64xf32> to vector<64xf32>
    %582 = vector.shape_cast %581 : vector<64xf32> to vector<64x1xf32>
    %583 = tpu.reciprocal %582 : vector<64x1xf32> -> vector<64x1xf32>
    %584 = vector.broadcast %583 : vector<64x1xf32> to vector<64x64xf32>
    %585 = arith.mulf %580, %584 : vector<64x64xf32>
    %cst_205 = arith.constant dense<0.000000e+00> : vector<64x8xf32>
    %586 = tpu.matmul %585, %568, %cst_205 {dimension_numbers = #tpu.dot_dimension_numbers<[1], [0], [0], [1], [0, 0, 1, 1], [], []>} : vector<64x64xf32>, vector<64x8xf32>, vector<64x8xf32> -> vector<64x8xf32>
    %c5_206 = arith.constant 5 : index
    %c0_207 = arith.constant 0 : index
    %c0_208 = arith.constant 0 : index
    %587 = vector.load %arg7[%c5_206, %c0_207, %c0_208] : memref<6x32x32xf32, #tpu.memory_space<vmem>>, vector<1x32x32xf32>
    %588 = vector.shape_cast %587 : vector<1x32x32xf32> to vector<32x32xf32>
    %c11 = arith.constant 11 : index
    %c0_209 = arith.constant 0 : index
    %589 = vector.load %arg10[%c11, %c0_209] : memref<41x128xf32, #tpu.memory_space<vmem>>, vector<1x32xf32>
    %590 = vector.extract_strided_slice %586 {offsets = [0, 0], sizes = [16, 8], strides = [1, 1]} : vector<64x8xf32> to vector<16x8xf32>
    %591 = vector.extract_strided_slice %588 {offsets = [0, 0], sizes = [8, 32], strides = [1, 1]} : vector<32x32xf32> to vector<8x32xf32>
    %cst_210 = arith.constant dense<0.000000e+00> : vector<16x32xf32>
    %592 = tpu.matmul %590, %591, %cst_210 {dimension_numbers = #tpu.dot_dimension_numbers<[1], [0], [0], [1], [0, 0, 1, 1], [], []>} : vector<16x8xf32>, vector<8x32xf32>, vector<16x32xf32> -> vector<16x32xf32>
    %593 = vector.broadcast %589 : vector<1x32xf32> to vector<16x32xf32>
    %594 = arith.addf %593, %592 : vector<16x32xf32>
    %595 = vector.extract_strided_slice %586 {offsets = [16, 0], sizes = [16, 8], strides = [1, 1]} : vector<64x8xf32> to vector<16x8xf32>
    %596 = vector.extract_strided_slice %588 {offsets = [8, 0], sizes = [8, 32], strides = [1, 1]} : vector<32x32xf32> to vector<8x32xf32>
    %cst_211 = arith.constant dense<0.000000e+00> : vector<16x32xf32>
    %597 = tpu.matmul %595, %596, %cst_211 {dimension_numbers = #tpu.dot_dimension_numbers<[1], [0], [0], [1], [0, 0, 1, 1], [], []>} : vector<16x8xf32>, vector<8x32xf32>, vector<16x32xf32> -> vector<16x32xf32>
    %598 = arith.addf %594, %597 : vector<16x32xf32>
    %599 = vector.extract_strided_slice %586 {offsets = [32, 0], sizes = [16, 8], strides = [1, 1]} : vector<64x8xf32> to vector<16x8xf32>
    %600 = vector.extract_strided_slice %588 {offsets = [16, 0], sizes = [8, 32], strides = [1, 1]} : vector<32x32xf32> to vector<8x32xf32>
    %cst_212 = arith.constant dense<0.000000e+00> : vector<16x32xf32>
    %601 = tpu.matmul %599, %600, %cst_212 {dimension_numbers = #tpu.dot_dimension_numbers<[1], [0], [0], [1], [0, 0, 1, 1], [], []>} : vector<16x8xf32>, vector<8x32xf32>, vector<16x32xf32> -> vector<16x32xf32>
    %602 = arith.addf %598, %601 : vector<16x32xf32>
    %603 = vector.extract_strided_slice %586 {offsets = [48, 0], sizes = [16, 8], strides = [1, 1]} : vector<64x8xf32> to vector<16x8xf32>
    %604 = vector.extract_strided_slice %588 {offsets = [24, 0], sizes = [8, 32], strides = [1, 1]} : vector<32x32xf32> to vector<8x32xf32>
    %cst_213 = arith.constant dense<0.000000e+00> : vector<16x32xf32>
    %605 = tpu.matmul %603, %604, %cst_213 {dimension_numbers = #tpu.dot_dimension_numbers<[1], [0], [0], [1], [0, 0, 1, 1], [], []>} : vector<16x8xf32>, vector<8x32xf32>, vector<16x32xf32> -> vector<16x32xf32>
    %606 = arith.addf %602, %605 : vector<16x32xf32>
    %607 = arith.addf %544, %606 : vector<16x32xf32>
    %cst_214 = arith.constant dense<0.000000e+00> : vector<16xf32>
    %608 = vector.multi_reduction <add>, %607, %cst_214 [1] : vector<16x32xf32> to vector<16xf32>
    %609 = vector.shape_cast %608 : vector<16xf32> to vector<16x1xf32>
    %cst_215 = arith.constant 3.200000e+01 : f32
    %610 = vector.broadcast %cst_215 : f32 to vector<16x1xf32>
    %611 = arith.divf %609, %610 : vector<16x1xf32>
    %612 = vector.broadcast %611 : vector<16x1xf32> to vector<16x32xf32>
    %613 = arith.subf %607, %612 : vector<16x32xf32>
    %614 = arith.mulf %613, %613 : vector<16x32xf32>
    %cst_216 = arith.constant dense<0.000000e+00> : vector<16xf32>
    %615 = vector.multi_reduction <add>, %614, %cst_216 [1] : vector<16x32xf32> to vector<16xf32>
    %616 = vector.shape_cast %615 : vector<16xf32> to vector<16x1xf32>
    %cst_217 = arith.constant 3.200000e+01 : f32
    %617 = vector.broadcast %cst_217 : f32 to vector<16x1xf32>
    %618 = arith.divf %616, %617 : vector<16x1xf32>
    %619 = vector.broadcast %611 : vector<16x1xf32> to vector<16x32xf32>
    %620 = arith.subf %607, %619 : vector<16x32xf32>
    %cst_218 = arith.constant 9.99999974E-6 : f32
    %621 = vector.broadcast %cst_218 : f32 to vector<16x1xf32>
    %622 = arith.addf %618, %621 : vector<16x1xf32>
    %623 = math.rsqrt %622 : vector<16x1xf32>
    %624 = vector.broadcast %623 : vector<16x1xf32> to vector<16x32xf32>
    %625 = arith.mulf %620, %624 : vector<16x32xf32>
    %c28 = arith.constant 28 : index
    %c0_219 = arith.constant 0 : index
    %626 = vector.load %arg10[%c28, %c0_219] : memref<41x128xf32, #tpu.memory_space<vmem>>, vector<1x32xf32>
    %627 = vector.broadcast %626 : vector<1x32xf32> to vector<16x32xf32>
    %628 = arith.mulf %625, %627 : vector<16x32xf32>
    %c38 = arith.constant 38 : index
    %c0_220 = arith.constant 0 : index
    %629 = vector.load %arg10[%c38, %c0_220] : memref<41x128xf32, #tpu.memory_space<vmem>>, vector<1x32xf32>
    %630 = vector.broadcast %629 : vector<1x32xf32> to vector<16x32xf32>
    %631 = arith.addf %628, %630 : vector<16x32xf32>
    %c3_221 = arith.constant 3 : index
    %c0_222 = arith.constant 0 : index
    %c0_223 = arith.constant 0 : index
    %632 = vector.load %arg8[%c3_221, %c0_222, %c0_223] : memref<4x32x64xf32, #tpu.memory_space<vmem>>, vector<1x32x64xf32>
    %633 = vector.shape_cast %632 : vector<1x32x64xf32> to vector<32x64xf32>
    %cst_224 = arith.constant dense<0.000000e+00> : vector<16x64xf32>
    %634 = tpu.matmul %631, %633, %cst_224 {dimension_numbers = #tpu.dot_dimension_numbers<[1], [0], [0], [1], [0, 0, 1, 1], [], []>} : vector<16x32xf32>, vector<32x64xf32>, vector<16x64xf32> -> vector<16x64xf32>
    %c15 = arith.constant 15 : index
    %c0_225 = arith.constant 0 : index
    %635 = vector.load %arg10[%c15, %c0_225] : memref<41x128xf32, #tpu.memory_space<vmem>>, vector<1x64xf32>
    %636 = vector.broadcast %635 : vector<1x64xf32> to vector<16x64xf32>
    %637 = arith.addf %634, %636 : vector<16x64xf32>
    %cst_226 = arith.constant 0.000000e+00 : f32
    %638 = vector.broadcast %cst_226 : f32 to vector<16x64xf32>
    %639 = arith.maximumf %637, %638 : vector<16x64xf32>
    %c3_227 = arith.constant 3 : index
    %c0_228 = arith.constant 0 : index
    %c0_229 = arith.constant 0 : index
    %640 = vector.load %arg9[%c3_227, %c0_228, %c0_229] : memref<4x64x32xf32, #tpu.memory_space<vmem>>, vector<1x64x32xf32>
    %641 = vector.shape_cast %640 : vector<1x64x32xf32> to vector<64x32xf32>
    %cst_230 = arith.constant dense<0.000000e+00> : vector<16x32xf32>
    %642 = tpu.matmul %639, %641, %cst_230 {dimension_numbers = #tpu.dot_dimension_numbers<[1], [0], [0], [1], [0, 0, 1, 1], [], []>} : vector<16x64xf32>, vector<64x32xf32>, vector<16x32xf32> -> vector<16x32xf32>
    %c19 = arith.constant 19 : index
    %c0_231 = arith.constant 0 : index
    %643 = vector.load %arg10[%c19, %c0_231] : memref<41x128xf32, #tpu.memory_space<vmem>>, vector<1x32xf32>
    %644 = vector.broadcast %643 : vector<1x32xf32> to vector<16x32xf32>
    %645 = arith.addf %642, %644 : vector<16x32xf32>
    %646 = arith.addf %631, %645 : vector<16x32xf32>
    %cst_232 = arith.constant dense<0.000000e+00> : vector<16xf32>
    %647 = vector.multi_reduction <add>, %646, %cst_232 [1] : vector<16x32xf32> to vector<16xf32>
    %648 = vector.shape_cast %647 : vector<16xf32> to vector<16x1xf32>
    %cst_233 = arith.constant 3.200000e+01 : f32
    %649 = vector.broadcast %cst_233 : f32 to vector<16x1xf32>
    %650 = arith.divf %648, %649 : vector<16x1xf32>
    %651 = vector.broadcast %650 : vector<16x1xf32> to vector<16x32xf32>
    %652 = arith.subf %646, %651 : vector<16x32xf32>
    %653 = arith.mulf %652, %652 : vector<16x32xf32>
    %cst_234 = arith.constant dense<0.000000e+00> : vector<16xf32>
    %654 = vector.multi_reduction <add>, %653, %cst_234 [1] : vector<16x32xf32> to vector<16xf32>
    %655 = vector.shape_cast %654 : vector<16xf32> to vector<16x1xf32>
    %cst_235 = arith.constant 3.200000e+01 : f32
    %656 = vector.broadcast %cst_235 : f32 to vector<16x1xf32>
    %657 = arith.divf %655, %656 : vector<16x1xf32>
    %658 = vector.broadcast %650 : vector<16x1xf32> to vector<16x32xf32>
    %659 = arith.subf %646, %658 : vector<16x32xf32>
    %cst_236 = arith.constant 9.99999974E-6 : f32
    %660 = vector.broadcast %cst_236 : f32 to vector<16x1xf32>
    %661 = arith.addf %657, %660 : vector<16x1xf32>
    %662 = math.rsqrt %661 : vector<16x1xf32>
    %663 = vector.broadcast %662 : vector<16x1xf32> to vector<16x32xf32>
    %664 = arith.mulf %659, %663 : vector<16x32xf32>
    %c29 = arith.constant 29 : index
    %c0_237 = arith.constant 0 : index
    %665 = vector.load %arg10[%c29, %c0_237] : memref<41x128xf32, #tpu.memory_space<vmem>>, vector<1x32xf32>
    %666 = vector.broadcast %665 : vector<1x32xf32> to vector<16x32xf32>
    %667 = arith.mulf %664, %666 : vector<16x32xf32>
    %c39 = arith.constant 39 : index
    %c0_238 = arith.constant 0 : index
    %668 = vector.load %arg10[%c39, %c0_238] : memref<41x128xf32, #tpu.memory_space<vmem>>, vector<1x32xf32>
    %669 = vector.broadcast %668 : vector<1x32xf32> to vector<16x32xf32>
    %670 = arith.addf %667, %669 : vector<16x32xf32>
    %c0_239 = arith.constant 0 : index
    %c0_240 = arith.constant 0 : index
    %671 = vector.load %arg11[%c0_239, %c0_240] : memref<32x128xf32, #tpu.memory_space<vmem>>, vector<32x128xf32>
    %cst_241 = arith.constant dense<0.000000e+00> : vector<16x128xf32>
    %672 = tpu.matmul %670, %671, %cst_241 {dimension_numbers = #tpu.dot_dimension_numbers<[1], [0], [0], [1], [0, 0, 1, 1], [], []>} : vector<16x32xf32>, vector<32x128xf32>, vector<16x128xf32> -> vector<16x128xf32>
    %c40 = arith.constant 40 : index
    %c0_242 = arith.constant 0 : index
    %673 = vector.load %arg10[%c40, %c0_242] : memref<41x128xf32, #tpu.memory_space<vmem>>, vector<1x128xf32>
    %674 = vector.broadcast %673 : vector<1x128xf32> to vector<16x128xf32>
    %675 = arith.addf %672, %674 : vector<16x128xf32>
    %c0_243 = arith.constant 0 : index
    %c0_244 = arith.constant 0 : index
    %676 = vector.load %arg12[%c0_243, %c0_244] : memref<16x128xf32, #tpu.memory_space<vmem>>, vector<16x128xf32>
    tpu.vector_store %arg12[%c0_243, %c0_244], %675 {strides = array<i32>} : memref<16x128xf32, #tpu.memory_space<vmem>>, vector<16x128xf32>,
    return
  }
  func.func @transform_0(%arg0: i32) -> (i32, i32) {
    %c0_i32 = arith.constant 0 : i32
    %c0_i32_0 = arith.constant 0 : i32
    %c0_i32_1 = arith.constant 0 : i32
    return %c0_i32, %c0_i32_0 : i32, i32
  }
  func.func @transform_1(%arg0: i32) -> (i32, i32) {
    %c0_i32 = arith.constant 0 : i32
    %c0_i32_0 = arith.constant 0 : i32
    %c0_i32_1 = arith.constant 0 : i32
    return %c0_i32, %c0_i32_0 : i32, i32
  }
  func.func @transform_2(%arg0: i32) -> (i32, i32) {
    %c0_i32 = arith.constant 0 : i32
    %c0_i32_0 = arith.constant 0 : i32
    %c0_i32_1 = arith.constant 0 : i32
    return %c0_i32, %c0_i32_0 : i32, i32
  }
  func.func @transform_3(%arg0: i32) -> (i32, i32) {
    %c0_i32 = arith.constant 0 : i32
    %c0_i32_0 = arith.constant 0 : i32
    %c0_i32_1 = arith.constant 0 : i32
    return %c0_i32, %c0_i32_0 : i32, i32
  }
  func.func @transform_4(%arg0: i32) -> (i32, i32) {
    %c0_i32 = arith.constant 0 : i32
    %c0_i32_0 = arith.constant 0 : i32
    %c0_i32_1 = arith.constant 0 : i32
    return %c0_i32, %c0_i32_0 : i32, i32
  }
  func.func @transform_5(%arg0: i32) -> (i32, i32, i32) {
    %c0_i32 = arith.constant 0 : i32
    %c0_i32_0 = arith.constant 0 : i32
    %c0_i32_1 = arith.constant 0 : i32
    %c0_i32_2 = arith.constant 0 : i32
    return %c0_i32, %c0_i32_0, %c0_i32_1 : i32, i32, i32
  }
  func.func @transform_6(%arg0: i32) -> (i32, i32, i32) {
    %c0_i32 = arith.constant 0 : i32
    %c0_i32_0 = arith.constant 0 : i32
    %c0_i32_1 = arith.constant 0 : i32
    %c0_i32_2 = arith.constant 0 : i32
    return %c0_i32, %c0_i32_0, %c0_i32_1 : i32, i32, i32
  }
  func.func @transform_7(%arg0: i32) -> (i32, i32, i32) {
    %c0_i32 = arith.constant 0 : i32
    %c0_i32_0 = arith.constant 0 : i32
    %c0_i32_1 = arith.constant 0 : i32
    %c0_i32_2 = arith.constant 0 : i32
    return %c0_i32, %c0_i32_0, %c0_i32_1 : i32, i32, i32
  }
  func.func @transform_8(%arg0: i32) -> (i32, i32, i32) {
    %c0_i32 = arith.constant 0 : i32
    %c0_i32_0 = arith.constant 0 : i32
    %c0_i32_1 = arith.constant 0 : i32
    %c0_i32_2 = arith.constant 0 : i32
    return %c0_i32, %c0_i32_0, %c0_i32_1 : i32, i32, i32
  }
  func.func @transform_9(%arg0: i32) -> (i32, i32) {
    %c0_i32 = arith.constant 0 : i32
    %c0_i32_0 = arith.constant 0 : i32
    %c0_i32_1 = arith.constant 0 : i32
    return %c0_i32, %c0_i32_0 : i32, i32
  }
  func.func @transform_10(%arg0: i32) -> (i32, i32) {
    %c0_i32 = arith.constant 0 : i32
    %c0_i32_0 = arith.constant 0 : i32
    %c0_i32_1 = arith.constant 0 : i32
    return %c0_i32, %c0_i32_0 : i32, i32
  }
  func.func @transform_11(%arg0: i32) -> (i32, i32) {
    %c0_i32 = arith.constant 0 : i32
    %c0_i32_0 = arith.constant 0 : i32
    %c0_i32_1 = arith.constant 0 : i32
    return %c0_i32, %c0_i32_0 : i32, i32
  }
}

</mosaic_0001>

<llo_original>
// kernel: tpu_custom_call.1
$region0: #{tpu_custom_call.1}
  #allocation0 [shape = 'u32[]', space=smem, size = 0x4, offset = 0x4, fixed_abs, tag = 'smem constant byte address 0x4 - core index']
  #allocation1 [shape = 'u32[72,128]{1,0:T(1,128)}', space=vmem, size = 0x9000, scoped, tag = 'internal scratch']
  %s0 = inlined_call_operand.hbm [shape: f32[16,32], index: 0, kind: input, shape index: {}]
  %s1 = inlined_call_operand.hbm [shape: f32[16,32], index: 1, kind: input, shape index: {}]
  %s2 = inlined_call_operand.hbm [shape: f32[64,64], index: 2, kind: input, shape index: {}]
  %s3 = inlined_call_operand.hbm [shape: f32[64,64], index: 3, kind: input, shape index: {}]
  %s4 = inlined_call_operand.hbm [shape: f32[64,64], index: 4, kind: input, shape index: {}]
  %s5 = inlined_call_operand.vmem [shape: f32[6,32,96], index: 5, kind: input, shape index: {}]
  %s6 = inlined_call_operand.vmem [shape: f32[6,32,32], index: 6, kind: input, shape index: {}]
  %s7 = inlined_call_operand.hbm [shape: f32[4,32,64], index: 7, kind: input, shape index: {}]
  %s8 = inlined_call_operand.vmem [shape: f32[4,64,32], index: 8, kind: input, shape index: {}]
  %s9 = inlined_call_operand.hbm [shape: f32[41,128], index: 9, kind: input, shape index: {}]
  %s10 = inlined_call_operand.hbm [shape: f32[32,128], index: 10, kind: input, shape index: {}]
  %s11 = inlined_call_operand.hbm [shape: f32[16,128], index: 11, kind: output, shape index: {}]
  %s12 = sld [smem:[#allocation0]]
  $region86: #{tpu_custom_call.1} parent=0
    _
  %s14 = ssub.s32 1, %s12
  %s15 = scalar_select 0, %s14, %s12
  $region1: #{tpu_custom_call.1} parent=0
    #allocation2 [shape = 'u8[8192]{0}', space=vmem, size = 0x2000, scoped, tag = 'input window, operand 0, single buffered']
    #allocation3 [shape = 's32[1]{0}', space=sflag, size = 0x4, scoped, tag = 'scoped memory for tpu_custom_call.1']
    #allocation4 [shape = 's32[1]{0}', space=sflag, size = 0x4, scoped, tag = 'scoped memory for tpu_custom_call.1']
    #allocation5 [shape = 'u8[8192]{0}', space=vmem, size = 0x2000, scoped, tag = 'input window, operand 1, single buffered']
    #allocation6 [shape = 's32[1]{0}', space=sflag, size = 0x4, scoped, tag = 'scoped memory for tpu_custom_call.1']
    #allocation7 [shape = 'u8[32768]{0}', space=vmem, size = 0x8000, scoped, tag = 'input window, operand 2, single buffered']
    #allocation8 [shape = 'u8[32768]{0}', space=vmem, size = 0x8000, scoped, tag = 'input window, operand 3, single buffered']
    #allocation9 [shape = 's32[1]{0}', space=sflag, size = 0x4, scoped, tag = 'scoped memory for tpu_custom_call.1']
    #allocation10 [shape = 'u8[32768]{0}', space=vmem, size = 0x8000, scoped, tag = 'input window, operand 4, single buffered']
    #allocation11 [shape = 'u8[65536]{0}', space=vmem, size = 0x10000, scoped, tag = 'input window, operand 7, single buffered']
    #allocation12 [shape = 's32[1]{0}', space=sflag, size = 0x4, scoped, tag = 'scoped memory for tpu_custom_call.1']
    #allocation13 [shape = 'u8[24576]{0}', space=vmem, size = 0x6000, scoped, tag = 'input window, operand 9, single buffered']
    #allocation14 [shape = 'u8[16384]{0}', space=vmem, size = 0x4000, scoped, tag = 'input window, operand 10, single buffered']
    #allocation15 [shape = 's32[1]{0}', space=sflag, size = 0x4, scoped, tag = 'scoped memory for tpu_custom_call.1']
    #allocation16 [shape = 'u8[8192]{0}', space=vmem, size = 0x2000, scoped, tag = 'output window, operand 0, single buffered']
    %16 = vsyncpa [#allocation3], 0
    %17 = vsyncpa [#allocation6], 0
    %18 = vsyncpa [#allocation9], 0
    %19 = vsyncpa [#allocation12], 0
    %20 = vsyncpa [#allocation15], 0
    %21 = vsyncpa [#allocation4], 0
    // Predicated region
    $region2: #{tpu_custom_call.1} parent=1 // pred_check
      _
    $region3: #{tpu_custom_call.1} parent=1 // pred_check_branch
      %23 = sbr.rel (0) target = $region5
    $region4: #{tpu_custom_call.1} parent=1 // pred_region
      %25 = vsyncadd [#allocation3], 0
      %s26 = sshll.u32 %s0, 4
      %s27 = int_to_ptr.hbm [resolvable:$true] %s26
      %s28 = sshll.u32 [#allocation2], 4
      %s29 = int_to_ptr.vmem [resolvable:$true] %s28
      %34 = dma.hbm_to_vmem [thread:$0]  %s27, 256, %s29, [#allocation3], 128, 128, 8
    $region5: #{tpu_custom_call.1} parent=1 // pred_fallthru
      _
    // Predicated region
    $region6: #{tpu_custom_call.1} parent=1 // pred_check
      _
    $region7: #{tpu_custom_call.1} parent=1 // pred_check_branch
      %36 = sbr.rel (0) target = $region9
    $region8: #{tpu_custom_call.1} parent=1 // pred_region
      %38 = vsyncadd [#allocation6], 0
      %s39 = sshll.u32 %s1, 4
      %s40 = int_to_ptr.hbm [resolvable:$true] %s39
      %s41 = sshll.u32 [#allocation5], 4
      %s42 = int_to_ptr.vmem [resolvable:$true] %s41
      %47 = dma.hbm_to_vmem [thread:$0]  %s40, 256, %s42, [#allocation6], 128, 128, 8
    $region9: #{tpu_custom_call.1} parent=1 // pred_fallthru
      _
    // Predicated region
    $region10: #{tpu_custom_call.1} parent=1 // pred_check
      _
    $region11: #{tpu_custom_call.1} parent=1 // pred_check_branch
      %49 = sbr.rel (0) target = $region13
    $region12: #{tpu_custom_call.1} parent=1 // pred_region
      %51 = vsyncadd [#allocation6], 0
      %s52 = sshll.u32 %s2, 4
      %s53 = int_to_ptr.hbm [resolvable:$true] %s52
      %s54 = sshll.u32 [#allocation7], 4
      %s55 = int_to_ptr.vmem [resolvable:$true] %s54
      %60 = dma.hbm_to_vmem [thread:$0]  %s53, 1024, %s55, [#allocation6], 128, 128, 8
    $region13: #{tpu_custom_call.1} parent=1 // pred_fallthru
      _
    // Predicated region
    $region14: #{tpu_custom_call.1} parent=1 // pred_check
      _
    $region15: #{tpu_custom_call.1} parent=1 // pred_check_branch
      %62 = sbr.rel (0) target = $region17
    $region16: #{tpu_custom_call.1} parent=1 // pred_region
      %64 = vsyncadd [#allocation9], 0
      %s65 = sshll.u32 %s3, 4
      %s66 = int_to_ptr.hbm [resolvable:$true] %s65
      %s67 = sshll.u32 [#allocation8], 4
      %s68 = int_to_ptr.vmem [resolvable:$true] %s67
      %73 = dma.hbm_to_vmem [thread:$0]  %s66, 1024, %s68, [#allocation9], 128, 128, 8
    $region17: #{tpu_custom_call.1} parent=1 // pred_fallthru
      _
    // Predicated region
    $region18: #{tpu_custom_call.1} parent=1 // pred_check
      _
    $region19: #{tpu_custom_call.1} parent=1 // pred_check_branch
      %75 = sbr.rel (0) target = $region21
    $region20: #{tpu_custom_call.1} parent=1 // pred_region
      %77 = vsyncadd [#allocation9], 0
      %s78 = sshll.u32 %s4, 4
      %s79 = int_to_ptr.hbm [resolvable:$true] %s78
      %s80 = sshll.u32 [#allocation10], 4
      %s81 = int_to_ptr.vmem [resolvable:$true] %s80
      %86 = dma.hbm_to_vmem [thread:$0]  %s79, 1024, %s81, [#allocation9], 128, 128, 8
    $region21: #{tpu_custom_call.1} parent=1 // pred_fallthru
      _
    // Predicated region
    $region22: #{tpu_custom_call.1} parent=1 // pred_check
      _
    $region23: #{tpu_custom_call.1} parent=1 // pred_check_branch
      %88 = sbr.rel (0) target = $region25
    $region24: #{tpu_custom_call.1} parent=1 // pred_region
      _
    $region25: #{tpu_custom_call.1} parent=1 // pred_fallthru
      _
    // Predicated region
    $region26: #{tpu_custom_call.1} parent=1 // pred_check
      _
    $region27: #{tpu_custom_call.1} parent=1 // pred_check_branch
      %90 = sbr.rel (0) target = $region29
    $region28: #{tpu_custom_call.1} parent=1 // pred_region
      _
    $region29: #{tpu_custom_call.1} parent=1 // pred_fallthru
      _
    // Predicated region
    $region30: #{tpu_custom_call.1} parent=1 // pred_check
      _
    $region31: #{tpu_custom_call.1} parent=1 // pred_check_branch
      %92 = sbr.rel (0) target = $region33
    $region32: #{tpu_custom_call.1} parent=1 // pred_region
      %94 = vsyncadd [#allocation12], 0
      %s95 = sshll.u32 %s7, 4
      %s96 = int_to_ptr.hbm [resolvable:$true] %s95
      %s97 = sshll.u32 [#allocation11], 4
      %s98 = int_to_ptr.vmem [resolvable:$true] %s97
      %103 = dma.hbm_to_vmem [thread:$0]  %s96, 2048, %s98, [#allocation12], 128, 128, 8
    $region33: #{tpu_custom_call.1} parent=1 // pred_fallthru
      _
    // Predicated region
    $region34: #{tpu_custom_call.1} parent=1 // pred_check
      _
    $region35: #{tpu_custom_call.1} parent=1 // pred_check_branch
      %105 = sbr.rel (0) target = $region37
    $region36: #{tpu_custom_call.1} parent=1 // pred_region
      _
    $region37: #{tpu_custom_call.1} parent=1 // pred_fallthru
      _
    // Predicated region
    $region38: #{tpu_custom_call.1} parent=1 // pred_check
      _
    $region39: #{tpu_custom_call.1} parent=1 // pred_check_branch
      %107 = sbr.rel (0) target = $region41
    $region40: #{tpu_custom_call.1} parent=1 // pred_region
      %109 = vsyncadd [#allocation12], 0
      %s110 = sshll.u32 %s9, 4
      %s111 = int_to_ptr.hbm [resolvable:$true] %s110
      %s112 = sshll.u32 [#allocation13], 4
      %s113 = int_to_ptr.vmem [resolvable:$true] %s112
      %118 = dma.hbm_to_vmem [thread:$0]  %s111, 768, %s113, [#allocation12], 128, 128, 8
    $region41: #{tpu_custom_call.1} parent=1 // pred_fallthru
      _
    // Predicated region
    $region42: #{tpu_custom_call.1} parent=1 // pred_check
      _
    $region43: #{tpu_custom_call.1} parent=1 // pred_check_branch
      %120 = sbr.rel (0) target = $region45
    $region44: #{tpu_custom_call.1} parent=1 // pred_region
      %122 = vsyncadd [#allocation15], 0
      %s123 = sshll.u32 %s10, 4
      %s124 = int_to_ptr.hbm [resolvable:$true] %s123
      %s125 = sshll.u32 [#allocation14], 4
      %s126 = int_to_ptr.vmem [resolvable:$true] %s125
      %131 = dma.hbm_to_vmem [thread:$0]  %s124, 512, %s126, [#allocation15], 128, 128, 8
    $region45: #{tpu_custom_call.1} parent=1 // pred_fallthru
      _
    // Predicated region
    $region46: #{tpu_custom_call.1} parent=1 // pred_check
      _
    $region47: #{tpu_custom_call.1} parent=1 // pred_check_branch
      %133 = sbr.rel (0) target = $region49
    $region48: #{tpu_custom_call.1} parent=1 // pred_region
      %135 = dma.done [#allocation3], 256
    $region49: #{tpu_custom_call.1} parent=1 // pred_fallthru
      _
    // Predicated region
    $region50: #{tpu_custom_call.1} parent=1 // pred_check
      _
    $region51: #{tpu_custom_call.1} parent=1 // pred_check_branch
      %137 = sbr.rel (0) target = $region53
    $region52: #{tpu_custom_call.1} parent=1 // pred_region
      %139 = dma.done [#allocation6], 256
    $region53: #{tpu_custom_call.1} parent=1 // pred_fallthru
      _
    // Predicated region
    $region54: #{tpu_custom_call.1} parent=1 // pred_check
      _
    $region55: #{tpu_custom_call.1} parent=1 // pred_check_branch
      %141 = sbr.rel (0) target = $region57
    $region56: #{tpu_custom_call.1} parent=1 // pred_region
      %143 = dma.done [#allocation6], 1024
    $region57: #{tpu_custom_call.1} parent=1 // pred_fallthru
      _
    // Predicated region
    $region58: #{tpu_custom_call.1} parent=1 // pred_check
      _
    $region59: #{tpu_custom_call.1} parent=1 // pred_check_branch
      %145 = sbr.rel (0) target = $region61
    $region60: #{tpu_custom_call.1} parent=1 // pred_region
      %147 = dma.done [#allocation9], 1024
    $region61: #{tpu_custom_call.1} parent=1 // pred_fallthru
      _
    // Predicated region
    $region62: #{tpu_custom_call.1} parent=1 // pred_check
      _
    $region63: #{tpu_custom_call.1} parent=1 // pred_check_branch
      %149 = sbr.rel (0) target = $region65
    $region64: #{tpu_custom_call.1} parent=1 // pred_region
      %151 = dma.done [#allocation9], 1024
    $region65: #{tpu_custom_call.1} parent=1 // pred_fallthru
      _
    // Predicated region
    $region66: #{tpu_custom_call.1} parent=1 // pred_check
      _
    $region67: #{tpu_custom_call.1} parent=1 // pred_check_branch
      %153 = sbr.rel (0) target = $region69
    $region68: #{tpu_custom_call.1} parent=1 // pred_region
      %155 = dma.done [#allocation12], 2048
    $region69: #{tpu_custom_call.1} parent=1 // pred_fallthru
      _
    // Predicated region
    $region70: #{tpu_custom_call.1} parent=1 // pred_check
      _
    $region71: #{tpu_custom_call.1} parent=1 // pred_check_branch
      %157 = sbr.rel (0) target = $region73
    $region72: #{tpu_custom_call.1} parent=1 // pred_region
      %159 = dma.done [#allocation12], 768
    $region73: #{tpu_custom_call.1} parent=1 // pred_fallthru
      _
    // Predicated region
    $region74: #{tpu_custom_call.1} parent=1 // pred_check
      _
    $region75: #{tpu_custom_call.1} parent=1 // pred_check_branch
      %161 = sbr.rel (0) target = $region77
    $region76: #{tpu_custom_call.1} parent=1 // pred_region
      %163 = dma.done [#allocation15], 512
    $region77: #{tpu_custom_call.1} parent=1 // pred_fallthru
      _
    %v164 = vld [vmem:[#allocation7] sm:$0xff]
    %v165 = vld [vmem:[#allocation7 + $0x8] sm:$0xff]
    %v166 = vld [vmem:[#allocation7 + $0x10] sm:$0xff]
    %v167 = vld [vmem:[#allocation7 + $0x18] sm:$0xff]
    %v168 = vld [vmem:[#allocation7 + $0x20] sm:$0xff]
    %v169 = vld [vmem:[#allocation7 + $0x28] sm:$0xff]
    %v170 = vld [vmem:[#allocation7 + $0x30] sm:$0xff]
    %v171 = vld [vmem:[#allocation7 + $0x38] sm:$0xff]
    %v172 = vld [vmem:[#allocation8] sm:$0xff]
    %v173 = vld [vmem:[#allocation8 + $0x8] sm:$0xff]
    %v174 = vld [vmem:[#allocation8 + $0x10] sm:$0xff]
    %v175 = vld [vmem:[#allocation8 + $0x18] sm:$0xff]
    %v176 = vld [vmem:[#allocation8 + $0x20] sm:$0xff]
    %v177 = vld [vmem:[#allocation8 + $0x28] sm:$0xff]
    %v178 = vld [vmem:[#allocation8 + $0x30] sm:$0xff]
    %v179 = vld [vmem:[#allocation8 + $0x38] sm:$0xff]
    %v180 = vld [vmem:[#allocation10] sm:$0xff]
    %v181 = vld [vmem:[#allocation10 + $0x8] sm:$0xff]
    %v182 = vld [vmem:[#allocation10 + $0x10] sm:$0xff]
    %v183 = vld [vmem:[#allocation10 + $0x18] sm:$0xff]
    %v184 = vld [vmem:[#allocation10 + $0x20] sm:$0xff]
    %v185 = vld [vmem:[#allocation10 + $0x28] sm:$0xff]
    %v186 = vld [vmem:[#allocation10 + $0x30] sm:$0xff]
    %v187 = vld [vmem:[#allocation10 + $0x38] sm:$0xff]
    %v188 = vld [vmem:[#allocation2] sm:$0xff]
    %v189 = vld [vmem:[#allocation2 + $0x8] sm:$0xff]
    %v190 = vld [vmem:[%s5] sm:$0xff]
    %v191 = vld [vmem:[%s5 + $0x8] sm:$0xff]
    %v192 = vld [vmem:[%s5 + $0x10] sm:$0xff]
    %v193 = vld [vmem:[%s5 + $0x18] sm:$0xff]
    %v194 = vld [vmem:[#allocation13] sm:$0x1]
    %v195 = vperm.slane %v194, 0
    %vm196 = vcmask 261120
    %v198 = vsel %vm196, %v188, 0
    %v201 = vsel %vm196, %v189, 0
    %203 = vmatpush.msra.mxu0 0.0
    %204 = vmatpush.msra.mxu0 0.0
    %205 = vmatpush.msra.mxu0 0.0
    %206 = vmatpush.msra.mxu0 0.0
    %207 = vmatpush.msra.mxu0 0.0
    %208 = vmatpush.msra.mxu0 0.0
    %209 = vmatpush.msra.mxu0 0.0
    %210 = vmatpush.msra.mxu0 0.0
    %211 = vmatpush.msra.mxu0 0.0
    %212 = vmatpush.msra.mxu0 0.0
    %213 = vmatpush.msra.mxu0 0.0
    %214 = vmatpush.msra.mxu0 0.0
    %215 = vmatpush.msra.mxu0 %v193
    %216 = vmatpush.msra.mxu0 %v192
    %217 = vmatpush.msra.mxu0 %v191
    %218 = vmatpush.msra.mxu0 %v190
    %219 = vmatmul.f32.gmra.mxu0 %v198
    %v220 = vpop.f32.mrf.mxu0
    %v221 = vadd.f32 %v195, %v220
    %222 = vmatmul.f32.gmra.mxu0 %v201
    %v223 = vpop.f32.mrf.mxu0
    %v224 = vadd.f32 %v195, %v223
    %225 = vdwg.mxu0
    %228 = vrot.lane.b32.xlu0 %v221, 120
    %v229 = vpop.permute.xlu0 %228
    %230 = vrot.lane.b32.xlu0 %v224, 120
    %v231 = vpop.permute.xlu0 %230
    %232 = vrot.lane.b32.xlu0 %v221, 112
    %v233 = vpop.permute.xlu0 %232
    %234 = vrot.lane.b32.xlu0 %v224, 112
    %v235 = vpop.permute.xlu0 %234
    %236 = vrot.lane.b32.xlu0 %v221, 104
    %v237 = vpop.permute.xlu0 %236
    %238 = vrot.lane.b32.xlu0 %v224, 104
    %v239 = vpop.permute.xlu0 %238
    %240 = vrot.lane.b32.xlu0 %v221, 96
    %v241 = vpop.permute.xlu0 %240
    %242 = vrot.lane.b32.xlu0 %v224, 96
    %v243 = vpop.permute.xlu0 %242
    %244 = vrot.lane.b32.xlu0 %v229, 96
    %v245 = vpop.permute.xlu0 %244
    %246 = vrot.lane.b32.xlu0 %v231, 96
    %v247 = vpop.permute.xlu0 %246
    %248 = vrot.lane.b32.xlu0 %v233, 96
    %v249 = vpop.permute.xlu0 %248
    %250 = vrot.lane.b32.xlu0 %v235, 96
    %v251 = vpop.permute.xlu0 %250
    %252 = vrot.lane.b32.xlu0 %v237, 96
    %v253 = vpop.permute.xlu0 %252
    %254 = vrot.lane.b32.xlu0 %v239, 96
    %v255 = vpop.permute.xlu0 %254
    %vm256 = vcmask 64512
    %v257 = vsel %vm256, %v221, 0
    %v259 = vsel %vm256, %v224, 0
    %v261 = vsel %vm256, %v229, 0
    %v263 = vsel %vm256, %v231, 0
    %v265 = vsel %vm256, %v233, 0
    %v267 = vsel %vm256, %v235, 0
    %v269 = vsel %vm256, %v237, 0
    %v271 = vsel %vm256, %v239, 0
    %v273 = vsel %vm256, %v241, 0
    %v275 = vsel %vm256, %v243, 0
    %v277 = vsel %vm256, %v245, 0
    %v279 = vsel %vm256, %v247, 0
    %v281 = vsel %vm256, %v249, 0
    %v283 = vsel %vm256, %v251, 0
    %v285 = vsel %vm256, %v253, 0
    %v287 = vsel %vm256, %v255, 0
    %289 = vmatpush.xpose.msra.mxu0 0.0
    %290 = vmatpush.xpose.msra.mxu0 0.0
    %291 = vmatpush.xpose.msra.mxu0 0.0
    %292 = vmatpush.xpose.msra.mxu0 0.0
    %293 = vmatpush.xpose.msra.mxu0 0.0
    %294 = vmatpush.xpose.msra.mxu0 0.0
    %295 = vmatpush.xpose.msra.mxu0 0.0
    %296 = vmatpush.xpose.msra.mxu0 0.0
    %297 = vmatpush.xpose.msra.mxu0 %v287
    %298 = vmatpush.xpose.msra.mxu0 %v285
    %299 = vmatpush.xpose.msra.mxu0 %v283
    %300 = vmatpush.xpose.msra.mxu0 %v281
    %301 = vmatpush.xpose.msra.mxu0 %v279
    %302 = vmatpush.xpose.msra.mxu0 %v277
    %303 = vmatpush.xpose.msra.mxu0 %v275
    %304 = vmatpush.xpose.msra.mxu0 %v273
    %305 = vmatmul.f32.gmra.mxu0 %v257
    %v306 = vpop.f32.mrf.mxu0
    %v307 = vadd.f32 0.0, %v306
    %308 = vmatmul.f32.gmra.mxu0 %v259
    %v309 = vpop.f32.mrf.mxu0
    %v310 = vadd.f32 0.0, %v309
    %311 = vmatmul.f32.gmra.mxu0 %v261
    %v312 = vpop.f32.mrf.mxu0
    %v313 = vadd.f32 0.0, %v312
    %314 = vmatmul.f32.gmra.mxu0 %v263
    %v315 = vpop.f32.mrf.mxu0
    %v316 = vadd.f32 0.0, %v315
    %317 = vmatmul.f32.gmra.mxu0 %v265
    %v318 = vpop.f32.mrf.mxu0
    %v319 = vadd.f32 0.0, %v318
    %320 = vmatmul.f32.gmra.mxu0 %v267
    %v321 = vpop.f32.mrf.mxu0
    %v322 = vadd.f32 0.0, %v321
    %323 = vmatmul.f32.gmra.mxu0 %v269
    %v324 = vpop.f32.mrf.mxu0
    %v325 = vadd.f32 0.0, %v324
    %326 = vmatmul.f32.gmra.mxu0 %v271
    %v327 = vpop.f32.mrf.mxu0
    %v328 = vadd.f32 0.0, %v327
    %329 = vdwg.mxu0
    %v330 = vmul.f32 %v307, 0.17677669
    %v331 = vmul.f32 %v310, 0.17677669
    %v332 = vmul.f32 %v313, 0.17677669
    %v333 = vmul.f32 %v316, 0.17677669
    %v334 = vmul.f32 %v319, 0.17677669
    %v335 = vmul.f32 %v322, 0.17677669
    %v336 = vmul.f32 %v325, 0.17677669
    %v337 = vmul.f32 %v328, 0.17677669
    %vm338 = vcmp.gt.f32.partialorder %v164, 0.0
    %vm339 = vcmp.gt.f32.partialorder %v165, 0.0
    %vm340 = vcmp.gt.f32.partialorder %v166, 0.0
    %vm341 = vcmp.gt.f32.partialorder %v167, 0.0
    %vm342 = vcmp.gt.f32.partialorder %v168, 0.0
    %vm343 = vcmp.gt.f32.partialorder %v169, 0.0
    %vm344 = vcmp.gt.f32.partialorder %v170, 0.0
    %vm345 = vcmp.gt.f32.partialorder %v171, 0.0
    %v346 = vsel %vm338, %v330, %v164
    %v347 = vsel %vm339, %v331, %v165
    %v348 = vsel %vm340, %v332, %v166
    %v349 = vsel %vm341, %v333, %v167
    %v350 = vsel %vm342, %v334, %v168
    %v351 = vsel %vm343, %v335, %v169
    %v352 = vsel %vm344, %v336, %v170
    %v353 = vsel %vm345, %v337, %v171
    %vm354 = vcmask 523264
    %v355 = vsel %vm354, %v346, -inf
    %356 = vmax.xlane.f32.xlu0 %v355
    %v357 = vpop.xlane.xlu0 %356
    %v358 = vsel %vm354, %v347, -inf
    %359 = vmax.xlane.f32.xlu0 %v358
    %v360 = vpop.xlane.xlu0 %359
    %v361 = vsel %vm354, %v348, -inf
    %362 = vmax.xlane.f32.xlu0 %v361
    %v363 = vpop.xlane.xlu0 %362
    %v364 = vsel %vm354, %v349, -inf
    %365 = vmax.xlane.f32.xlu0 %v364
    %v366 = vpop.xlane.xlu0 %365
    %v367 = vsel %vm354, %v350, -inf
    %368 = vmax.xlane.f32.xlu0 %v367
    %v369 = vpop.xlane.xlu0 %368
    %v370 = vsel %vm354, %v351, -inf
    %371 = vmax.xlane.f32.xlu0 %v370
    %v372 = vpop.xlane.xlu0 %371
    %v373 = vsel %vm354, %v352, -inf
    %374 = vmax.xlane.f32.xlu0 %v373
    %v375 = vpop.xlane.xlu0 %374
    %v376 = vsel %vm354, %v353, -inf
    %377 = vmax.xlane.f32.xlu0 %v376
    %v378 = vpop.xlane.xlu0 %377
    %v379 = vsub.f32 %v346, %v357
    %v380 = vsub.f32 %v347, %v360
    %v381 = vsub.f32 %v348, %v363
    %v382 = vsub.f32 %v349, %v366
    %v383 = vsub.f32 %v350, %v369
    %v384 = vsub.f32 %v351, %v372
    %v385 = vsub.f32 %v352, %v375
    %v386 = vsub.f32 %v353, %v378
    %v387 = vmul.f32 %v379, 1.442695
    %v388 = vpow.pop %v387
    %v389 = vmul.f32 %v380, 1.442695
    %v390 = vpow.pop %v389
    %v391 = vmul.f32 %v381, 1.442695
    %v392 = vpow.pop %v391
    %v393 = vmul.f32 %v382, 1.442695
    %v394 = vpow.pop %v393
    %v395 = vmul.f32 %v383, 1.442695
    %v396 = vpow.pop %v395
    %v397 = vmul.f32 %v384, 1.442695
    %v398 = vpow.pop %v397
    %v399 = vmul.f32 %v385, 1.442695
    %v400 = vpow.pop %v399
    %v401 = vmul.f32 %v386, 1.442695
    %v402 = vpow.pop %v401
    %v403 = vsel %vm354, %v388, 0.0
    %404 = vadd.xlane.f32.xlu0 %v403
    %v405 = vpop.xlane.xlu0 %404
    %v406 = vsel %vm354, %v390, 0.0
    %407 = vadd.xlane.f32.xlu0 %v406
    %v408 = vpop.xlane.xlu0 %407
    %v409 = vsel %vm354, %v392, 0.0
    %410 = vadd.xlane.f32.xlu0 %v409
    %v411 = vpop.xlane.xlu0 %410
    %v412 = vsel %vm354, %v394, 0.0
    %413 = vadd.xlane.f32.xlu0 %v412
    %v414 = vpop.xlane.xlu0 %413
    %v415 = vsel %vm354, %v396, 0.0
    %416 = vadd.xlane.f32.xlu0 %v415
    %v417 = vpop.xlane.xlu0 %416
    %v418 = vsel %vm354, %v398, 0.0
    %419 = vadd.xlane.f32.xlu0 %v418
    %v420 = vpop.xlane.xlu0 %419
    %v421 = vsel %vm354, %v400, 0.0
    %422 = vadd.xlane.f32.xlu0 %v421
    %v423 = vpop.xlane.xlu0 %422
    %v424 = vsel %vm354, %v402, 0.0
    %425 = vadd.xlane.f32.xlu0 %v424
    %v426 = vpop.xlane.xlu0 %425
    %v427 = vrcp.pop %v405
    %v428 = vmul.f32 %v405, %v427
    %v429 = vsub.f32 1.0, %v428
    %v430 = vmul.f32 %v427, %v429
    %v431 = vadd.f32 %v427, %v430
    %vm432 = vweird.f32 %v405
    %vm433 = vweird.f32 %v427
    %vm434 = vmor %vm432, %vm433
    %v435 = vsel %vm434, %v427, %v431
    %v436 = vand.u32 2147483647, %v405
    %vm437 = vcmp.eq.f32.partialorder %v436, 8.507059e+37
    %v438 = vand.u32 %v405, 2147483648
    %v439 = vor.u32 1.1754944e-38, %v438
    %v440 = vsel %vm437, %v439, %v435
    %v441 = vrcp.pop %v408
    %v442 = vmul.f32 %v408, %v441
    %v443 = vsub.f32 1.0, %v442
    %v444 = vmul.f32 %v441, %v443
    %v445 = vadd.f32 %v441, %v444
    %vm446 = vweird.f32 %v408
    %vm447 = vweird.f32 %v441
    %vm448 = vmor %vm446, %vm447
    %v449 = vsel %vm448, %v441, %v445
    %v450 = vand.u32 2147483647, %v408
    %vm451 = vcmp.eq.f32.partialorder %v450, 8.507059e+37
    %v452 = vand.u32 %v408, 2147483648
    %v453 = vor.u32 1.1754944e-38, %v452
    %v454 = vsel %vm451, %v453, %v449
    %v455 = vrcp.pop %v411
    %v456 = vmul.f32 %v411, %v455
    %v457 = vsub.f32 1.0, %v456
    %v458 = vmul.f32 %v455, %v457
    %v459 = vadd.f32 %v455, %v458
    %vm460 = vweird.f32 %v411
    %vm461 = vweird.f32 %v455
    %vm462 = vmor %vm460, %vm461
    %v463 = vsel %vm462, %v455, %v459
    %v464 = vand.u32 2147483647, %v411
    %vm465 = vcmp.eq.f32.partialorder %v464, 8.507059e+37
    %v466 = vand.u32 %v411, 2147483648
    %v467 = vor.u32 1.1754944e-38, %v466
    %v468 = vsel %vm465, %v467, %v463
    %v469 = vrcp.pop %v414
    %v470 = vmul.f32 %v414, %v469
    %v471 = vsub.f32 1.0, %v470
    %v472 = vmul.f32 %v469, %v471
    %v473 = vadd.f32 %v469, %v472
    %vm474 = vweird.f32 %v414
    %vm475 = vweird.f32 %v469
    %vm476 = vmor %vm474, %vm475
    %v477 = vsel %vm476, %v469, %v473
    %v478 = vand.u32 2147483647, %v414
    %vm479 = vcmp.eq.f32.partialorder %v478, 8.507059e+37
    %v480 = vand.u32 %v414, 2147483648
    %v481 = vor.u32 1.1754944e-38, %v480
    %v482 = vsel %vm479, %v481, %v477
    %v483 = vrcp.pop %v417
    %v484 = vmul.f32 %v417, %v483
    %v485 = vsub.f32 1.0, %v484
    %v486 = vmul.f32 %v483, %v485
    %v487 = vadd.f32 %v483, %v486
    %vm488 = vweird.f32 %v417
    %vm489 = vweird.f32 %v483
    %vm490 = vmor %vm488, %vm489
    %v491 = vsel %vm490, %v483, %v487
    %v492 = vand.u32 2147483647, %v417
    %vm493 = vcmp.eq.f32.partialorder %v492, 8.507059e+37
    %v494 = vand.u32 %v417, 2147483648
    %v495 = vor.u32 1.1754944e-38, %v494
    %v496 = vsel %vm493, %v495, %v491
    %v497 = vrcp.pop %v420
    %v498 = vmul.f32 %v420, %v497
    %v499 = vsub.f32 1.0, %v498
    %v500 = vmul.f32 %v497, %v499
    %v501 = vadd.f32 %v497, %v500
    %vm502 = vweird.f32 %v420
    %vm503 = vweird.f32 %v497
    %vm504 = vmor %vm502, %vm503
    %v505 = vsel %vm504, %v497, %v501
    %v506 = vand.u32 2147483647, %v420
    %vm507 = vcmp.eq.f32.partialorder %v506, 8.507059e+37
    %v508 = vand.u32 %v420, 2147483648
    %v509 = vor.u32 1.1754944e-38, %v508
    %v510 = vsel %vm507, %v509, %v505
    %v511 = vrcp.pop %v423
    %v512 = vmul.f32 %v423, %v511
    %v513 = vsub.f32 1.0, %v512
    %v514 = vmul.f32 %v511, %v513
    %v515 = vadd.f32 %v511, %v514
    %vm516 = vweird.f32 %v423
    %vm517 = vweird.f32 %v511
    %vm518 = vmor %vm516, %vm517
    %v519 = vsel %vm518, %v511, %v515
    %v520 = vand.u32 2147483647, %v423
    %vm521 = vcmp.eq.f32.partialorder %v520, 8.507059e+37
    %v522 = vand.u32 %v423, 2147483648
    %v523 = vor.u32 1.1754944e-38, %v522
    %v524 = vsel %vm521, %v523, %v519
    %v525 = vrcp.pop %v426
    %v526 = vmul.f32 %v426, %v525
    %v527 = vsub.f32 1.0, %v526
    %v528 = vmul.f32 %v525, %v527
    %v529 = vadd.f32 %v525, %v528
    %vm530 = vweird.f32 %v426
    %vm531 = vweird.f32 %v525
    %vm532 = vmor %vm530, %vm531
    %v533 = vsel %vm532, %v525, %v529
    %v534 = vand.u32 2147483647, %v426
    %vm535 = vcmp.eq.f32.partialorder %v534, 8.507059e+37
    %v536 = vand.u32 %v426, 2147483648
    %v537 = vor.u32 1.1754944e-38, %v536
    %v538 = vsel %vm535, %v537, %v533
    %v539 = vmul.f32 %v388, %v440
    %v540 = vmul.f32 %v390, %v454
    %v541 = vmul.f32 %v392, %v468
    %v542 = vmul.f32 %v394, %v482
    %v543 = vmul.f32 %v396, %v496
    %v544 = vmul.f32 %v398, %v510
    %v545 = vmul.f32 %v400, %v524
    %v546 = vmul.f32 %v402, %v538
    %547 = vrot.lane.b32.xlu0 %v221, 64
    %v548 = vpop.permute.xlu0 %547
    %549 = vrot.lane.b32.xlu0 %v224, 64
    %v550 = vpop.permute.xlu0 %549
    %551 = vrot.lane.b32.xlu0 %v229, 64
    %v552 = vpop.permute.xlu0 %551
    %553 = vrot.lane.b32.xlu0 %v231, 64
    %v554 = vpop.permute.xlu0 %553
    %555 = vrot.lane.b32.xlu0 %v233, 64
    %v556 = vpop.permute.xlu0 %555
    %557 = vrot.lane.b32.xlu0 %v235, 64
    %v558 = vpop.permute.xlu0 %557
    %559 = vrot.lane.b32.xlu0 %v237, 64
    %v560 = vpop.permute.xlu0 %559
    %561 = vrot.lane.b32.xlu0 %v239, 64
    %v562 = vpop.permute.xlu0 %561
    %v572 = vsel %vm354, %v539, 0
    %v575 = vsel %vm354, %v540, 0
    %v578 = vsel %vm354, %v541, 0
    %v581 = vsel %vm354, %v542, 0
    %v584 = vsel %vm354, %v543, 0
    %v587 = vsel %vm354, %v544, 0
    %v590 = vsel %vm354, %v545, 0
    %v593 = vsel %vm354, %v546, 0
    %595 = vmatpush.msra.mxu0 0.0
    %596 = vmatpush.msra.mxu0 0.0
    %597 = vmatpush.msra.mxu0 0.0
    %598 = vmatpush.msra.mxu0 0.0
    %599 = vmatpush.msra.mxu0 0.0
    %600 = vmatpush.msra.mxu0 0.0
    %601 = vmatpush.msra.mxu0 0.0
    %602 = vmatpush.msra.mxu0 0.0
    %603 = vmatpush.msra.mxu0 %v562
    %604 = vmatpush.msra.mxu0 %v560
    %605 = vmatpush.msra.mxu0 %v558
    %606 = vmatpush.msra.mxu0 %v556
    %607 = vmatpush.msra.mxu0 %v554
    %608 = vmatpush.msra.mxu0 %v552
    %609 = vmatpush.msra.mxu0 %v550
    %610 = vmatpush.msra.mxu0 %v548
    %611 = vmatmul.f32.gmra.mxu0 %v572
    %v612 = vpop.f32.mrf.mxu0
    %v613 = vadd.f32 0.0, %v612
    %614 = vmatmul.f32.gmra.mxu0 %v575
    %v615 = vpop.f32.mrf.mxu0
    %v616 = vadd.f32 0.0, %v615
    %617 = vmatmul.f32.gmra.mxu0 %v578
    %v618 = vpop.f32.mrf.mxu0
    %v619 = vadd.f32 0.0, %v618
    %620 = vmatmul.f32.gmra.mxu0 %v581
    %v621 = vpop.f32.mrf.mxu0
    %v622 = vadd.f32 0.0, %v621
    %623 = vmatmul.f32.gmra.mxu0 %v584
    %v624 = vpop.f32.mrf.mxu0
    %v625 = vadd.f32 0.0, %v624
    %626 = vmatmul.f32.gmra.mxu0 %v587
    %v627 = vpop.f32.mrf.mxu0
    %v628 = vadd.f32 0.0, %v627
    %629 = vmatmul.f32.gmra.mxu0 %v590
    %v630 = vpop.f32.mrf.mxu0
    %v631 = vadd.f32 0.0, %v630
    %632 = vmatmul.f32.gmra.mxu0 %v593
    %v633 = vpop.f32.mrf.mxu0
    %v634 = vadd.f32 0.0, %v633
    %635 = vdwg.mxu0
    %v636 = vld [vmem:[%s6] sm:$0xff]
    %v637 = vld [vmem:[%s6 + $0x8] sm:$0xff]
    %v638 = vld [vmem:[%s6 + $0x10] sm:$0xff]
    %v639 = vld [vmem:[%s6 + $0x18] sm:$0xff]
    %v640 = vld [vmem:[#allocation13 + $0x6] sm:$0x1]
    %v642 = vsel %vm256, %v613, 0
    %v645 = vsel %vm256, %v616, 0
    %647 = vmatpush.msra.mxu0 0.0
    %648 = vmatpush.msra.mxu0 0.0
    %649 = vmatpush.msra.mxu0 0.0
    %650 = vmatpush.msra.mxu0 0.0
    %651 = vmatpush.msra.mxu0 0.0
    %652 = vmatpush.msra.mxu0 0.0
    %653 = vmatpush.msra.mxu0 0.0
    %654 = vmatpush.msra.mxu0 0.0
    %655 = vmatpush.msra.mxu0 0.0
    %656 = vmatpush.msra.mxu0 0.0
    %657 = vmatpush.msra.mxu0 0.0
    %658 = vmatpush.msra.mxu0 0.0
    %659 = vmatpush.msra.mxu0 0.0
    %660 = vmatpush.msra.mxu0 0.0
    %661 = vmatpush.msra.mxu0 0.0
    %662 = vmatpush.msra.mxu0 %v636
    %663 = vmatmul.f32.gmra.mxu0 %v642
    %v664 = vpop.f32.mrf.mxu0
    %v665 = vadd.f32 0.0, %v664
    %666 = vmatmul.f32.gmra.mxu0 %v645
    %v667 = vpop.f32.mrf.mxu0
    %v668 = vadd.f32 0.0, %v667
    %669 = vdwg.mxu0
    %v670 = vperm.slane %v640, 0
    %v671 = vadd.f32 %v670, %v665
    %v672 = vadd.f32 %v670, %v668
    %v674 = vsel %vm256, %v619, 0
    %v677 = vsel %vm256, %v622, 0
    %679 = vmatpush.msra.mxu0 0.0
    %680 = vmatpush.msra.mxu0 0.0
    %681 = vmatpush.msra.mxu0 0.0
    %682 = vmatpush.msra.mxu0 0.0
    %683 = vmatpush.msra.mxu0 0.0
    %684 = vmatpush.msra.mxu0 0.0
    %685 = vmatpush.msra.mxu0 0.0
    %686 = vmatpush.msra.mxu0 0.0
    %687 = vmatpush.msra.mxu0 0.0
    %688 = vmatpush.msra.mxu0 0.0
    %689 = vmatpush.msra.mxu0 0.0
    %690 = vmatpush.msra.mxu0 0.0
    %691 = vmatpush.msra.mxu0 0.0
    %692 = vmatpush.msra.mxu0 0.0
    %693 = vmatpush.msra.mxu0 0.0
    %694 = vmatpush.msra.mxu0 %v637
    %695 = vmatmul.f32.gmra.mxu0 %v674
    %v696 = vpop.f32.mrf.mxu0
    %v697 = vadd.f32 0.0, %v696
    %698 = vmatmul.f32.gmra.mxu0 %v677
    %v699 = vpop.f32.mrf.mxu0
    %v700 = vadd.f32 0.0, %v699
    %701 = vdwg.mxu0
    %v702 = vadd.f32 %v671, %v697
    %v703 = vadd.f32 %v672, %v700
    %v705 = vsel %vm256, %v625, 0
    %v708 = vsel %vm256, %v628, 0
    %710 = vmatpush.msra.mxu0 0.0
    %711 = vmatpush.msra.mxu0 0.0
    %712 = vmatpush.msra.mxu0 0.0
    %713 = vmatpush.msra.mxu0 0.0
    %714 = vmatpush.msra.mxu0 0.0
    %715 = vmatpush.msra.mxu0 0.0
    %716 = vmatpush.msra.mxu0 0.0
    %717 = vmatpush.msra.mxu0 0.0
    %718 = vmatpush.msra.mxu0 0.0
    %719 = vmatpush.msra.mxu0 0.0
    %720 = vmatpush.msra.mxu0 0.0
    %721 = vmatpush.msra.mxu0 0.0
    %722 = vmatpush.msra.mxu0 0.0
    %723 = vmatpush.msra.mxu0 0.0
    %724 = vmatpush.msra.mxu0 0.0
    %725 = vmatpush.msra.mxu0 %v638
    %726 = vmatmul.f32.gmra.mxu0 %v705
    %v727 = vpop.f32.mrf.mxu0
    %v728 = vadd.f32 0.0, %v727
    %729 = vmatmul.f32.gmra.mxu0 %v708
    %v730 = vpop.f32.mrf.mxu0
    %v731 = vadd.f32 0.0, %v730
    %732 = vdwg.mxu0
    %v733 = vadd.f32 %v702, %v728
    %v734 = vadd.f32 %v703, %v731
    %v736 = vsel %vm256, %v631, 0
    %v739 = vsel %vm256, %v634, 0
    %741 = vmatpush.msra.mxu0 0.0
    %742 = vmatpush.msra.mxu0 0.0
    %743 = vmatpush.msra.mxu0 0.0
    %744 = vmatpush.msra.mxu0 0.0
    %745 = vmatpush.msra.mxu0 0.0
    %746 = vmatpush.msra.mxu0 0.0
    %747 = vmatpush.msra.mxu0 0.0
    %748 = vmatpush.msra.mxu0 0.0
    %749 = vmatpush.msra.mxu0 0.0
    %750 = vmatpush.msra.mxu0 0.0
    %751 = vmatpush.msra.mxu0 0.0
    %752 = vmatpush.msra.mxu0 0.0
    %753 = vmatpush.msra.mxu0 0.0
    %754 = vmatpush.msra.mxu0 0.0
    %755 = vmatpush.msra.mxu0 0.0
    %756 = vmatpush.msra.mxu0 %v639
    %757 = vmatmul.f32.gmra.mxu0 %v736
    %v758 = vpop.f32.mrf.mxu0
    %v759 = vadd.f32 0.0, %v758
    %760 = vmatmul.f32.gmra.mxu0 %v739
    %v761 = vpop.f32.mrf.mxu0
    %v762 = vadd.f32 0.0, %v761
    %763 = vdwg.mxu0
    %v764 = vadd.f32 %v733, %v759
    %v765 = vadd.f32 %v734, %v762
    %v766 = vadd.f32 %v188, %v764
    %v767 = vadd.f32 %v189, %v765
    %v768 = vsel %vm196, %v766, 0.0
    %769 = vadd.xlane.f32.xlu0 %v768
    %v770 = vpop.xlane.xlu0 %769
    %v771 = vsel %vm196, %v767, 0.0
    %772 = vadd.xlane.f32.xlu0 %v771
    %v773 = vpop.xlane.xlu0 %772
    %v774 = vrcp.pop 32.0
    %v775 = vmul.f32 32.0, %v774
    %v776 = vsub.f32 1.0, %v775
    %v777 = vmul.f32 %v774, %v776
    %v778 = vadd.f32 %v774, %v777
    %vm779 = vweird.f32 %v774
    %v780 = vsel %vm779, %v774, %v778
    %v781 = vmul.f32 %v770, %v780
    %v782 = vmul.f32 %v773, %v780
    %v783 = vsub.f32 %v766, %v781
    %v784 = vsub.f32 %v767, %v782
    %v785 = vmul.f32 %v783, %v783
    %v786 = vmul.f32 %v784, %v784
    %v787 = vsel %vm196, %v785, 0.0
    %788 = vadd.xlane.f32.xlu0 %v787
    %v789 = vpop.xlane.xlu0 %788
    %v790 = vsel %vm196, %v786, 0.0
    %791 = vadd.xlane.f32.xlu0 %v790
    %v792 = vpop.xlane.xlu0 %791
    %v793 = vmul.f32 %v789, %v780
    %v794 = vmul.f32 %v792, %v780
    %v795 = vadd.f32 %v793, 1e-05
    %v796 = vadd.f32 %v794, 1e-05
    %v797 = vrsqrt.pop %v795
    %v798 = vmul.f32 %v797, %v795
    %v799 = vmul.f32 %v798, %v797
    %v800 = vmul.f32 0.5, %v799
    %v801 = vsub.f32 1.5, %v800
    %v802 = vmul.f32 %v797, %v801
    %vm803 = vweird.f32 %v795
    %vm804 = vweird.f32 %v797
    %vm805 = vmor %vm803, %vm804
    %v806 = vsel %vm805, %v797, %v802
    %v807 = vrsqrt.pop %v796
    %v808 = vmul.f32 %v807, %v796
    %v809 = vmul.f32 %v808, %v807
    %v810 = vmul.f32 0.5, %v809
    %v811 = vsub.f32 1.5, %v810
    %v812 = vmul.f32 %v807, %v811
    %vm813 = vweird.f32 %v796
    %vm814 = vweird.f32 %v807
    %vm815 = vmor %vm813, %vm814
    %v816 = vsel %vm815, %v807, %v812
    %v817 = vmul.f32 %v783, %v806
    %v818 = vmul.f32 %v784, %v816
    %v819 = vld [vmem:[#allocation13 + $0x14] sm:$0x1]
    %v820 = vperm.slane %v819, 0
    %v821 = vmul.f32 %v817, %v820
    %v822 = vmul.f32 %v818, %v820
    %v823 = vld [vmem:[#allocation13 + $0x1e] sm:$0x1]
    %v824 = vperm.slane %v823, 0
    %v825 = vadd.f32 %v821, %v824
    %v826 = vadd.f32 %v822, %v824
    %v827 = vld [vmem:[#allocation11] sm:$0xff]
    %v828 = vld [vmem:[#allocation11 + $0x8] sm:$0xff]
    %v829 = vld [vmem:[#allocation11 + $0x10] sm:$0xff]
    %v830 = vld [vmem:[#allocation11 + $0x18] sm:$0xff]
    %v831 = vld [vmem:[#allocation13 + $0xc] sm:$0x1]
    %v832 = vperm.slane %v831, 0
    %v834 = vsel %vm196, %v825, 0
    %v837 = vsel %vm196, %v826, 0
    %839 = vmatpush.msra.mxu0 0.0
    %840 = vmatpush.msra.mxu0 0.0
    %841 = vmatpush.msra.mxu0 0.0
    %842 = vmatpush.msra.mxu0 0.0
    %843 = vmatpush.msra.mxu0 0.0
    %844 = vmatpush.msra.mxu0 0.0
    %845 = vmatpush.msra.mxu0 0.0
    %846 = vmatpush.msra.mxu0 0.0
    %847 = vmatpush.msra.mxu0 0.0
    %848 = vmatpush.msra.mxu0 0.0
    %849 = vmatpush.msra.mxu0 0.0
    %850 = vmatpush.msra.mxu0 0.0
    %851 = vmatpush.msra.mxu0 %v830
    %852 = vmatpush.msra.mxu0 %v829
    %853 = vmatpush.msra.mxu0 %v828
    %854 = vmatpush.msra.mxu0 %v827
    %855 = vmatmul.f32.gmra.mxu0 %v834
    %v856 = vpop.f32.mrf.mxu0
    %v857 = vadd.f32 %v832, %v856
    %858 = vmatmul.f32.gmra.mxu0 %v837
    %v859 = vpop.f32.mrf.mxu0
    %v860 = vadd.f32 %v832, %v859
    %861 = vdwg.mxu0
    %v862 = vmax.f32 %v857, 0.0
    %v863 = vmax.f32 %v860, 0.0
    %v864 = vld [vmem:[%s8] sm:$0xff]
    %v865 = vld [vmem:[%s8 + $0x8] sm:$0xff]
    %v866 = vld [vmem:[%s8 + $0x10] sm:$0xff]
    %v867 = vld [vmem:[%s8 + $0x18] sm:$0xff]
    %v868 = vld [vmem:[%s8 + $0x20] sm:$0xff]
    %v869 = vld [vmem:[%s8 + $0x28] sm:$0xff]
    %v870 = vld [vmem:[%s8 + $0x30] sm:$0xff]
    %v871 = vld [vmem:[%s8 + $0x38] sm:$0xff]
    %v872 = vld [vmem:[#allocation13 + $0x10] sm:$0x1]
    %v873 = vperm.slane %v872, 0
    %v875 = vsel %vm354, %v862, 0
    %v878 = vsel %vm354, %v863, 0
    %880 = vmatpush.msra.mxu0 0.0
    %881 = vmatpush.msra.mxu0 0.0
    %882 = vmatpush.msra.mxu0 0.0
    %883 = vmatpush.msra.mxu0 0.0
    %884 = vmatpush.msra.mxu0 0.0
    %885 = vmatpush.msra.mxu0 0.0
    %886 = vmatpush.msra.mxu0 0.0
    %887 = vmatpush.msra.mxu0 0.0
    %888 = vmatpush.msra.mxu0 %v871
    %889 = vmatpush.msra.mxu0 %v870
    %890 = vmatpush.msra.mxu0 %v869
    %891 = vmatpush.msra.mxu0 %v868
    %892 = vmatpush.msra.mxu0 %v867
    %893 = vmatpush.msra.mxu0 %v866
    %894 = vmatpush.msra.mxu0 %v865
    %895 = vmatpush.msra.mxu0 %v864
    %896 = vmatmul.f32.gmra.mxu0 %v875
    %v897 = vpop.f32.mrf.mxu0
    %v898 = vadd.f32 %v873, %v897
    %899 = vmatmul.f32.gmra.mxu0 %v878
    %v900 = vpop.f32.mrf.mxu0
    %v901 = vadd.f32 %v873, %v900
    %902 = vdwg.mxu0
    %v903 = vadd.f32 %v825, %v898
    %v904 = vadd.f32 %v826, %v901
    %v905 = vsel %vm196, %v903, 0.0
    %906 = vadd.xlane.f32.xlu0 %v905
    %v907 = vpop.xlane.xlu0 %906
    %v908 = vsel %vm196, %v904, 0.0
    %909 = vadd.xlane.f32.xlu0 %v908
    %v910 = vpop.xlane.xlu0 %909
    %v911 = vmul.f32 %v907, %v780
    %v912 = vmul.f32 %v910, %v780
    %v913 = vsub.f32 %v903, %v911
    %v914 = vsub.f32 %v904, %v912
    %v915 = vmul.f32 %v913, %v913
    %v916 = vmul.f32 %v914, %v914
    %v917 = vsel %vm196, %v915, 0.0
    %918 = vadd.xlane.f32.xlu0 %v917
    %v919 = vpop.xlane.xlu0 %918
    %v920 = vsel %vm196, %v916, 0.0
    %921 = vadd.xlane.f32.xlu0 %v920
    %v922 = vpop.xlane.xlu0 %921
    %v923 = vmul.f32 %v919, %v780
    %v924 = vmul.f32 %v922, %v780
    %v925 = vadd.f32 %v923, 1e-05
    %v926 = vadd.f32 %v924, 1e-05
    %v927 = vrsqrt.pop %v925
    %v928 = vmul.f32 %v927, %v925
    %v929 = vmul.f32 %v928, %v927
    %v930 = vmul.f32 0.5, %v929
    %v931 = vsub.f32 1.5, %v930
    %v932 = vmul.f32 %v927, %v931
    %vm933 = vweird.f32 %v925
    %vm934 = vweird.f32 %v927
    %vm935 = vmor %vm933, %vm934
    %v936 = vsel %vm935, %v927, %v932
    %v937 = vrsqrt.pop %v926
    %v938 = vmul.f32 %v937, %v926
    %v939 = vmul.f32 %v938, %v937
    %v940 = vmul.f32 0.5, %v939
    %v941 = vsub.f32 1.5, %v940
    %v942 = vmul.f32 %v937, %v941
    %vm943 = vweird.f32 %v926
    %vm944 = vweird.f32 %v937
    %vm945 = vmor %vm943, %vm944
    %v946 = vsel %vm945, %v937, %v942
    %v947 = vmul.f32 %v913, %v936
    %v948 = vmul.f32 %v914, %v946
    %v949 = vld [vmem:[#allocation13 + $0x15] sm:$0x1]
    %v950 = vperm.slane %v949, 0
    %v951 = vmul.f32 %v947, %v950
    %v952 = vmul.f32 %v948, %v950
    %v953 = vld [vmem:[#allocation13 + $0x1f] sm:$0x1]
    %v954 = vperm.slane %v953, 0
    %v955 = vadd.f32 %v951, %v954
    %v956 = vadd.f32 %v952, %v954
    %s957 = scalar_lea.vmem %s5, 32
    %v958 = vld [vmem:[%s957] sm:$0xff]
    %v959 = vld [vmem:[%s957 + $0x8] sm:$0xff]
    %v960 = vld [vmem:[%s957 + $0x10] sm:$0xff]
    %v961 = vld [vmem:[%s957 + $0x18] sm:$0xff]
    %v962 = vld [vmem:[#allocation13 + $0x1] sm:$0x1]
    %v963 = vperm.slane %v962, 0
    %v965 = vsel %vm196, %v955, 0
    %v968 = vsel %vm196, %v956, 0
    %970 = vmatpush.msra.mxu0 0.0
    %971 = vmatpush.msra.mxu0 0.0
    %972 = vmatpush.msra.mxu0 0.0
    %973 = vmatpush.msra.mxu0 0.0
    %974 = vmatpush.msra.mxu0 0.0
    %975 = vmatpush.msra.mxu0 0.0
    %976 = vmatpush.msra.mxu0 0.0
    %977 = vmatpush.msra.mxu0 0.0
    %978 = vmatpush.msra.mxu0 0.0
    %979 = vmatpush.msra.mxu0 0.0
    %980 = vmatpush.msra.mxu0 0.0
    %981 = vmatpush.msra.mxu0 0.0
    %982 = vmatpush.msra.mxu0 %v961
    %983 = vmatpush.msra.mxu0 %v960
    %984 = vmatpush.msra.mxu0 %v959
    %985 = vmatpush.msra.mxu0 %v958
    %986 = vmatmul.f32.gmra.mxu0 %v965
    %v987 = vpop.f32.mrf.mxu0
    %v988 = vadd.f32 %v963, %v987
    %989 = vmatmul.f32.gmra.mxu0 %v968
    %v990 = vpop.f32.mrf.mxu0
    %v991 = vadd.f32 %v963, %v990
    %992 = vdwg.mxu0
    %995 = vrot.lane.b32.xlu0 %v988, 120
    %v996 = vpop.permute.xlu0 %995
    %997 = vrot.lane.b32.xlu0 %v991, 120
    %v998 = vpop.permute.xlu0 %997
    %999 = vrot.lane.b32.xlu0 %v988, 112
    %v1000 = vpop.permute.xlu0 %999
    %1001 = vrot.lane.b32.xlu0 %v991, 112
    %v1002 = vpop.permute.xlu0 %1001
    %1003 = vrot.lane.b32.xlu0 %v988, 104
    %v1004 = vpop.permute.xlu0 %1003
    %1005 = vrot.lane.b32.xlu0 %v991, 104
    %v1006 = vpop.permute.xlu0 %1005
    %1007 = vrot.lane.b32.xlu0 %v988, 96
    %v1008 = vpop.permute.xlu0 %1007
    %1009 = vrot.lane.b32.xlu0 %v991, 96
    %v1010 = vpop.permute.xlu0 %1009
    %1011 = vrot.lane.b32.xlu0 %v996, 96
    %v1012 = vpop.permute.xlu0 %1011
    %1013 = vrot.lane.b32.xlu0 %v998, 96
    %v1014 = vpop.permute.xlu0 %1013
    %1015 = vrot.lane.b32.xlu0 %v1000, 96
    %v1016 = vpop.permute.xlu0 %1015
    %1017 = vrot.lane.b32.xlu0 %v1002, 96
    %v1018 = vpop.permute.xlu0 %1017
    %1019 = vrot.lane.b32.xlu0 %v1004, 96
    %v1020 = vpop.permute.xlu0 %1019
    %1021 = vrot.lane.b32.xlu0 %v1006, 96
    %v1022 = vpop.permute.xlu0 %1021
    %v1023 = vsel %vm256, %v988, 0
    %v1025 = vsel %vm256, %v991, 0
    %v1027 = vsel %vm256, %v996, 0
    %v1029 = vsel %vm256, %v998, 0
    %v1031 = vsel %vm256, %v1000, 0
    %v1033 = vsel %vm256, %v1002, 0
    %v1035 = vsel %vm256, %v1004, 0
    %v1037 = vsel %vm256, %v1006, 0
    %v1039 = vsel %vm256, %v1008, 0
    %v1041 = vsel %vm256, %v1010, 0
    %v1043 = vsel %vm256, %v1012, 0
    %v1045 = vsel %vm256, %v1014, 0
    %v1047 = vsel %vm256, %v1016, 0
    %v1049 = vsel %vm256, %v1018, 0
    %v1051 = vsel %vm256, %v1020, 0
    %v1053 = vsel %vm256, %v1022, 0
    %1055 = vmatpush.xpose.msra.mxu0 0.0
    %1056 = vmatpush.xpose.msra.mxu0 0.0
    %1057 = vmatpush.xpose.msra.mxu0 0.0
    %1058 = vmatpush.xpose.msra.mxu0 0.0
    %1059 = vmatpush.xpose.msra.mxu0 0.0
    %1060 = vmatpush.xpose.msra.mxu0 0.0
    %1061 = vmatpush.xpose.msra.mxu0 0.0
    %1062 = vmatpush.xpose.msra.mxu0 0.0
    %1063 = vmatpush.xpose.msra.mxu0 %v1053
    %1064 = vmatpush.xpose.msra.mxu0 %v1051
    %1065 = vmatpush.xpose.msra.mxu0 %v1049
    %1066 = vmatpush.xpose.msra.mxu0 %v1047
    %1067 = vmatpush.xpose.msra.mxu0 %v1045
    %1068 = vmatpush.xpose.msra.mxu0 %v1043
    %1069 = vmatpush.xpose.msra.mxu0 %v1041
    %1070 = vmatpush.xpose.msra.mxu0 %v1039
    %1071 = vmatmul.f32.gmra.mxu0 %v1023
    %v1072 = vpop.f32.mrf.mxu0
    %v1073 = vadd.f32 0.0, %v1072
    %1074 = vmatmul.f32.gmra.mxu0 %v1025
    %v1075 = vpop.f32.mrf.mxu0
    %v1076 = vadd.f32 0.0, %v1075
    %1077 = vmatmul.f32.gmra.mxu0 %v1027
    %v1078 = vpop.f32.mrf.mxu0
    %v1079 = vadd.f32 0.0, %v1078
    %1080 = vmatmul.f32.gmra.mxu0 %v1029
    %v1081 = vpop.f32.mrf.mxu0
    %v1082 = vadd.f32 0.0, %v1081
    %1083 = vmatmul.f32.gmra.mxu0 %v1031
    %v1084 = vpop.f32.mrf.mxu0
    %v1085 = vadd.f32 0.0, %v1084
    %1086 = vmatmul.f32.gmra.mxu0 %v1033
    %v1087 = vpop.f32.mrf.mxu0
    %v1088 = vadd.f32 0.0, %v1087
    %1089 = vmatmul.f32.gmra.mxu0 %v1035
    %v1090 = vpop.f32.mrf.mxu0
    %v1091 = vadd.f32 0.0, %v1090
    %1092 = vmatmul.f32.gmra.mxu0 %v1037
    %v1093 = vpop.f32.mrf.mxu0
    %v1094 = vadd.f32 0.0, %v1093
    %1095 = vdwg.mxu0
    %v1096 = vmul.f32 %v1073, 0.17677669
    %v1097 = vmul.f32 %v1076, 0.17677669
    %v1098 = vmul.f32 %v1079, 0.17677669
    %v1099 = vmul.f32 %v1082, 0.17677669
    %v1100 = vmul.f32 %v1085, 0.17677669
    %v1101 = vmul.f32 %v1088, 0.17677669
    %v1102 = vmul.f32 %v1091, 0.17677669
    %v1103 = vmul.f32 %v1094, 0.17677669
    %v1104 = vsel %vm338, %v1096, %v164
    %v1105 = vsel %vm339, %v1097, %v165
    %v1106 = vsel %vm340, %v1098, %v166
    %v1107 = vsel %vm341, %v1099, %v167
    %v1108 = vsel %vm342, %v1100, %v168
    %v1109 = vsel %vm343, %v1101, %v169
    %v1110 = vsel %vm344, %v1102, %v170
    %v1111 = vsel %vm345, %v1103, %v171
    %v1112 = vsel %vm354, %v1104, -inf
    %1113 = vmax.xlane.f32.xlu0 %v1112
    %v1114 = vpop.xlane.xlu0 %1113
    %v1115 = vsel %vm354, %v1105, -inf
    %1116 = vmax.xlane.f32.xlu0 %v1115
    %v1117 = vpop.xlane.xlu0 %1116
    %v1118 = vsel %vm354, %v1106, -inf
    %1119 = vmax.xlane.f32.xlu0 %v1118
    %v1120 = vpop.xlane.xlu0 %1119
    %v1121 = vsel %vm354, %v1107, -inf
    %1122 = vmax.xlane.f32.xlu0 %v1121
    %v1123 = vpop.xlane.xlu0 %1122
    %v1124 = vsel %vm354, %v1108, -inf
    %1125 = vmax.xlane.f32.xlu0 %v1124
    %v1126 = vpop.xlane.xlu0 %1125
    %v1127 = vsel %vm354, %v1109, -inf
    %1128 = vmax.xlane.f32.xlu0 %v1127
    %v1129 = vpop.xlane.xlu0 %1128
    %v1130 = vsel %vm354, %v1110, -inf
    %1131 = vmax.xlane.f32.xlu0 %v1130
    %v1132 = vpop.xlane.xlu0 %1131
    %v1133 = vsel %vm354, %v1111, -inf
    %1134 = vmax.xlane.f32.xlu0 %v1133
    %v1135 = vpop.xlane.xlu0 %1134
    %v1136 = vsub.f32 %v1104, %v1114
    %v1137 = vsub.f32 %v1105, %v1117
    %v1138 = vsub.f32 %v1106, %v1120
    %v1139 = vsub.f32 %v1107, %v1123
    %v1140 = vsub.f32 %v1108, %v1126
    %v1141 = vsub.f32 %v1109, %v1129
    %v1142 = vsub.f32 %v1110, %v1132
    %v1143 = vsub.f32 %v1111, %v1135
    %v1144 = vmul.f32 %v1136, 1.442695
    %v1145 = vpow.pop %v1144
    %v1146 = vmul.f32 %v1137, 1.442695
    %v1147 = vpow.pop %v1146
    %v1148 = vmul.f32 %v1138, 1.442695
    %v1149 = vpow.pop %v1148
    %v1150 = vmul.f32 %v1139, 1.442695
    %v1151 = vpow.pop %v1150
    %v1152 = vmul.f32 %v1140, 1.442695
    %v1153 = vpow.pop %v1152
    %v1154 = vmul.f32 %v1141, 1.442695
    %v1155 = vpow.pop %v1154
    %v1156 = vmul.f32 %v1142, 1.442695
    %v1157 = vpow.pop %v1156
    %v1158 = vmul.f32 %v1143, 1.442695
    %v1159 = vpow.pop %v1158
    %v1160 = vsel %vm354, %v1145, 0.0
    %1161 = vadd.xlane.f32.xlu0 %v1160
    %v1162 = vpop.xlane.xlu0 %1161
    %v1163 = vsel %vm354, %v1147, 0.0
    %1164 = vadd.xlane.f32.xlu0 %v1163
    %v1165 = vpop.xlane.xlu0 %1164
    %v1166 = vsel %vm354, %v1149, 0.0
    %1167 = vadd.xlane.f32.xlu0 %v1166
    %v1168 = vpop.xlane.xlu0 %1167
    %v1169 = vsel %vm354, %v1151, 0.0
    %1170 = vadd.xlane.f32.xlu0 %v1169
    %v1171 = vpop.xlane.xlu0 %1170
    %v1172 = vsel %vm354, %v1153, 0.0
    %1173 = vadd.xlane.f32.xlu0 %v1172
    %v1174 = vpop.xlane.xlu0 %1173
    %v1175 = vsel %vm354, %v1155, 0.0
    %1176 = vadd.xlane.f32.xlu0 %v1175
    %v1177 = vpop.xlane.xlu0 %1176
    %v1178 = vsel %vm354, %v1157, 0.0
    %1179 = vadd.xlane.f32.xlu0 %v1178
    %v1180 = vpop.xlane.xlu0 %1179
    %v1181 = vsel %vm354, %v1159, 0.0
    %1182 = vadd.xlane.f32.xlu0 %v1181
    %v1183 = vpop.xlane.xlu0 %1182
    %v1184 = vrcp.pop %v1162
    %v1185 = vmul.f32 %v1162, %v1184
    %v1186 = vsub.f32 1.0, %v1185
    %v1187 = vmul.f32 %v1184, %v1186
    %v1188 = vadd.f32 %v1184, %v1187
    %vm1189 = vweird.f32 %v1162
    %vm1190 = vweird.f32 %v1184
    %vm1191 = vmor %vm1189, %vm1190
    %v1192 = vsel %vm1191, %v1184, %v1188
    %v1193 = vand.u32 2147483647, %v1162
    %vm1194 = vcmp.eq.f32.partialorder %v1193, 8.507059e+37
    %v1195 = vand.u32 %v1162, 2147483648
    %v1196 = vor.u32 1.1754944e-38, %v1195
    %v1197 = vsel %vm1194, %v1196, %v1192
    %v1198 = vrcp.pop %v1165
    %v1199 = vmul.f32 %v1165, %v1198
    %v1200 = vsub.f32 1.0, %v1199
    %v1201 = vmul.f32 %v1198, %v1200
    %v1202 = vadd.f32 %v1198, %v1201
    %vm1203 = vweird.f32 %v1165
    %vm1204 = vweird.f32 %v1198
    %vm1205 = vmor %vm1203, %vm1204
    %v1206 = vsel %vm1205, %v1198, %v1202
    %v1207 = vand.u32 2147483647, %v1165
    %vm1208 = vcmp.eq.f32.partialorder %v1207, 8.507059e+37
    %v1209 = vand.u32 %v1165, 2147483648
    %v1210 = vor.u32 1.1754944e-38, %v1209
    %v1211 = vsel %vm1208, %v1210, %v1206
    %v1212 = vrcp.pop %v1168
    %v1213 = vmul.f32 %v1168, %v1212
    %v1214 = vsub.f32 1.0, %v1213
    %v1215 = vmul.f32 %v1212, %v1214
    %v1216 = vadd.f32 %v1212, %v1215
    %vm1217 = vweird.f32 %v1168
    %vm1218 = vweird.f32 %v1212
    %vm1219 = vmor %vm1217, %vm1218
    %v1220 = vsel %vm1219, %v1212, %v1216
    %v1221 = vand.u32 2147483647, %v1168
    %vm1222 = vcmp.eq.f32.partialorder %v1221, 8.507059e+37
    %v1223 = vand.u32 %v1168, 2147483648
    %v1224 = vor.u32 1.1754944e-38, %v1223
    %v1225 = vsel %vm1222, %v1224, %v1220
    %v1226 = vrcp.pop %v1171
    %v1227 = vmul.f32 %v1171, %v1226
    %v1228 = vsub.f32 1.0, %v1227
    %v1229 = vmul.f32 %v1226, %v1228
    %v1230 = vadd.f32 %v1226, %v1229
    %vm1231 = vweird.f32 %v1171
    %vm1232 = vweird.f32 %v1226
    %vm1233 = vmor %vm1231, %vm1232
    %v1234 = vsel %vm1233, %v1226, %v1230
    %v1235 = vand.u32 2147483647, %v1171
    %vm1236 = vcmp.eq.f32.partialorder %v1235, 8.507059e+37
    %v1237 = vand.u32 %v1171, 2147483648
    %v1238 = vor.u32 1.1754944e-38, %v1237
    %v1239 = vsel %vm1236, %v1238, %v1234
    %v1240 = vrcp.pop %v1174
    %v1241 = vmul.f32 %v1174, %v1240
    %v1242 = vsub.f32 1.0, %v1241
    %v1243 = vmul.f32 %v1240, %v1242
    %v1244 = vadd.f32 %v1240, %v1243
    %vm1245 = vweird.f32 %v1174
    %vm1246 = vweird.f32 %v1240
    %vm1247 = vmor %vm1245, %vm1246
    %v1248 = vsel %vm1247, %v1240, %v1244
    %v1249 = vand.u32 2147483647, %v1174
    %vm1250 = vcmp.eq.f32.partialorder %v1249, 8.507059e+37
    %v1251 = vand.u32 %v1174, 2147483648
    %v1252 = vor.u32 1.1754944e-38, %v1251
    %v1253 = vsel %vm1250, %v1252, %v1248
    %v1254 = vrcp.pop %v1177
    %v1255 = vmul.f32 %v1177, %v1254
    %v1256 = vsub.f32 1.0, %v1255
    %v1257 = vmul.f32 %v1254, %v1256
    %v1258 = vadd.f32 %v1254, %v1257
    %vm1259 = vweird.f32 %v1177
    %vm1260 = vweird.f32 %v1254
    %vm1261 = vmor %vm1259, %vm1260
    %v1262 = vsel %vm1261, %v1254, %v1258
    %v1263 = vand.u32 2147483647, %v1177
    %vm1264 = vcmp.eq.f32.partialorder %v1263, 8.507059e+37
    %v1265 = vand.u32 %v1177, 2147483648
    %v1266 = vor.u32 1.1754944e-38, %v1265
    %v1267 = vsel %vm1264, %v1266, %v1262
    %v1268 = vrcp.pop %v1180
    %v1269 = vmul.f32 %v1180, %v1268
    %v1270 = vsub.f32 1.0, %v1269
    %v1271 = vmul.f32 %v1268, %v1270
    %v1272 = vadd.f32 %v1268, %v1271
    %vm1273 = vweird.f32 %v1180
    %vm1274 = vweird.f32 %v1268
    %vm1275 = vmor %vm1273, %vm1274
    %v1276 = vsel %vm1275, %v1268, %v1272
    %v1277 = vand.u32 2147483647, %v1180
    %vm1278 = vcmp.eq.f32.partialorder %v1277, 8.507059e+37
    %v1279 = vand.u32 %v1180, 2147483648
    %v1280 = vor.u32 1.1754944e-38, %v1279
    %v1281 = vsel %vm1278, %v1280, %v1276
    %v1282 = vrcp.pop %v1183
    %v1283 = vmul.f32 %v1183, %v1282
    %v1284 = vsub.f32 1.0, %v1283
    %v1285 = vmul.f32 %v1282, %v1284
    %v1286 = vadd.f32 %v1282, %v1285
    %vm1287 = vweird.f32 %v1183
    %vm1288 = vweird.f32 %v1282
    %vm1289 = vmor %vm1287, %vm1288
    %v1290 = vsel %vm1289, %v1282, %v1286
    %v1291 = vand.u32 2147483647, %v1183
    %vm1292 = vcmp.eq.f32.partialorder %v1291, 8.507059e+37
    %v1293 = vand.u32 %v1183, 2147483648
    %v1294 = vor.u32 1.1754944e-38, %v1293
    %v1295 = vsel %vm1292, %v1294, %v1290
    %v1296 = vmul.f32 %v1145, %v1197
    %v1297 = vmul.f32 %v1147, %v1211
    %v1298 = vmul.f32 %v1149, %v1225
    %v1299 = vmul.f32 %v1151, %v1239
    %v1300 = vmul.f32 %v1153, %v1253
    %v1301 = vmul.f32 %v1155, %v1267
    %v1302 = vmul.f32 %v1157, %v1281
    %v1303 = vmul.f32 %v1159, %v1295
    %1304 = vrot.lane.b32.xlu0 %v988, 64
    %v1305 = vpop.permute.xlu0 %1304
    %1306 = vrot.lane.b32.xlu0 %v991, 64
    %v1307 = vpop.permute.xlu0 %1306
    %1308 = vrot.lane.b32.xlu0 %v996, 64
    %v1309 = vpop.permute.xlu0 %1308
    %1310 = vrot.lane.b32.xlu0 %v998, 64
    %v1311 = vpop.permute.xlu0 %1310
    %1312 = vrot.lane.b32.xlu0 %v1000, 64
    %v1313 = vpop.permute.xlu0 %1312
    %1314 = vrot.lane.b32.xlu0 %v1002, 64
    %v1315 = vpop.permute.xlu0 %1314
    %1316 = vrot.lane.b32.xlu0 %v1004, 64
    %v1317 = vpop.permute.xlu0 %1316
    %1318 = vrot.lane.b32.xlu0 %v1006, 64
    %v1319 = vpop.permute.xlu0 %1318
    %v1329 = vsel %vm354, %v1296, 0
    %v1332 = vsel %vm354, %v1297, 0
    %v1335 = vsel %vm354, %v1298, 0
    %v1338 = vsel %vm354, %v1299, 0
    %v1341 = vsel %vm354, %v1300, 0
    %v1344 = vsel %vm354, %v1301, 0
    %v1347 = vsel %vm354, %v1302, 0
    %v1350 = vsel %vm354, %v1303, 0
    %1352 = vmatpush.msra.mxu0 0.0
    %1353 = vmatpush.msra.mxu0 0.0
    %1354 = vmatpush.msra.mxu0 0.0
    %1355 = vmatpush.msra.mxu0 0.0
    %1356 = vmatpush.msra.mxu0 0.0
    %1357 = vmatpush.msra.mxu0 0.0
    %1358 = vmatpush.msra.mxu0 0.0
    %1359 = vmatpush.msra.mxu0 0.0
    %1360 = vmatpush.msra.mxu0 %v1319
    %1361 = vmatpush.msra.mxu0 %v1317
    %1362 = vmatpush.msra.mxu0 %v1315
    %1363 = vmatpush.msra.mxu0 %v1313
    %1364 = vmatpush.msra.mxu0 %v1311
    %1365 = vmatpush.msra.mxu0 %v1309
    %1366 = vmatpush.msra.mxu0 %v1307
    %1367 = vmatpush.msra.mxu0 %v1305
    %1368 = vmatmul.f32.gmra.mxu0 %v1329
    %v1369 = vpop.f32.mrf.mxu0
    %v1370 = vadd.f32 0.0, %v1369
    %1371 = vmatmul.f32.gmra.mxu0 %v1332
    %v1372 = vpop.f32.mrf.mxu0
    %v1373 = vadd.f32 0.0, %v1372
    %1374 = vmatmul.f32.gmra.mxu0 %v1335
    %v1375 = vpop.f32.mrf.mxu0
    %v1376 = vadd.f32 0.0, %v1375
    %1377 = vmatmul.f32.gmra.mxu0 %v1338
    %v1378 = vpop.f32.mrf.mxu0
    %v1379 = vadd.f32 0.0, %v1378
    %1380 = vmatmul.f32.gmra.mxu0 %v1341
    %v1381 = vpop.f32.mrf.mxu0
    %v1382 = vadd.f32 0.0, %v1381
    %1383 = vmatmul.f32.gmra.mxu0 %v1344
    %v1384 = vpop.f32.mrf.mxu0
    %v1385 = vadd.f32 0.0, %v1384
    %1386 = vmatmul.f32.gmra.mxu0 %v1347
    %v1387 = vpop.f32.mrf.mxu0
    %v1388 = vadd.f32 0.0, %v1387
    %1389 = vmatmul.f32.gmra.mxu0 %v1350
    %v1390 = vpop.f32.mrf.mxu0
    %v1391 = vadd.f32 0.0, %v1390
    %1392 = vdwg.mxu0
    %s1393 = scalar_lea.vmem %s6, 32
    %v1394 = vld [vmem:[%s1393] sm:$0xff]
    %v1395 = vld [vmem:[%s1393 + $0x8] sm:$0xff]
    %v1396 = vld [vmem:[%s1393 + $0x10] sm:$0xff]
    %v1397 = vld [vmem:[%s1393 + $0x18] sm:$0xff]
    %v1398 = vld [vmem:[#allocation13 + $0x7] sm:$0x1]
    %v1400 = vsel %vm256, %v1370, 0
    %v1403 = vsel %vm256, %v1373, 0
    %1405 = vmatpush.msra.mxu0 0.0
    %1406 = vmatpush.msra.mxu0 0.0
    %1407 = vmatpush.msra.mxu0 0.0
    %1408 = vmatpush.msra.mxu0 0.0
    %1409 = vmatpush.msra.mxu0 0.0
    %1410 = vmatpush.msra.mxu0 0.0
    %1411 = vmatpush.msra.mxu0 0.0
    %1412 = vmatpush.msra.mxu0 0.0
    %1413 = vmatpush.msra.mxu0 0.0
    %1414 = vmatpush.msra.mxu0 0.0
    %1415 = vmatpush.msra.mxu0 0.0
    %1416 = vmatpush.msra.mxu0 0.0
    %1417 = vmatpush.msra.mxu0 0.0
    %1418 = vmatpush.msra.mxu0 0.0
    %1419 = vmatpush.msra.mxu0 0.0
    %1420 = vmatpush.msra.mxu0 %v1394
    %1421 = vmatmul.f32.gmra.mxu0 %v1400
    %v1422 = vpop.f32.mrf.mxu0
    %v1423 = vadd.f32 0.0, %v1422
    %1424 = vmatmul.f32.gmra.mxu0 %v1403
    %v1425 = vpop.f32.mrf.mxu0
    %v1426 = vadd.f32 0.0, %v1425
    %1427 = vdwg.mxu0
    %v1428 = vperm.slane %v1398, 0
    %v1429 = vadd.f32 %v1428, %v1423
    %v1430 = vadd.f32 %v1428, %v1426
    %v1432 = vsel %vm256, %v1376, 0
    %v1435 = vsel %vm256, %v1379, 0
    %1437 = vmatpush.msra.mxu0 0.0
    %1438 = vmatpush.msra.mxu0 0.0
    %1439 = vmatpush.msra.mxu0 0.0
    %1440 = vmatpush.msra.mxu0 0.0
    %1441 = vmatpush.msra.mxu0 0.0
    %1442 = vmatpush.msra.mxu0 0.0
    %1443 = vmatpush.msra.mxu0 0.0
    %1444 = vmatpush.msra.mxu0 0.0
    %1445 = vmatpush.msra.mxu0 0.0
    %1446 = vmatpush.msra.mxu0 0.0
    %1447 = vmatpush.msra.mxu0 0.0
    %1448 = vmatpush.msra.mxu0 0.0
    %1449 = vmatpush.msra.mxu0 0.0
    %1450 = vmatpush.msra.mxu0 0.0
    %1451 = vmatpush.msra.mxu0 0.0
    %1452 = vmatpush.msra.mxu0 %v1395
    %1453 = vmatmul.f32.gmra.mxu0 %v1432
    %v1454 = vpop.f32.mrf.mxu0
    %v1455 = vadd.f32 0.0, %v1454
    %1456 = vmatmul.f32.gmra.mxu0 %v1435
    %v1457 = vpop.f32.mrf.mxu0
    %v1458 = vadd.f32 0.0, %v1457
    %1459 = vdwg.mxu0
    %v1460 = vadd.f32 %v1429, %v1455
    %v1461 = vadd.f32 %v1430, %v1458
    %v1463 = vsel %vm256, %v1382, 0
    %v1466 = vsel %vm256, %v1385, 0
    %1468 = vmatpush.msra.mxu0 0.0
    %1469 = vmatpush.msra.mxu0 0.0
    %1470 = vmatpush.msra.mxu0 0.0
    %1471 = vmatpush.msra.mxu0 0.0
    %1472 = vmatpush.msra.mxu0 0.0
    %1473 = vmatpush.msra.mxu0 0.0
    %1474 = vmatpush.msra.mxu0 0.0
    %1475 = vmatpush.msra.mxu0 0.0
    %1476 = vmatpush.msra.mxu0 0.0
    %1477 = vmatpush.msra.mxu0 0.0
    %1478 = vmatpush.msra.mxu0 0.0
    %1479 = vmatpush.msra.mxu0 0.0
    %1480 = vmatpush.msra.mxu0 0.0
    %1481 = vmatpush.msra.mxu0 0.0
    %1482 = vmatpush.msra.mxu0 0.0
    %1483 = vmatpush.msra.mxu0 %v1396
    %1484 = vmatmul.f32.gmra.mxu0 %v1463
    %v1485 = vpop.f32.mrf.mxu0
    %v1486 = vadd.f32 0.0, %v1485
    %1487 = vmatmul.f32.gmra.mxu0 %v1466
    %v1488 = vpop.f32.mrf.mxu0
    %v1489 = vadd.f32 0.0, %v1488
    %1490 = vdwg.mxu0
    %v1491 = vadd.f32 %v1460, %v1486
    %v1492 = vadd.f32 %v1461, %v1489
    %v1494 = vsel %vm256, %v1388, 0
    %v1497 = vsel %vm256, %v1391, 0
    %1499 = vmatpush.msra.mxu0 0.0
    %1500 = vmatpush.msra.mxu0 0.0
    %1501 = vmatpush.msra.mxu0 0.0
    %1502 = vmatpush.msra.mxu0 0.0
    %1503 = vmatpush.msra.mxu0 0.0
    %1504 = vmatpush.msra.mxu0 0.0
    %1505 = vmatpush.msra.mxu0 0.0
    %1506 = vmatpush.msra.mxu0 0.0
    %1507 = vmatpush.msra.mxu0 0.0
    %1508 = vmatpush.msra.mxu0 0.0
    %1509 = vmatpush.msra.mxu0 0.0
    %1510 = vmatpush.msra.mxu0 0.0
    %1511 = vmatpush.msra.mxu0 0.0
    %1512 = vmatpush.msra.mxu0 0.0
    %1513 = vmatpush.msra.mxu0 0.0
    %1514 = vmatpush.msra.mxu0 %v1397
    %1515 = vmatmul.f32.gmra.mxu0 %v1494
    %v1516 = vpop.f32.mrf.mxu0
    %v1517 = vadd.f32 0.0, %v1516
    %1518 = vmatmul.f32.gmra.mxu0 %v1497
    %v1519 = vpop.f32.mrf.mxu0
    %v1520 = vadd.f32 0.0, %v1519
    %1521 = vdwg.mxu0
    %v1522 = vadd.f32 %v1491, %v1517
    %v1523 = vadd.f32 %v1492, %v1520
    %v1524 = vadd.f32 %v955, %v1522
    %v1525 = vadd.f32 %v956, %v1523
    %v1526 = vsel %vm196, %v1524, 0.0
    %1527 = vadd.xlane.f32.xlu0 %v1526
    %v1528 = vpop.xlane.xlu0 %1527
    %v1529 = vsel %vm196, %v1525, 0.0
    %1530 = vadd.xlane.f32.xlu0 %v1529
    %v1531 = vpop.xlane.xlu0 %1530
    %v1532 = vmul.f32 %v1528, %v780
    %v1533 = vmul.f32 %v1531, %v780
    %v1534 = vsub.f32 %v1524, %v1532
    %v1535 = vsub.f32 %v1525, %v1533
    %v1536 = vmul.f32 %v1534, %v1534
    %v1537 = vmul.f32 %v1535, %v1535
    %v1538 = vsel %vm196, %v1536, 0.0
    %1539 = vadd.xlane.f32.xlu0 %v1538
    %v1540 = vpop.xlane.xlu0 %1539
    %v1541 = vsel %vm196, %v1537, 0.0
    %1542 = vadd.xlane.f32.xlu0 %v1541
    %v1543 = vpop.xlane.xlu0 %1542
    %v1544 = vmul.f32 %v1540, %v780
    %v1545 = vmul.f32 %v1543, %v780
    %v1546 = vadd.f32 %v1544, 1e-05
    %v1547 = vadd.f32 %v1545, 1e-05
    %v1548 = vrsqrt.pop %v1546
    %v1549 = vmul.f32 %v1548, %v1546
    %v1550 = vmul.f32 %v1549, %v1548
    %v1551 = vmul.f32 0.5, %v1550
    %v1552 = vsub.f32 1.5, %v1551
    %v1553 = vmul.f32 %v1548, %v1552
    %vm1554 = vweird.f32 %v1546
    %vm1555 = vweird.f32 %v1548
    %vm1556 = vmor %vm1554, %vm1555
    %v1557 = vsel %vm1556, %v1548, %v1553
    %v1558 = vrsqrt.pop %v1547
    %v1559 = vmul.f32 %v1558, %v1547
    %v1560 = vmul.f32 %v1559, %v1558
    %v1561 = vmul.f32 0.5, %v1560
    %v1562 = vsub.f32 1.5, %v1561
    %v1563 = vmul.f32 %v1558, %v1562
    %vm1564 = vweird.f32 %v1547
    %vm1565 = vweird.f32 %v1558
    %vm1566 = vmor %vm1564, %vm1565
    %v1567 = vsel %vm1566, %v1558, %v1563
    %v1568 = vmul.f32 %v1534, %v1557
    %v1569 = vmul.f32 %v1535, %v1567
    %v1570 = vld [vmem:[#allocation13 + $0x16] sm:$0x1]
    %v1571 = vperm.slane %v1570, 0
    %v1572 = vmul.f32 %v1568, %v1571
    %v1573 = vmul.f32 %v1569, %v1571
    %v1574 = vld [vmem:[#allocation13 + $0x20] sm:$0x1]
    %v1575 = vperm.slane %v1574, 0
    %v1576 = vadd.f32 %v1572, %v1575
    %v1577 = vadd.f32 %v1573, %v1575
    %s1578 = scalar_lea.vmem [#allocation11], 32
    %v1579 = vld [vmem:[%s1578] sm:$0xff]
    %v1580 = vld [vmem:[%s1578 + $0x8] sm:$0xff]
    %v1581 = vld [vmem:[%s1578 + $0x10] sm:$0xff]
    %v1582 = vld [vmem:[%s1578 + $0x18] sm:$0xff]
    %v1583 = vld [vmem:[#allocation13 + $0xd] sm:$0x1]
    %v1584 = vperm.slane %v1583, 0
    %v1586 = vsel %vm196, %v1576, 0
    %v1589 = vsel %vm196, %v1577, 0
    %1591 = vmatpush.msra.mxu0 0.0
    %1592 = vmatpush.msra.mxu0 0.0
    %1593 = vmatpush.msra.mxu0 0.0
    %1594 = vmatpush.msra.mxu0 0.0
    %1595 = vmatpush.msra.mxu0 0.0
    %1596 = vmatpush.msra.mxu0 0.0
    %1597 = vmatpush.msra.mxu0 0.0
    %1598 = vmatpush.msra.mxu0 0.0
    %1599 = vmatpush.msra.mxu0 0.0
    %1600 = vmatpush.msra.mxu0 0.0
    %1601 = vmatpush.msra.mxu0 0.0
    %1602 = vmatpush.msra.mxu0 0.0
    %1603 = vmatpush.msra.mxu0 %v1582
    %1604 = vmatpush.msra.mxu0 %v1581
    %1605 = vmatpush.msra.mxu0 %v1580
    %1606 = vmatpush.msra.mxu0 %v1579
    %1607 = vmatmul.f32.gmra.mxu0 %v1586
    %v1608 = vpop.f32.mrf.mxu0
    %v1609 = vadd.f32 %v1584, %v1608
    %1610 = vmatmul.f32.gmra.mxu0 %v1589
    %v1611 = vpop.f32.mrf.mxu0
    %v1612 = vadd.f32 %v1584, %v1611
    %1613 = vdwg.mxu0
    %v1614 = vmax.f32 %v1609, 0.0
    %v1615 = vmax.f32 %v1612, 0.0
    %s1616 = scalar_lea.vmem %s8, 64
    %v1617 = vld [vmem:[%s1616] sm:$0xff]
    %v1618 = vld [vmem:[%s1616 + $0x8] sm:$0xff]
    %v1619 = vld [vmem:[%s1616 + $0x10] sm:$0xff]
    %v1620 = vld [vmem:[%s1616 + $0x18] sm:$0xff]
    %v1621 = vld [vmem:[%s1616 + $0x20] sm:$0xff]
    %v1622 = vld [vmem:[%s1616 + $0x28] sm:$0xff]
    %v1623 = vld [vmem:[%s1616 + $0x30] sm:$0xff]
    %v1624 = vld [vmem:[%s1616 + $0x38] sm:$0xff]
    %v1625 = vld [vmem:[#allocation13 + $0x11] sm:$0x1]
    %v1626 = vperm.slane %v1625, 0
    %v1628 = vsel %vm354, %v1614, 0
    %v1631 = vsel %vm354, %v1615, 0
    %1633 = vmatpush.msra.mxu0 0.0
    %1634 = vmatpush.msra.mxu0 0.0
    %1635 = vmatpush.msra.mxu0 0.0
    %1636 = vmatpush.msra.mxu0 0.0
    %1637 = vmatpush.msra.mxu0 0.0
    %1638 = vmatpush.msra.mxu0 0.0
    %1639 = vmatpush.msra.mxu0 0.0
    %1640 = vmatpush.msra.mxu0 0.0
    %1641 = vmatpush.msra.mxu0 %v1624
    %1642 = vmatpush.msra.mxu0 %v1623
    %1643 = vmatpush.msra.mxu0 %v1622
    %1644 = vmatpush.msra.mxu0 %v1621
    %1645 = vmatpush.msra.mxu0 %v1620
    %1646 = vmatpush.msra.mxu0 %v1619
    %1647 = vmatpush.msra.mxu0 %v1618
    %1648 = vmatpush.msra.mxu0 %v1617
    %1649 = vmatmul.f32.gmra.mxu0 %v1628
    %v1650 = vpop.f32.mrf.mxu0
    %v1651 = vadd.f32 %v1626, %v1650
    %1652 = vmatmul.f32.gmra.mxu0 %v1631
    %v1653 = vpop.f32.mrf.mxu0
    %v1654 = vadd.f32 %v1626, %v1653
    %1655 = vdwg.mxu0
    %v1656 = vadd.f32 %v1576, %v1651
    %v1657 = vadd.f32 %v1577, %v1654
    %v1658 = vsel %vm196, %v1656, 0.0
    %1659 = vadd.xlane.f32.xlu0 %v1658
    %v1660 = vpop.xlane.xlu0 %1659
    %v1661 = vsel %vm196, %v1657, 0.0
    %1662 = vadd.xlane.f32.xlu0 %v1661
    %v1663 = vpop.xlane.xlu0 %1662
    %v1664 = vmul.f32 %v1660, %v780
    %v1665 = vmul.f32 %v1663, %v780
    %v1666 = vsub.f32 %v1656, %v1664
    %v1667 = vsub.f32 %v1657, %v1665
    %v1668 = vmul.f32 %v1666, %v1666
    %v1669 = vmul.f32 %v1667, %v1667
    %v1670 = vsel %vm196, %v1668, 0.0
    %1671 = vadd.xlane.f32.xlu0 %v1670
    %v1672 = vpop.xlane.xlu0 %1671
    %v1673 = vsel %vm196, %v1669, 0.0
    %1674 = vadd.xlane.f32.xlu0 %v1673
    %v1675 = vpop.xlane.xlu0 %1674
    %v1676 = vmul.f32 %v1672, %v780
    %v1677 = vmul.f32 %v1675, %v780
    %v1678 = vadd.f32 %v1676, 1e-05
    %v1679 = vadd.f32 %v1677, 1e-05
    %v1680 = vrsqrt.pop %v1678
    %v1681 = vmul.f32 %v1680, %v1678
    %v1682 = vmul.f32 %v1681, %v1680
    %v1683 = vmul.f32 0.5, %v1682
    %v1684 = vsub.f32 1.5, %v1683
    %v1685 = vmul.f32 %v1680, %v1684
    %vm1686 = vweird.f32 %v1678
    %vm1687 = vweird.f32 %v1680
    %vm1688 = vmor %vm1686, %vm1687
    %v1689 = vsel %vm1688, %v1680, %v1685
    %v1690 = vrsqrt.pop %v1679
    %v1691 = vmul.f32 %v1690, %v1679
    %v1692 = vmul.f32 %v1691, %v1690
    %v1693 = vmul.f32 0.5, %v1692
    %v1694 = vsub.f32 1.5, %v1693
    %v1695 = vmul.f32 %v1690, %v1694
    %vm1696 = vweird.f32 %v1679
    %vm1697 = vweird.f32 %v1690
    %vm1698 = vmor %vm1696, %vm1697
    %v1699 = vsel %vm1698, %v1690, %v1695
    %v1700 = vmul.f32 %v1666, %v1689
    %v1701 = vmul.f32 %v1667, %v1699
    %v1702 = vld [vmem:[#allocation13 + $0x17] sm:$0x1]
    %v1703 = vperm.slane %v1702, 0
    %v1704 = vmul.f32 %v1700, %v1703
    %v1705 = vmul.f32 %v1701, %v1703
    %v1706 = vld [vmem:[#allocation13 + $0x21] sm:$0x1]
    %v1707 = vperm.slane %v1706, 0
    %v1708 = vadd.f32 %v1704, %v1707
    %v1709 = vadd.f32 %v1705, %v1707
    %v1710 = vld [vmem:[#allocation5] sm:$0xff]
    %v1711 = vld [vmem:[#allocation5 + $0x8] sm:$0xff]
    %s1712 = scalar_lea.vmem %s5, 64
    %v1713 = vld [vmem:[%s1712] sm:$0xff]
    %v1714 = vld [vmem:[%s1712 + $0x8] sm:$0xff]
    %v1715 = vld [vmem:[%s1712 + $0x10] sm:$0xff]
    %v1716 = vld [vmem:[%s1712 + $0x18] sm:$0xff]
    %v1717 = vld [vmem:[#allocation13 + $0x2] sm:$0x1]
    %v1718 = vperm.slane %v1717, 0
    %v1720 = vsel %vm196, %v1710, 0
    %v1723 = vsel %vm196, %v1711, 0
    %1725 = vmatpush.msra.mxu0 0.0
    %1726 = vmatpush.msra.mxu0 0.0
    %1727 = vmatpush.msra.mxu0 0.0
    %1728 = vmatpush.msra.mxu0 0.0
    %1729 = vmatpush.msra.mxu0 0.0
    %1730 = vmatpush.msra.mxu0 0.0
    %1731 = vmatpush.msra.mxu0 0.0
    %1732 = vmatpush.msra.mxu0 0.0
    %1733 = vmatpush.msra.mxu0 0.0
    %1734 = vmatpush.msra.mxu0 0.0
    %1735 = vmatpush.msra.mxu0 0.0
    %1736 = vmatpush.msra.mxu0 0.0
    %1737 = vmatpush.msra.mxu0 %v1716
    %1738 = vmatpush.msra.mxu0 %v1715
    %1739 = vmatpush.msra.mxu0 %v1714
    %1740 = vmatpush.msra.mxu0 %v1713
    %1741 = vmatmul.f32.gmra.mxu0 %v1720
    %v1742 = vpop.f32.mrf.mxu0
    %v1743 = vadd.f32 %v1718, %v1742
    %1744 = vmatmul.f32.gmra.mxu0 %v1723
    %v1745 = vpop.f32.mrf.mxu0
    %v1746 = vadd.f32 %v1718, %v1745
    %1747 = vdwg.mxu0
    %1750 = vrot.lane.b32.xlu0 %v1743, 120
    %v1751 = vpop.permute.xlu0 %1750
    %1752 = vrot.lane.b32.xlu0 %v1746, 120
    %v1753 = vpop.permute.xlu0 %1752
    %1754 = vrot.lane.b32.xlu0 %v1743, 112
    %v1755 = vpop.permute.xlu0 %1754
    %1756 = vrot.lane.b32.xlu0 %v1746, 112
    %v1757 = vpop.permute.xlu0 %1756
    %1758 = vrot.lane.b32.xlu0 %v1743, 104
    %v1759 = vpop.permute.xlu0 %1758
    %1760 = vrot.lane.b32.xlu0 %v1746, 104
    %v1761 = vpop.permute.xlu0 %1760
    %1762 = vrot.lane.b32.xlu0 %v1743, 96
    %v1763 = vpop.permute.xlu0 %1762
    %1764 = vrot.lane.b32.xlu0 %v1746, 96
    %v1765 = vpop.permute.xlu0 %1764
    %1766 = vrot.lane.b32.xlu0 %v1751, 96
    %v1767 = vpop.permute.xlu0 %1766
    %1768 = vrot.lane.b32.xlu0 %v1753, 96
    %v1769 = vpop.permute.xlu0 %1768
    %1770 = vrot.lane.b32.xlu0 %v1755, 96
    %v1771 = vpop.permute.xlu0 %1770
    %1772 = vrot.lane.b32.xlu0 %v1757, 96
    %v1773 = vpop.permute.xlu0 %1772
    %1774 = vrot.lane.b32.xlu0 %v1759, 96
    %v1775 = vpop.permute.xlu0 %1774
    %1776 = vrot.lane.b32.xlu0 %v1761, 96
    %v1777 = vpop.permute.xlu0 %1776
    %v1778 = vsel %vm256, %v1743, 0
    %v1780 = vsel %vm256, %v1746, 0
    %v1782 = vsel %vm256, %v1751, 0
    %v1784 = vsel %vm256, %v1753, 0
    %v1786 = vsel %vm256, %v1755, 0
    %v1788 = vsel %vm256, %v1757, 0
    %v1790 = vsel %vm256, %v1759, 0
    %v1792 = vsel %vm256, %v1761, 0
    %v1794 = vsel %vm256, %v1763, 0
    %v1796 = vsel %vm256, %v1765, 0
    %v1798 = vsel %vm256, %v1767, 0
    %v1800 = vsel %vm256, %v1769, 0
    %v1802 = vsel %vm256, %v1771, 0
    %v1804 = vsel %vm256, %v1773, 0
    %v1806 = vsel %vm256, %v1775, 0
    %v1808 = vsel %vm256, %v1777, 0
    %1810 = vmatpush.xpose.msra.mxu0 0.0
    %1811 = vmatpush.xpose.msra.mxu0 0.0
    %1812 = vmatpush.xpose.msra.mxu0 0.0
    %1813 = vmatpush.xpose.msra.mxu0 0.0
    %1814 = vmatpush.xpose.msra.mxu0 0.0
    %1815 = vmatpush.xpose.msra.mxu0 0.0
    %1816 = vmatpush.xpose.msra.mxu0 0.0
    %1817 = vmatpush.xpose.msra.mxu0 0.0
    %1818 = vmatpush.xpose.msra.mxu0 %v1808
    %1819 = vmatpush.xpose.msra.mxu0 %v1806
    %1820 = vmatpush.xpose.msra.mxu0 %v1804
    %1821 = vmatpush.xpose.msra.mxu0 %v1802
    %1822 = vmatpush.xpose.msra.mxu0 %v1800
    %1823 = vmatpush.xpose.msra.mxu0 %v1798
    %1824 = vmatpush.xpose.msra.mxu0 %v1796
    %1825 = vmatpush.xpose.msra.mxu0 %v1794
    %1826 = vmatmul.f32.gmra.mxu0 %v1778
    %v1827 = vpop.f32.mrf.mxu0
    %v1828 = vadd.f32 0.0, %v1827
    %1829 = vmatmul.f32.gmra.mxu0 %v1780
    %v1830 = vpop.f32.mrf.mxu0
    %v1831 = vadd.f32 0.0, %v1830
    %1832 = vmatmul.f32.gmra.mxu0 %v1782
    %v1833 = vpop.f32.mrf.mxu0
    %v1834 = vadd.f32 0.0, %v1833
    %1835 = vmatmul.f32.gmra.mxu0 %v1784
    %v1836 = vpop.f32.mrf.mxu0
    %v1837 = vadd.f32 0.0, %v1836
    %1838 = vmatmul.f32.gmra.mxu0 %v1786
    %v1839 = vpop.f32.mrf.mxu0
    %v1840 = vadd.f32 0.0, %v1839
    %1841 = vmatmul.f32.gmra.mxu0 %v1788
    %v1842 = vpop.f32.mrf.mxu0
    %v1843 = vadd.f32 0.0, %v1842
    %1844 = vmatmul.f32.gmra.mxu0 %v1790
    %v1845 = vpop.f32.mrf.mxu0
    %v1846 = vadd.f32 0.0, %v1845
    %1847 = vmatmul.f32.gmra.mxu0 %v1792
    %v1848 = vpop.f32.mrf.mxu0
    %v1849 = vadd.f32 0.0, %v1848
    %1850 = vdwg.mxu0
    %v1851 = vmul.f32 %v1828, 0.17677669
    %v1852 = vmul.f32 %v1831, 0.17677669
    %v1853 = vmul.f32 %v1834, 0.17677669
    %v1854 = vmul.f32 %v1837, 0.17677669
    %v1855 = vmul.f32 %v1840, 0.17677669
    %v1856 = vmul.f32 %v1843, 0.17677669
    %v1857 = vmul.f32 %v1846, 0.17677669
    %v1858 = vmul.f32 %v1849, 0.17677669
    %vm1859 = vcmp.gt.f32.partialorder %v172, 0.0
    %vm1860 = vcmp.gt.f32.partialorder %v173, 0.0
    %vm1861 = vcmp.gt.f32.partialorder %v174, 0.0
    %vm1862 = vcmp.gt.f32.partialorder %v175, 0.0
    %vm1863 = vcmp.gt.f32.partialorder %v176, 0.0
    %vm1864 = vcmp.gt.f32.partialorder %v177, 0.0
    %vm1865 = vcmp.gt.f32.partialorder %v178, 0.0
    %vm1866 = vcmp.gt.f32.partialorder %v179, 0.0
    %v1867 = vsel %vm1859, %v1851, %v172
    %v1868 = vsel %vm1860, %v1852, %v173
    %v1869 = vsel %vm1861, %v1853, %v174
    %v1870 = vsel %vm1862, %v1854, %v175
    %v1871 = vsel %vm1863, %v1855, %v176
    %v1872 = vsel %vm1864, %v1856, %v177
    %v1873 = vsel %vm1865, %v1857, %v178
    %v1874 = vsel %vm1866, %v1858, %v179
    %v1875 = vsel %vm354, %v1867, -inf
    %1876 = vmax.xlane.f32.xlu0 %v1875
    %v1877 = vpop.xlane.xlu0 %1876
    %v1878 = vsel %vm354, %v1868, -inf
    %1879 = vmax.xlane.f32.xlu0 %v1878
    %v1880 = vpop.xlane.xlu0 %1879
    %v1881 = vsel %vm354, %v1869, -inf
    %1882 = vmax.xlane.f32.xlu0 %v1881
    %v1883 = vpop.xlane.xlu0 %1882
    %v1884 = vsel %vm354, %v1870, -inf
    %1885 = vmax.xlane.f32.xlu0 %v1884
    %v1886 = vpop.xlane.xlu0 %1885
    %v1887 = vsel %vm354, %v1871, -inf
    %1888 = vmax.xlane.f32.xlu0 %v1887
    %v1889 = vpop.xlane.xlu0 %1888
    %v1890 = vsel %vm354, %v1872, -inf
    %1891 = vmax.xlane.f32.xlu0 %v1890
    %v1892 = vpop.xlane.xlu0 %1891
    %v1893 = vsel %vm354, %v1873, -inf
    %1894 = vmax.xlane.f32.xlu0 %v1893
    %v1895 = vpop.xlane.xlu0 %1894
    %v1896 = vsel %vm354, %v1874, -inf
    %1897 = vmax.xlane.f32.xlu0 %v1896
    %v1898 = vpop.xlane.xlu0 %1897
    %v1899 = vsub.f32 %v1867, %v1877
    %v1900 = vsub.f32 %v1868, %v1880
    %v1901 = vsub.f32 %v1869, %v1883
    %v1902 = vsub.f32 %v1870, %v1886
    %v1903 = vsub.f32 %v1871, %v1889
    %v1904 = vsub.f32 %v1872, %v1892
    %v1905 = vsub.f32 %v1873, %v1895
    %v1906 = vsub.f32 %v1874, %v1898
    %v1907 = vmul.f32 %v1899, 1.442695
    %v1908 = vpow.pop %v1907
    %v1909 = vmul.f32 %v1900, 1.442695
    %v1910 = vpow.pop %v1909
    %v1911 = vmul.f32 %v1901, 1.442695
    %v1912 = vpow.pop %v1911
    %v1913 = vmul.f32 %v1902, 1.442695
    %v1914 = vpow.pop %v1913
    %v1915 = vmul.f32 %v1903, 1.442695
    %v1916 = vpow.pop %v1915
    %v1917 = vmul.f32 %v1904, 1.442695
    %v1918 = vpow.pop %v1917
    %v1919 = vmul.f32 %v1905, 1.442695
    %v1920 = vpow.pop %v1919
    %v1921 = vmul.f32 %v1906, 1.442695
    %v1922 = vpow.pop %v1921
    %v1923 = vsel %vm354, %v1908, 0.0
    %1924 = vadd.xlane.f32.xlu0 %v1923
    %v1925 = vpop.xlane.xlu0 %1924
    %v1926 = vsel %vm354, %v1910, 0.0
    %1927 = vadd.xlane.f32.xlu0 %v1926
    %v1928 = vpop.xlane.xlu0 %1927
    %v1929 = vsel %vm354, %v1912, 0.0
    %1930 = vadd.xlane.f32.xlu0 %v1929
    %v1931 = vpop.xlane.xlu0 %1930
    %v1932 = vsel %vm354, %v1914, 0.0
    %1933 = vadd.xlane.f32.xlu0 %v1932
    %v1934 = vpop.xlane.xlu0 %1933
    %v1935 = vsel %vm354, %v1916, 0.0
    %1936 = vadd.xlane.f32.xlu0 %v1935
    %v1937 = vpop.xlane.xlu0 %1936
    %v1938 = vsel %vm354, %v1918, 0.0
    %1939 = vadd.xlane.f32.xlu0 %v1938
    %v1940 = vpop.xlane.xlu0 %1939
    %v1941 = vsel %vm354, %v1920, 0.0
    %1942 = vadd.xlane.f32.xlu0 %v1941
    %v1943 = vpop.xlane.xlu0 %1942
    %v1944 = vsel %vm354, %v1922, 0.0
    %1945 = vadd.xlane.f32.xlu0 %v1944
    %v1946 = vpop.xlane.xlu0 %1945
    %v1947 = vrcp.pop %v1925
    %v1948 = vmul.f32 %v1925, %v1947
    %v1949 = vsub.f32 1.0, %v1948
    %v1950 = vmul.f32 %v1947, %v1949
    %v1951 = vadd.f32 %v1947, %v1950
    %vm1952 = vweird.f32 %v1925
    %vm1953 = vweird.f32 %v1947
    %vm1954 = vmor %vm1952, %vm1953
    %v1955 = vsel %vm1954, %v1947, %v1951
    %v1956 = vand.u32 2147483647, %v1925
    %vm1957 = vcmp.eq.f32.partialorder %v1956, 8.507059e+37
    %v1958 = vand.u32 %v1925, 2147483648
    %v1959 = vor.u32 1.1754944e-38, %v1958
    %v1960 = vsel %vm1957, %v1959, %v1955
    %v1961 = vrcp.pop %v1928
    %v1962 = vmul.f32 %v1928, %v1961
    %v1963 = vsub.f32 1.0, %v1962
    %v1964 = vmul.f32 %v1961, %v1963
    %v1965 = vadd.f32 %v1961, %v1964
    %vm1966 = vweird.f32 %v1928
    %vm1967 = vweird.f32 %v1961
    %vm1968 = vmor %vm1966, %vm1967
    %v1969 = vsel %vm1968, %v1961, %v1965
    %v1970 = vand.u32 2147483647, %v1928
    %vm1971 = vcmp.eq.f32.partialorder %v1970, 8.507059e+37
    %v1972 = vand.u32 %v1928, 2147483648
    %v1973 = vor.u32 1.1754944e-38, %v1972
    %v1974 = vsel %vm1971, %v1973, %v1969
    %v1975 = vrcp.pop %v1931
    %v1976 = vmul.f32 %v1931, %v1975
    %v1977 = vsub.f32 1.0, %v1976
    %v1978 = vmul.f32 %v1975, %v1977
    %v1979 = vadd.f32 %v1975, %v1978
    %vm1980 = vweird.f32 %v1931
    %vm1981 = vweird.f32 %v1975
    %vm1982 = vmor %vm1980, %vm1981
    %v1983 = vsel %vm1982, %v1975, %v1979
    %v1984 = vand.u32 2147483647, %v1931
    %vm1985 = vcmp.eq.f32.partialorder %v1984, 8.507059e+37
    %v1986 = vand.u32 %v1931, 2147483648
    %v1987 = vor.u32 1.1754944e-38, %v1986
    %v1988 = vsel %vm1985, %v1987, %v1983
    %v1989 = vrcp.pop %v1934
    %v1990 = vmul.f32 %v1934, %v1989
    %v1991 = vsub.f32 1.0, %v1990
    %v1992 = vmul.f32 %v1989, %v1991
    %v1993 = vadd.f32 %v1989, %v1992
    %vm1994 = vweird.f32 %v1934
    %vm1995 = vweird.f32 %v1989
    %vm1996 = vmor %vm1994, %vm1995
    %v1997 = vsel %vm1996, %v1989, %v1993
    %v1998 = vand.u32 2147483647, %v1934
    %vm1999 = vcmp.eq.f32.partialorder %v1998, 8.507059e+37
    %v2000 = vand.u32 %v1934, 2147483648
    %v2001 = vor.u32 1.1754944e-38, %v2000
    %v2002 = vsel %vm1999, %v2001, %v1997
    %v2003 = vrcp.pop %v1937
    %v2004 = vmul.f32 %v1937, %v2003
    %v2005 = vsub.f32 1.0, %v2004
    %v2006 = vmul.f32 %v2003, %v2005
    %v2007 = vadd.f32 %v2003, %v2006
    %vm2008 = vweird.f32 %v1937
    %vm2009 = vweird.f32 %v2003
    %vm2010 = vmor %vm2008, %vm2009
    %v2011 = vsel %vm2010, %v2003, %v2007
    %v2012 = vand.u32 2147483647, %v1937
    %vm2013 = vcmp.eq.f32.partialorder %v2012, 8.507059e+37
    %v2014 = vand.u32 %v1937, 2147483648
    %v2015 = vor.u32 1.1754944e-38, %v2014
    %v2016 = vsel %vm2013, %v2015, %v2011
    %v2017 = vrcp.pop %v1940
    %v2018 = vmul.f32 %v1940, %v2017
    %v2019 = vsub.f32 1.0, %v2018
    %v2020 = vmul.f32 %v2017, %v2019
    %v2021 = vadd.f32 %v2017, %v2020
    %vm2022 = vweird.f32 %v1940
    %vm2023 = vweird.f32 %v2017
    %vm2024 = vmor %vm2022, %vm2023
    %v2025 = vsel %vm2024, %v2017, %v2021
    %v2026 = vand.u32 2147483647, %v1940
    %vm2027 = vcmp.eq.f32.partialorder %v2026, 8.507059e+37
    %v2028 = vand.u32 %v1940, 2147483648
    %v2029 = vor.u32 1.1754944e-38, %v2028
    %v2030 = vsel %vm2027, %v2029, %v2025
    %v2031 = vrcp.pop %v1943
    %v2032 = vmul.f32 %v1943, %v2031
    %v2033 = vsub.f32 1.0, %v2032
    %v2034 = vmul.f32 %v2031, %v2033
    %v2035 = vadd.f32 %v2031, %v2034
    %vm2036 = vweird.f32 %v1943
    %vm2037 = vweird.f32 %v2031
    %vm2038 = vmor %vm2036, %vm2037
    %v2039 = vsel %vm2038, %v2031, %v2035
    %v2040 = vand.u32 2147483647, %v1943
    %vm2041 = vcmp.eq.f32.partialorder %v2040, 8.507059e+37
    %v2042 = vand.u32 %v1943, 2147483648
    %v2043 = vor.u32 1.1754944e-38, %v2042
    %v2044 = vsel %vm2041, %v2043, %v2039
    %v2045 = vrcp.pop %v1946
    %v2046 = vmul.f32 %v1946, %v2045
    %v2047 = vsub.f32 1.0, %v2046
    %v2048 = vmul.f32 %v2045, %v2047
    %v2049 = vadd.f32 %v2045, %v2048
    %vm2050 = vweird.f32 %v1946
    %vm2051 = vweird.f32 %v2045
    %vm2052 = vmor %vm2050, %vm2051
    %v2053 = vsel %vm2052, %v2045, %v2049
    %v2054 = vand.u32 2147483647, %v1946
    %vm2055 = vcmp.eq.f32.partialorder %v2054, 8.507059e+37
    %v2056 = vand.u32 %v1946, 2147483648
    %v2057 = vor.u32 1.1754944e-38, %v2056
    %v2058 = vsel %vm2055, %v2057, %v2053
    %v2059 = vmul.f32 %v1908, %v1960
    %v2060 = vmul.f32 %v1910, %v1974
    %v2061 = vmul.f32 %v1912, %v1988
    %v2062 = vmul.f32 %v1914, %v2002
    %v2063 = vmul.f32 %v1916, %v2016
    %v2064 = vmul.f32 %v1918, %v2030
    %v2065 = vmul.f32 %v1920, %v2044
    %v2066 = vmul.f32 %v1922, %v2058
    %2067 = vrot.lane.b32.xlu0 %v1743, 64
    %v2068 = vpop.permute.xlu0 %2067
    %2069 = vrot.lane.b32.xlu0 %v1746, 64
    %v2070 = vpop.permute.xlu0 %2069
    %2071 = vrot.lane.b32.xlu0 %v1751, 64
    %v2072 = vpop.permute.xlu0 %2071
    %2073 = vrot.lane.b32.xlu0 %v1753, 64
    %v2074 = vpop.permute.xlu0 %2073
    %2075 = vrot.lane.b32.xlu0 %v1755, 64
    %v2076 = vpop.permute.xlu0 %2075
    %2077 = vrot.lane.b32.xlu0 %v1757, 64
    %v2078 = vpop.permute.xlu0 %2077
    %2079 = vrot.lane.b32.xlu0 %v1759, 64
    %v2080 = vpop.permute.xlu0 %2079
    %2081 = vrot.lane.b32.xlu0 %v1761, 64
    %v2082 = vpop.permute.xlu0 %2081
    %v2092 = vsel %vm354, %v2059, 0
    %v2095 = vsel %vm354, %v2060, 0
    %v2098 = vsel %vm354, %v2061, 0
    %v2101 = vsel %vm354, %v2062, 0
    %v2104 = vsel %vm354, %v2063, 0
    %v2107 = vsel %vm354, %v2064, 0
    %v2110 = vsel %vm354, %v2065, 0
    %v2113 = vsel %vm354, %v2066, 0
    %2115 = vmatpush.msra.mxu0 0.0
    %2116 = vmatpush.msra.mxu0 0.0
    %2117 = vmatpush.msra.mxu0 0.0
    %2118 = vmatpush.msra.mxu0 0.0
    %2119 = vmatpush.msra.mxu0 0.0
    %2120 = vmatpush.msra.mxu0 0.0
    %2121 = vmatpush.msra.mxu0 0.0
    %2122 = vmatpush.msra.mxu0 0.0
    %2123 = vmatpush.msra.mxu0 %v2082
    %2124 = vmatpush.msra.mxu0 %v2080
    %2125 = vmatpush.msra.mxu0 %v2078
    %2126 = vmatpush.msra.mxu0 %v2076
    %2127 = vmatpush.msra.mxu0 %v2074
    %2128 = vmatpush.msra.mxu0 %v2072
    %2129 = vmatpush.msra.mxu0 %v2070
    %2130 = vmatpush.msra.mxu0 %v2068
    %2131 = vmatmul.f32.gmra.mxu0 %v2092
    %v2132 = vpop.f32.mrf.mxu0
    %v2133 = vadd.f32 0.0, %v2132
    %2134 = vmatmul.f32.gmra.mxu0 %v2095
    %v2135 = vpop.f32.mrf.mxu0
    %v2136 = vadd.f32 0.0, %v2135
    %2137 = vmatmul.f32.gmra.mxu0 %v2098
    %v2138 = vpop.f32.mrf.mxu0
    %v2139 = vadd.f32 0.0, %v2138
    %2140 = vmatmul.f32.gmra.mxu0 %v2101
    %v2141 = vpop.f32.mrf.mxu0
    %v2142 = vadd.f32 0.0, %v2141
    %2143 = vmatmul.f32.gmra.mxu0 %v2104
    %v2144 = vpop.f32.mrf.mxu0
    %v2145 = vadd.f32 0.0, %v2144
    %2146 = vmatmul.f32.gmra.mxu0 %v2107
    %v2147 = vpop.f32.mrf.mxu0
    %v2148 = vadd.f32 0.0, %v2147
    %2149 = vmatmul.f32.gmra.mxu0 %v2110
    %v2150 = vpop.f32.mrf.mxu0
    %v2151 = vadd.f32 0.0, %v2150
    %2152 = vmatmul.f32.gmra.mxu0 %v2113
    %v2153 = vpop.f32.mrf.mxu0
    %v2154 = vadd.f32 0.0, %v2153
    %2155 = vdwg.mxu0
    %s2156 = scalar_lea.vmem %s6, 64
    %v2157 = vld [vmem:[%s2156] sm:$0xff]
    %v2158 = vld [vmem:[%s2156 + $0x8] sm:$0xff]
    %v2159 = vld [vmem:[%s2156 + $0x10] sm:$0xff]
    %v2160 = vld [vmem:[%s2156 + $0x18] sm:$0xff]
    %v2161 = vld [vmem:[#allocation13 + $0x8] sm:$0x1]
    %v2163 = vsel %vm256, %v2133, 0
    %v2166 = vsel %vm256, %v2136, 0
    %2168 = vmatpush.msra.mxu0 0.0
    %2169 = vmatpush.msra.mxu0 0.0
    %2170 = vmatpush.msra.mxu0 0.0
    %2171 = vmatpush.msra.mxu0 0.0
    %2172 = vmatpush.msra.mxu0 0.0
    %2173 = vmatpush.msra.mxu0 0.0
    %2174 = vmatpush.msra.mxu0 0.0
    %2175 = vmatpush.msra.mxu0 0.0
    %2176 = vmatpush.msra.mxu0 0.0
    %2177 = vmatpush.msra.mxu0 0.0
    %2178 = vmatpush.msra.mxu0 0.0
    %2179 = vmatpush.msra.mxu0 0.0
    %2180 = vmatpush.msra.mxu0 0.0
    %2181 = vmatpush.msra.mxu0 0.0
    %2182 = vmatpush.msra.mxu0 0.0
    %2183 = vmatpush.msra.mxu0 %v2157
    %2184 = vmatmul.f32.gmra.mxu0 %v2163
    %v2185 = vpop.f32.mrf.mxu0
    %v2186 = vadd.f32 0.0, %v2185
    %2187 = vmatmul.f32.gmra.mxu0 %v2166
    %v2188 = vpop.f32.mrf.mxu0
    %v2189 = vadd.f32 0.0, %v2188
    %2190 = vdwg.mxu0
    %v2191 = vperm.slane %v2161, 0
    %v2192 = vadd.f32 %v2191, %v2186
    %v2193 = vadd.f32 %v2191, %v2189
    %v2195 = vsel %vm256, %v2139, 0
    %v2198 = vsel %vm256, %v2142, 0
    %2200 = vmatpush.msra.mxu0 0.0
    %2201 = vmatpush.msra.mxu0 0.0
    %2202 = vmatpush.msra.mxu0 0.0
    %2203 = vmatpush.msra.mxu0 0.0
    %2204 = vmatpush.msra.mxu0 0.0
    %2205 = vmatpush.msra.mxu0 0.0
    %2206 = vmatpush.msra.mxu0 0.0
    %2207 = vmatpush.msra.mxu0 0.0
    %2208 = vmatpush.msra.mxu0 0.0
    %2209 = vmatpush.msra.mxu0 0.0
    %2210 = vmatpush.msra.mxu0 0.0
    %2211 = vmatpush.msra.mxu0 0.0
    %2212 = vmatpush.msra.mxu0 0.0
    %2213 = vmatpush.msra.mxu0 0.0
    %2214 = vmatpush.msra.mxu0 0.0
    %2215 = vmatpush.msra.mxu0 %v2158
    %2216 = vmatmul.f32.gmra.mxu0 %v2195
    %v2217 = vpop.f32.mrf.mxu0
    %v2218 = vadd.f32 0.0, %v2217
    %2219 = vmatmul.f32.gmra.mxu0 %v2198
    %v2220 = vpop.f32.mrf.mxu0
    %v2221 = vadd.f32 0.0, %v2220
    %2222 = vdwg.mxu0
    %v2223 = vadd.f32 %v2192, %v2218
    %v2224 = vadd.f32 %v2193, %v2221
    %v2226 = vsel %vm256, %v2145, 0
    %v2229 = vsel %vm256, %v2148, 0
    %2231 = vmatpush.msra.mxu0 0.0
    %2232 = vmatpush.msra.mxu0 0.0
    %2233 = vmatpush.msra.mxu0 0.0
    %2234 = vmatpush.msra.mxu0 0.0
    %2235 = vmatpush.msra.mxu0 0.0
    %2236 = vmatpush.msra.mxu0 0.0
    %2237 = vmatpush.msra.mxu0 0.0
    %2238 = vmatpush.msra.mxu0 0.0
    %2239 = vmatpush.msra.mxu0 0.0
    %2240 = vmatpush.msra.mxu0 0.0
    %2241 = vmatpush.msra.mxu0 0.0
    %2242 = vmatpush.msra.mxu0 0.0
    %2243 = vmatpush.msra.mxu0 0.0
    %2244 = vmatpush.msra.mxu0 0.0
    %2245 = vmatpush.msra.mxu0 0.0
    %2246 = vmatpush.msra.mxu0 %v2159
    %2247 = vmatmul.f32.gmra.mxu0 %v2226
    %v2248 = vpop.f32.mrf.mxu0
    %v2249 = vadd.f32 0.0, %v2248
    %2250 = vmatmul.f32.gmra.mxu0 %v2229
    %v2251 = vpop.f32.mrf.mxu0
    %v2252 = vadd.f32 0.0, %v2251
    %2253 = vdwg.mxu0
    %v2254 = vadd.f32 %v2223, %v2249
    %v2255 = vadd.f32 %v2224, %v2252
    %v2257 = vsel %vm256, %v2151, 0
    %v2260 = vsel %vm256, %v2154, 0
    %2262 = vmatpush.msra.mxu0 0.0
    %2263 = vmatpush.msra.mxu0 0.0
    %2264 = vmatpush.msra.mxu0 0.0
    %2265 = vmatpush.msra.mxu0 0.0
    %2266 = vmatpush.msra.mxu0 0.0
    %2267 = vmatpush.msra.mxu0 0.0
    %2268 = vmatpush.msra.mxu0 0.0
    %2269 = vmatpush.msra.mxu0 0.0
    %2270 = vmatpush.msra.mxu0 0.0
    %2271 = vmatpush.msra.mxu0 0.0
    %2272 = vmatpush.msra.mxu0 0.0
    %2273 = vmatpush.msra.mxu0 0.0
    %2274 = vmatpush.msra.mxu0 0.0
    %2275 = vmatpush.msra.mxu0 0.0
    %2276 = vmatpush.msra.mxu0 0.0
    %2277 = vmatpush.msra.mxu0 %v2160
    %2278 = vmatmul.f32.gmra.mxu0 %v2257
    %v2279 = vpop.f32.mrf.mxu0
    %v2280 = vadd.f32 0.0, %v2279
    %2281 = vmatmul.f32.gmra.mxu0 %v2260
    %v2282 = vpop.f32.mrf.mxu0
    %v2283 = vadd.f32 0.0, %v2282
    %2284 = vdwg.mxu0
    %v2285 = vadd.f32 %v2254, %v2280
    %v2286 = vadd.f32 %v2255, %v2283
    %v2287 = vadd.f32 %v1710, %v2285
    %v2288 = vadd.f32 %v1711, %v2286
    %v2289 = vsel %vm196, %v2287, 0.0
    %2290 = vadd.xlane.f32.xlu0 %v2289
    %v2291 = vpop.xlane.xlu0 %2290
    %v2292 = vsel %vm196, %v2288, 0.0
    %2293 = vadd.xlane.f32.xlu0 %v2292
    %v2294 = vpop.xlane.xlu0 %2293
    %v2295 = vmul.f32 %v2291, %v780
    %v2296 = vmul.f32 %v2294, %v780
    %v2297 = vsub.f32 %v2287, %v2295
    %v2298 = vsub.f32 %v2288, %v2296
    %v2299 = vmul.f32 %v2297, %v2297
    %v2300 = vmul.f32 %v2298, %v2298
    %v2301 = vsel %vm196, %v2299, 0.0
    %2302 = vadd.xlane.f32.xlu0 %v2301
    %v2303 = vpop.xlane.xlu0 %2302
    %v2304 = vsel %vm196, %v2300, 0.0
    %2305 = vadd.xlane.f32.xlu0 %v2304
    %v2306 = vpop.xlane.xlu0 %2305
    %v2307 = vmul.f32 %v2303, %v780
    %v2308 = vmul.f32 %v2306, %v780
    %v2309 = vadd.f32 %v2307, 1e-05
    %v2310 = vadd.f32 %v2308, 1e-05
    %v2311 = vrsqrt.pop %v2309
    %v2312 = vmul.f32 %v2311, %v2309
    %v2313 = vmul.f32 %v2312, %v2311
    %v2314 = vmul.f32 0.5, %v2313
    %v2315 = vsub.f32 1.5, %v2314
    %v2316 = vmul.f32 %v2311, %v2315
    %vm2317 = vweird.f32 %v2309
    %vm2318 = vweird.f32 %v2311
    %vm2319 = vmor %vm2317, %vm2318
    %v2320 = vsel %vm2319, %v2311, %v2316
    %v2321 = vrsqrt.pop %v2310
    %v2322 = vmul.f32 %v2321, %v2310
    %v2323 = vmul.f32 %v2322, %v2321
    %v2324 = vmul.f32 0.5, %v2323
    %v2325 = vsub.f32 1.5, %v2324
    %v2326 = vmul.f32 %v2321, %v2325
    %vm2327 = vweird.f32 %v2310
    %vm2328 = vweird.f32 %v2321
    %vm2329 = vmor %vm2327, %vm2328
    %v2330 = vsel %vm2329, %v2321, %v2326
    %v2331 = vmul.f32 %v2297, %v2320
    %v2332 = vmul.f32 %v2298, %v2330
    %v2333 = vld [vmem:[#allocation13 + $0x18] sm:$0x1]
    %v2334 = vperm.slane %v2333, 0
    %v2335 = vmul.f32 %v2331, %v2334
    %v2336 = vmul.f32 %v2332, %v2334
    %v2337 = vld [vmem:[#allocation13 + $0x22] sm:$0x1]
    %v2338 = vperm.slane %v2337, 0
    %v2339 = vadd.f32 %v2335, %v2338
    %v2340 = vadd.f32 %v2336, %v2338
    %s2341 = scalar_lea.vmem %s5, 96
    %v2342 = vld [vmem:[%s2341] sm:$0xff]
    %v2343 = vld [vmem:[%s2341 + $0x8] sm:$0xff]
    %v2344 = vld [vmem:[%s2341 + $0x10] sm:$0xff]
    %v2345 = vld [vmem:[%s2341 + $0x18] sm:$0xff]
    %v2346 = vld [vmem:[#allocation13 + $0x3] sm:$0x1]
    %v2347 = vperm.slane %v2346, 0
    %v2349 = vsel %vm196, %v2339, 0
    %v2352 = vsel %vm196, %v2340, 0
    %2354 = vmatpush.msra.mxu0 0.0
    %2355 = vmatpush.msra.mxu0 0.0
    %2356 = vmatpush.msra.mxu0 0.0
    %2357 = vmatpush.msra.mxu0 0.0
    %2358 = vmatpush.msra.mxu0 0.0
    %2359 = vmatpush.msra.mxu0 0.0
    %2360 = vmatpush.msra.mxu0 0.0
    %2361 = vmatpush.msra.mxu0 0.0
    %2362 = vmatpush.msra.mxu0 0.0
    %2363 = vmatpush.msra.mxu0 0.0
    %2364 = vmatpush.msra.mxu0 0.0
    %2365 = vmatpush.msra.mxu0 0.0
    %2366 = vmatpush.msra.mxu0 %v2345
    %2367 = vmatpush.msra.mxu0 %v2344
    %2368 = vmatpush.msra.mxu0 %v2343
    %2369 = vmatpush.msra.mxu0 %v2342
    %2370 = vmatmul.f32.gmra.mxu0 %v2349
    %v2371 = vpop.f32.mrf.mxu0
    %v2372 = vadd.f32 %v2347, %v2371
    %2373 = vmatmul.f32.gmra.mxu0 %v2352
    %v2374 = vpop.f32.mrf.mxu0
    %v2375 = vadd.f32 %v2347, %v2374
    %2376 = vdwg.mxu0
    %v2378 = vsel %vm196, %v1708, 0
    %v2381 = vsel %vm196, %v1709, 0
    %2383 = vmatpush.msra.mxu0 0.0
    %2384 = vmatpush.msra.mxu0 0.0
    %2385 = vmatpush.msra.mxu0 0.0
    %2386 = vmatpush.msra.mxu0 0.0
    %2387 = vmatpush.msra.mxu0 0.0
    %2388 = vmatpush.msra.mxu0 0.0
    %2389 = vmatpush.msra.mxu0 0.0
    %2390 = vmatpush.msra.mxu0 0.0
    %2391 = vmatpush.msra.mxu0 0.0
    %2392 = vmatpush.msra.mxu0 0.0
    %2393 = vmatpush.msra.mxu0 0.0
    %2394 = vmatpush.msra.mxu0 0.0
    %2395 = vmatpush.msra.mxu0 %v2345
    %2396 = vmatpush.msra.mxu0 %v2344
    %2397 = vmatpush.msra.mxu0 %v2343
    %2398 = vmatpush.msra.mxu0 %v2342
    %2399 = vmatmul.f32.gmra.mxu0 %v2378
    %v2400 = vpop.f32.mrf.mxu0
    %v2401 = vadd.f32 %v2347, %v2400
    %2402 = vmatmul.f32.gmra.mxu0 %v2381
    %v2403 = vpop.f32.mrf.mxu0
    %v2404 = vadd.f32 %v2347, %v2403
    %2405 = vdwg.mxu0
    %2408 = vrot.lane.b32.xlu0 %v2372, 120
    %v2409 = vpop.permute.xlu0 %2408
    %2410 = vrot.lane.b32.xlu0 %v2375, 120
    %v2411 = vpop.permute.xlu0 %2410
    %2412 = vrot.lane.b32.xlu0 %v2372, 112
    %v2413 = vpop.permute.xlu0 %2412
    %2414 = vrot.lane.b32.xlu0 %v2375, 112
    %v2415 = vpop.permute.xlu0 %2414
    %2416 = vrot.lane.b32.xlu0 %v2372, 104
    %v2417 = vpop.permute.xlu0 %2416
    %2418 = vrot.lane.b32.xlu0 %v2375, 104
    %v2419 = vpop.permute.xlu0 %2418
    %2422 = vrot.lane.b32.xlu0 %v2401, 120
    %v2423 = vpop.permute.xlu0 %2422
    %2424 = vrot.lane.b32.xlu0 %v2404, 120
    %v2425 = vpop.permute.xlu0 %2424
    %2426 = vrot.lane.b32.xlu0 %v2401, 112
    %v2427 = vpop.permute.xlu0 %2426
    %2428 = vrot.lane.b32.xlu0 %v2404, 112
    %v2429 = vpop.permute.xlu0 %2428
    %2430 = vrot.lane.b32.xlu0 %v2401, 104
    %v2431 = vpop.permute.xlu0 %2430
    %2432 = vrot.lane.b32.xlu0 %v2404, 104
    %v2433 = vpop.permute.xlu0 %2432
    %2434 = vrot.lane.b32.xlu0 %v2401, 96
    %v2435 = vpop.permute.xlu0 %2434
    %2436 = vrot.lane.b32.xlu0 %v2404, 96
    %v2437 = vpop.permute.xlu0 %2436
    %2438 = vrot.lane.b32.xlu0 %v2423, 96
    %v2439 = vpop.permute.xlu0 %2438
    %2440 = vrot.lane.b32.xlu0 %v2425, 96
    %v2441 = vpop.permute.xlu0 %2440
    %2442 = vrot.lane.b32.xlu0 %v2427, 96
    %v2443 = vpop.permute.xlu0 %2442
    %2444 = vrot.lane.b32.xlu0 %v2429, 96
    %v2445 = vpop.permute.xlu0 %2444
    %2446 = vrot.lane.b32.xlu0 %v2431, 96
    %v2447 = vpop.permute.xlu0 %2446
    %2448 = vrot.lane.b32.xlu0 %v2433, 96
    %v2449 = vpop.permute.xlu0 %2448
    %v2450 = vsel %vm256, %v2372, 0
    %v2452 = vsel %vm256, %v2375, 0
    %v2454 = vsel %vm256, %v2409, 0
    %v2456 = vsel %vm256, %v2411, 0
    %v2458 = vsel %vm256, %v2413, 0
    %v2460 = vsel %vm256, %v2415, 0
    %v2462 = vsel %vm256, %v2417, 0
    %v2464 = vsel %vm256, %v2419, 0
    %v2466 = vsel %vm256, %v2435, 0
    %v2468 = vsel %vm256, %v2437, 0
    %v2470 = vsel %vm256, %v2439, 0
    %v2472 = vsel %vm256, %v2441, 0
    %v2474 = vsel %vm256, %v2443, 0
    %v2476 = vsel %vm256, %v2445, 0
    %v2478 = vsel %vm256, %v2447, 0
    %v2480 = vsel %vm256, %v2449, 0
    %2482 = vmatpush.xpose.msra.mxu0 0.0
    %2483 = vmatpush.xpose.msra.mxu0 0.0
    %2484 = vmatpush.xpose.msra.mxu0 0.0
    %2485 = vmatpush.xpose.msra.mxu0 0.0
    %2486 = vmatpush.xpose.msra.mxu0 0.0
    %2487 = vmatpush.xpose.msra.mxu0 0.0
    %2488 = vmatpush.xpose.msra.mxu0 0.0
    %2489 = vmatpush.xpose.msra.mxu0 0.0
    %2490 = vmatpush.xpose.msra.mxu0 %v2480
    %2491 = vmatpush.xpose.msra.mxu0 %v2478
    %2492 = vmatpush.xpose.msra.mxu0 %v2476
    %2493 = vmatpush.xpose.msra.mxu0 %v2474
    %2494 = vmatpush.xpose.msra.mxu0 %v2472
    %2495 = vmatpush.xpose.msra.mxu0 %v2470
    %2496 = vmatpush.xpose.msra.mxu0 %v2468
    %2497 = vmatpush.xpose.msra.mxu0 %v2466
    %2498 = vmatmul.f32.gmra.mxu0 %v2450
    %v2499 = vpop.f32.mrf.mxu0
    %v2500 = vadd.f32 0.0, %v2499
    %2501 = vmatmul.f32.gmra.mxu0 %v2452
    %v2502 = vpop.f32.mrf.mxu0
    %v2503 = vadd.f32 0.0, %v2502
    %2504 = vmatmul.f32.gmra.mxu0 %v2454
    %v2505 = vpop.f32.mrf.mxu0
    %v2506 = vadd.f32 0.0, %v2505
    %2507 = vmatmul.f32.gmra.mxu0 %v2456
    %v2508 = vpop.f32.mrf.mxu0
    %v2509 = vadd.f32 0.0, %v2508
    %2510 = vmatmul.f32.gmra.mxu0 %v2458
    %v2511 = vpop.f32.mrf.mxu0
    %v2512 = vadd.f32 0.0, %v2511
    %2513 = vmatmul.f32.gmra.mxu0 %v2460
    %v2514 = vpop.f32.mrf.mxu0
    %v2515 = vadd.f32 0.0, %v2514
    %2516 = vmatmul.f32.gmra.mxu0 %v2462
    %v2517 = vpop.f32.mrf.mxu0
    %v2518 = vadd.f32 0.0, %v2517
    %2519 = vmatmul.f32.gmra.mxu0 %v2464
    %v2520 = vpop.f32.mrf.mxu0
    %v2521 = vadd.f32 0.0, %v2520
    %2522 = vdwg.mxu0
    %v2523 = vmul.f32 %v2500, 0.17677669
    %v2524 = vmul.f32 %v2503, 0.17677669
    %v2525 = vmul.f32 %v2506, 0.17677669
    %v2526 = vmul.f32 %v2509, 0.17677669
    %v2527 = vmul.f32 %v2512, 0.17677669
    %v2528 = vmul.f32 %v2515, 0.17677669
    %v2529 = vmul.f32 %v2518, 0.17677669
    %v2530 = vmul.f32 %v2521, 0.17677669
    %vm2531 = vcmp.gt.f32.partialorder %v180, 0.0
    %vm2532 = vcmp.gt.f32.partialorder %v181, 0.0
    %vm2533 = vcmp.gt.f32.partialorder %v182, 0.0
    %vm2534 = vcmp.gt.f32.partialorder %v183, 0.0
    %vm2535 = vcmp.gt.f32.partialorder %v184, 0.0
    %vm2536 = vcmp.gt.f32.partialorder %v185, 0.0
    %vm2537 = vcmp.gt.f32.partialorder %v186, 0.0
    %vm2538 = vcmp.gt.f32.partialorder %v187, 0.0
    %v2539 = vsel %vm2531, %v2523, %v180
    %v2540 = vsel %vm2532, %v2524, %v181
    %v2541 = vsel %vm2533, %v2525, %v182
    %v2542 = vsel %vm2534, %v2526, %v183
    %v2543 = vsel %vm2535, %v2527, %v184
    %v2544 = vsel %vm2536, %v2528, %v185
    %v2545 = vsel %vm2537, %v2529, %v186
    %v2546 = vsel %vm2538, %v2530, %v187
    %v2547 = vsel %vm354, %v2539, -inf
    %2548 = vmax.xlane.f32.xlu0 %v2547
    %v2549 = vpop.xlane.xlu0 %2548
    %v2550 = vsel %vm354, %v2540, -inf
    %2551 = vmax.xlane.f32.xlu0 %v2550
    %v2552 = vpop.xlane.xlu0 %2551
    %v2553 = vsel %vm354, %v2541, -inf
    %2554 = vmax.xlane.f32.xlu0 %v2553
    %v2555 = vpop.xlane.xlu0 %2554
    %v2556 = vsel %vm354, %v2542, -inf
    %2557 = vmax.xlane.f32.xlu0 %v2556
    %v2558 = vpop.xlane.xlu0 %2557
    %v2559 = vsel %vm354, %v2543, -inf
    %2560 = vmax.xlane.f32.xlu0 %v2559
    %v2561 = vpop.xlane.xlu0 %2560
    %v2562 = vsel %vm354, %v2544, -inf
    %2563 = vmax.xlane.f32.xlu0 %v2562
    %v2564 = vpop.xlane.xlu0 %2563
    %v2565 = vsel %vm354, %v2545, -inf
    %2566 = vmax.xlane.f32.xlu0 %v2565
    %v2567 = vpop.xlane.xlu0 %2566
    %v2568 = vsel %vm354, %v2546, -inf
    %2569 = vmax.xlane.f32.xlu0 %v2568
    %v2570 = vpop.xlane.xlu0 %2569
    %v2571 = vsub.f32 %v2539, %v2549
    %v2572 = vsub.f32 %v2540, %v2552
    %v2573 = vsub.f32 %v2541, %v2555
    %v2574 = vsub.f32 %v2542, %v2558
    %v2575 = vsub.f32 %v2543, %v2561
    %v2576 = vsub.f32 %v2544, %v2564
    %v2577 = vsub.f32 %v2545, %v2567
    %v2578 = vsub.f32 %v2546, %v2570
    %v2579 = vmul.f32 %v2571, 1.442695
    %v2580 = vpow.pop %v2579
    %v2581 = vmul.f32 %v2572, 1.442695
    %v2582 = vpow.pop %v2581
    %v2583 = vmul.f32 %v2573, 1.442695
    %v2584 = vpow.pop %v2583
    %v2585 = vmul.f32 %v2574, 1.442695
    %v2586 = vpow.pop %v2585
    %v2587 = vmul.f32 %v2575, 1.442695
    %v2588 = vpow.pop %v2587
    %v2589 = vmul.f32 %v2576, 1.442695
    %v2590 = vpow.pop %v2589
    %v2591 = vmul.f32 %v2577, 1.442695
    %v2592 = vpow.pop %v2591
    %v2593 = vmul.f32 %v2578, 1.442695
    %v2594 = vpow.pop %v2593
    %v2595 = vsel %vm354, %v2580, 0.0
    %2596 = vadd.xlane.f32.xlu0 %v2595
    %v2597 = vpop.xlane.xlu0 %2596
    %v2598 = vsel %vm354, %v2582, 0.0
    %2599 = vadd.xlane.f32.xlu0 %v2598
    %v2600 = vpop.xlane.xlu0 %2599
    %v2601 = vsel %vm354, %v2584, 0.0
    %2602 = vadd.xlane.f32.xlu0 %v2601
    %v2603 = vpop.xlane.xlu0 %2602
    %v2604 = vsel %vm354, %v2586, 0.0
    %2605 = vadd.xlane.f32.xlu0 %v2604
    %v2606 = vpop.xlane.xlu0 %2605
    %v2607 = vsel %vm354, %v2588, 0.0
    %2608 = vadd.xlane.f32.xlu0 %v2607
    %v2609 = vpop.xlane.xlu0 %2608
    %v2610 = vsel %vm354, %v2590, 0.0
    %2611 = vadd.xlane.f32.xlu0 %v2610
    %v2612 = vpop.xlane.xlu0 %2611
    %v2613 = vsel %vm354, %v2592, 0.0
    %2614 = vadd.xlane.f32.xlu0 %v2613
    %v2615 = vpop.xlane.xlu0 %2614
    %v2616 = vsel %vm354, %v2594, 0.0
    %2617 = vadd.xlane.f32.xlu0 %v2616
    %v2618 = vpop.xlane.xlu0 %2617
    %v2619 = vrcp.pop %v2597
    %v2620 = vmul.f32 %v2597, %v2619
    %v2621 = vsub.f32 1.0, %v2620
    %v2622 = vmul.f32 %v2619, %v2621
    %v2623 = vadd.f32 %v2619, %v2622
    %vm2624 = vweird.f32 %v2597
    %vm2625 = vweird.f32 %v2619
    %vm2626 = vmor %vm2624, %vm2625
    %v2627 = vsel %vm2626, %v2619, %v2623
    %v2628 = vand.u32 2147483647, %v2597
    %vm2629 = vcmp.eq.f32.partialorder %v2628, 8.507059e+37
    %v2630 = vand.u32 %v2597, 2147483648
    %v2631 = vor.u32 1.1754944e-38, %v2630
    %v2632 = vsel %vm2629, %v2631, %v2627
    %v2633 = vrcp.pop %v2600
    %v2634 = vmul.f32 %v2600, %v2633
    %v2635 = vsub.f32 1.0, %v2634
    %v2636 = vmul.f32 %v2633, %v2635
    %v2637 = vadd.f32 %v2633, %v2636
    %vm2638 = vweird.f32 %v2600
    %vm2639 = vweird.f32 %v2633
    %vm2640 = vmor %vm2638, %vm2639
    %v2641 = vsel %vm2640, %v2633, %v2637
    %v2642 = vand.u32 2147483647, %v2600
    %vm2643 = vcmp.eq.f32.partialorder %v2642, 8.507059e+37
    %v2644 = vand.u32 %v2600, 2147483648
    %v2645 = vor.u32 1.1754944e-38, %v2644
    %v2646 = vsel %vm2643, %v2645, %v2641
    %v2647 = vrcp.pop %v2603
    %v2648 = vmul.f32 %v2603, %v2647
    %v2649 = vsub.f32 1.0, %v2648
    %v2650 = vmul.f32 %v2647, %v2649
    %v2651 = vadd.f32 %v2647, %v2650
    %vm2652 = vweird.f32 %v2603
    %vm2653 = vweird.f32 %v2647
    %vm2654 = vmor %vm2652, %vm2653
    %v2655 = vsel %vm2654, %v2647, %v2651
    %v2656 = vand.u32 2147483647, %v2603
    %vm2657 = vcmp.eq.f32.partialorder %v2656, 8.507059e+37
    %v2658 = vand.u32 %v2603, 2147483648
    %v2659 = vor.u32 1.1754944e-38, %v2658
    %v2660 = vsel %vm2657, %v2659, %v2655
    %v2661 = vrcp.pop %v2606
    %v2662 = vmul.f32 %v2606, %v2661
    %v2663 = vsub.f32 1.0, %v2662
    %v2664 = vmul.f32 %v2661, %v2663
    %v2665 = vadd.f32 %v2661, %v2664
    %vm2666 = vweird.f32 %v2606
    %vm2667 = vweird.f32 %v2661
    %vm2668 = vmor %vm2666, %vm2667
    %v2669 = vsel %vm2668, %v2661, %v2665
    %v2670 = vand.u32 2147483647, %v2606
    %vm2671 = vcmp.eq.f32.partialorder %v2670, 8.507059e+37
    %v2672 = vand.u32 %v2606, 2147483648
    %v2673 = vor.u32 1.1754944e-38, %v2672
    %v2674 = vsel %vm2671, %v2673, %v2669
    %v2675 = vrcp.pop %v2609
    %v2676 = vmul.f32 %v2609, %v2675
    %v2677 = vsub.f32 1.0, %v2676
    %v2678 = vmul.f32 %v2675, %v2677
    %v2679 = vadd.f32 %v2675, %v2678
    %vm2680 = vweird.f32 %v2609
    %vm2681 = vweird.f32 %v2675
    %vm2682 = vmor %vm2680, %vm2681
    %v2683 = vsel %vm2682, %v2675, %v2679
    %v2684 = vand.u32 2147483647, %v2609
    %vm2685 = vcmp.eq.f32.partialorder %v2684, 8.507059e+37
    %v2686 = vand.u32 %v2609, 2147483648
    %v2687 = vor.u32 1.1754944e-38, %v2686
    %v2688 = vsel %vm2685, %v2687, %v2683
    %v2689 = vrcp.pop %v2612
    %v2690 = vmul.f32 %v2612, %v2689
    %v2691 = vsub.f32 1.0, %v2690
    %v2692 = vmul.f32 %v2689, %v2691
    %v2693 = vadd.f32 %v2689, %v2692
    %vm2694 = vweird.f32 %v2612
    %vm2695 = vweird.f32 %v2689
    %vm2696 = vmor %vm2694, %vm2695
    %v2697 = vsel %vm2696, %v2689, %v2693
    %v2698 = vand.u32 2147483647, %v2612
    %vm2699 = vcmp.eq.f32.partialorder %v2698, 8.507059e+37
    %v2700 = vand.u32 %v2612, 2147483648
    %v2701 = vor.u32 1.1754944e-38, %v2700
    %v2702 = vsel %vm2699, %v2701, %v2697
    %v2703 = vrcp.pop %v2615
    %v2704 = vmul.f32 %v2615, %v2703
    %v2705 = vsub.f32 1.0, %v2704
    %v2706 = vmul.f32 %v2703, %v2705
    %v2707 = vadd.f32 %v2703, %v2706
    %vm2708 = vweird.f32 %v2615
    %vm2709 = vweird.f32 %v2703
    %vm2710 = vmor %vm2708, %vm2709
    %v2711 = vsel %vm2710, %v2703, %v2707
    %v2712 = vand.u32 2147483647, %v2615
    %vm2713 = vcmp.eq.f32.partialorder %v2712, 8.507059e+37
    %v2714 = vand.u32 %v2615, 2147483648
    %v2715 = vor.u32 1.1754944e-38, %v2714
    %v2716 = vsel %vm2713, %v2715, %v2711
    %v2717 = vrcp.pop %v2618
    %v2718 = vmul.f32 %v2618, %v2717
    %v2719 = vsub.f32 1.0, %v2718
    %v2720 = vmul.f32 %v2717, %v2719
    %v2721 = vadd.f32 %v2717, %v2720
    %vm2722 = vweird.f32 %v2618
    %vm2723 = vweird.f32 %v2717
    %vm2724 = vmor %vm2722, %vm2723
    %v2725 = vsel %vm2724, %v2717, %v2721
    %v2726 = vand.u32 2147483647, %v2618
    %vm2727 = vcmp.eq.f32.partialorder %v2726, 8.507059e+37
    %v2728 = vand.u32 %v2618, 2147483648
    %v2729 = vor.u32 1.1754944e-38, %v2728
    %v2730 = vsel %vm2727, %v2729, %v2725
    %v2731 = vmul.f32 %v2580, %v2632
    %v2732 = vmul.f32 %v2582, %v2646
    %v2733 = vmul.f32 %v2584, %v2660
    %v2734 = vmul.f32 %v2586, %v2674
    %v2735 = vmul.f32 %v2588, %v2688
    %v2736 = vmul.f32 %v2590, %v2702
    %v2737 = vmul.f32 %v2592, %v2716
    %v2738 = vmul.f32 %v2594, %v2730
    %2739 = vrot.lane.b32.xlu0 %v2401, 64
    %v2740 = vpop.permute.xlu0 %2739
    %2741 = vrot.lane.b32.xlu0 %v2404, 64
    %v2742 = vpop.permute.xlu0 %2741
    %2743 = vrot.lane.b32.xlu0 %v2423, 64
    %v2744 = vpop.permute.xlu0 %2743
    %2745 = vrot.lane.b32.xlu0 %v2425, 64
    %v2746 = vpop.permute.xlu0 %2745
    %2747 = vrot.lane.b32.xlu0 %v2427, 64
    %v2748 = vpop.permute.xlu0 %2747
    %2749 = vrot.lane.b32.xlu0 %v2429, 64
    %v2750 = vpop.permute.xlu0 %2749
    %2751 = vrot.lane.b32.xlu0 %v2431, 64
    %v2752 = vpop.permute.xlu0 %2751
    %2753 = vrot.lane.b32.xlu0 %v2433, 64
    %v2754 = vpop.permute.xlu0 %2753
    %v2764 = vsel %vm354, %v2731, 0
    %v2767 = vsel %vm354, %v2732, 0
    %v2770 = vsel %vm354, %v2733, 0
    %v2773 = vsel %vm354, %v2734, 0
    %v2776 = vsel %vm354, %v2735, 0
    %v2779 = vsel %vm354, %v2736, 0
    %v2782 = vsel %vm354, %v2737, 0
    %v2785 = vsel %vm354, %v2738, 0
    %2787 = vmatpush.msra.mxu0 0.0
    %2788 = vmatpush.msra.mxu0 0.0
    %2789 = vmatpush.msra.mxu0 0.0
    %2790 = vmatpush.msra.mxu0 0.0
    %2791 = vmatpush.msra.mxu0 0.0
    %2792 = vmatpush.msra.mxu0 0.0
    %2793 = vmatpush.msra.mxu0 0.0
    %2794 = vmatpush.msra.mxu0 0.0
    %2795 = vmatpush.msra.mxu0 %v2754
    %2796 = vmatpush.msra.mxu0 %v2752
    %2797 = vmatpush.msra.mxu0 %v2750
    %2798 = vmatpush.msra.mxu0 %v2748
    %2799 = vmatpush.msra.mxu0 %v2746
    %2800 = vmatpush.msra.mxu0 %v2744
    %2801 = vmatpush.msra.mxu0 %v2742
    %2802 = vmatpush.msra.mxu0 %v2740
    %2803 = vmatmul.f32.gmra.mxu0 %v2764
    %v2804 = vpop.f32.mrf.mxu0
    %v2805 = vadd.f32 0.0, %v2804
    %2806 = vmatmul.f32.gmra.mxu0 %v2767
    %v2807 = vpop.f32.mrf.mxu0
    %v2808 = vadd.f32 0.0, %v2807
    %2809 = vmatmul.f32.gmra.mxu0 %v2770
    %v2810 = vpop.f32.mrf.mxu0
    %v2811 = vadd.f32 0.0, %v2810
    %2812 = vmatmul.f32.gmra.mxu0 %v2773
    %v2813 = vpop.f32.mrf.mxu0
    %v2814 = vadd.f32 0.0, %v2813
    %2815 = vmatmul.f32.gmra.mxu0 %v2776
    %v2816 = vpop.f32.mrf.mxu0
    %v2817 = vadd.f32 0.0, %v2816
    %2818 = vmatmul.f32.gmra.mxu0 %v2779
    %v2819 = vpop.f32.mrf.mxu0
    %v2820 = vadd.f32 0.0, %v2819
    %2821 = vmatmul.f32.gmra.mxu0 %v2782
    %v2822 = vpop.f32.mrf.mxu0
    %v2823 = vadd.f32 0.0, %v2822
    %2824 = vmatmul.f32.gmra.mxu0 %v2785
    %v2825 = vpop.f32.mrf.mxu0
    %v2826 = vadd.f32 0.0, %v2825
    %2827 = vdwg.mxu0
    %s2828 = scalar_lea.vmem %s6, 96
    %v2829 = vld [vmem:[%s2828] sm:$0xff]
    %v2830 = vld [vmem:[%s2828 + $0x8] sm:$0xff]
    %v2831 = vld [vmem:[%s2828 + $0x10] sm:$0xff]
    %v2832 = vld [vmem:[%s2828 + $0x18] sm:$0xff]
    %v2833 = vld [vmem:[#allocation13 + $0x9] sm:$0x1]
    %v2835 = vsel %vm256, %v2805, 0
    %v2838 = vsel %vm256, %v2808, 0
    %2840 = vmatpush.msra.mxu0 0.0
    %2841 = vmatpush.msra.mxu0 0.0
    %2842 = vmatpush.msra.mxu0 0.0
    %2843 = vmatpush.msra.mxu0 0.0
    %2844 = vmatpush.msra.mxu0 0.0
    %2845 = vmatpush.msra.mxu0 0.0
    %2846 = vmatpush.msra.mxu0 0.0
    %2847 = vmatpush.msra.mxu0 0.0
    %2848 = vmatpush.msra.mxu0 0.0
    %2849 = vmatpush.msra.mxu0 0.0
    %2850 = vmatpush.msra.mxu0 0.0
    %2851 = vmatpush.msra.mxu0 0.0
    %2852 = vmatpush.msra.mxu0 0.0
    %2853 = vmatpush.msra.mxu0 0.0
    %2854 = vmatpush.msra.mxu0 0.0
    %2855 = vmatpush.msra.mxu0 %v2829
    %2856 = vmatmul.f32.gmra.mxu0 %v2835
    %v2857 = vpop.f32.mrf.mxu0
    %v2858 = vadd.f32 0.0, %v2857
    %2859 = vmatmul.f32.gmra.mxu0 %v2838
    %v2860 = vpop.f32.mrf.mxu0
    %v2861 = vadd.f32 0.0, %v2860
    %2862 = vdwg.mxu0
    %v2863 = vperm.slane %v2833, 0
    %v2864 = vadd.f32 %v2863, %v2858
    %v2865 = vadd.f32 %v2863, %v2861
    %v2867 = vsel %vm256, %v2811, 0
    %v2870 = vsel %vm256, %v2814, 0
    %2872 = vmatpush.msra.mxu0 0.0
    %2873 = vmatpush.msra.mxu0 0.0
    %2874 = vmatpush.msra.mxu0 0.0
    %2875 = vmatpush.msra.mxu0 0.0
    %2876 = vmatpush.msra.mxu0 0.0
    %2877 = vmatpush.msra.mxu0 0.0
    %2878 = vmatpush.msra.mxu0 0.0
    %2879 = vmatpush.msra.mxu0 0.0
    %2880 = vmatpush.msra.mxu0 0.0
    %2881 = vmatpush.msra.mxu0 0.0
    %2882 = vmatpush.msra.mxu0 0.0
    %2883 = vmatpush.msra.mxu0 0.0
    %2884 = vmatpush.msra.mxu0 0.0
    %2885 = vmatpush.msra.mxu0 0.0
    %2886 = vmatpush.msra.mxu0 0.0
    %2887 = vmatpush.msra.mxu0 %v2830
    %2888 = vmatmul.f32.gmra.mxu0 %v2867
    %v2889 = vpop.f32.mrf.mxu0
    %v2890 = vadd.f32 0.0, %v2889
    %2891 = vmatmul.f32.gmra.mxu0 %v2870
    %v2892 = vpop.f32.mrf.mxu0
    %v2893 = vadd.f32 0.0, %v2892
    %2894 = vdwg.mxu0
    %v2895 = vadd.f32 %v2864, %v2890
    %v2896 = vadd.f32 %v2865, %v2893
    %v2898 = vsel %vm256, %v2817, 0
    %v2901 = vsel %vm256, %v2820, 0
    %2903 = vmatpush.msra.mxu0 0.0
    %2904 = vmatpush.msra.mxu0 0.0
    %2905 = vmatpush.msra.mxu0 0.0
    %2906 = vmatpush.msra.mxu0 0.0
    %2907 = vmatpush.msra.mxu0 0.0
    %2908 = vmatpush.msra.mxu0 0.0
    %2909 = vmatpush.msra.mxu0 0.0
    %2910 = vmatpush.msra.mxu0 0.0
    %2911 = vmatpush.msra.mxu0 0.0
    %2912 = vmatpush.msra.mxu0 0.0
    %2913 = vmatpush.msra.mxu0 0.0
    %2914 = vmatpush.msra.mxu0 0.0
    %2915 = vmatpush.msra.mxu0 0.0
    %2916 = vmatpush.msra.mxu0 0.0
    %2917 = vmatpush.msra.mxu0 0.0
    %2918 = vmatpush.msra.mxu0 %v2831
    %2919 = vmatmul.f32.gmra.mxu0 %v2898
    %v2920 = vpop.f32.mrf.mxu0
    %v2921 = vadd.f32 0.0, %v2920
    %2922 = vmatmul.f32.gmra.mxu0 %v2901
    %v2923 = vpop.f32.mrf.mxu0
    %v2924 = vadd.f32 0.0, %v2923
    %2925 = vdwg.mxu0
    %v2926 = vadd.f32 %v2895, %v2921
    %v2927 = vadd.f32 %v2896, %v2924
    %v2929 = vsel %vm256, %v2823, 0
    %v2932 = vsel %vm256, %v2826, 0
    %2934 = vmatpush.msra.mxu0 0.0
    %2935 = vmatpush.msra.mxu0 0.0
    %2936 = vmatpush.msra.mxu0 0.0
    %2937 = vmatpush.msra.mxu0 0.0
    %2938 = vmatpush.msra.mxu0 0.0
    %2939 = vmatpush.msra.mxu0 0.0
    %2940 = vmatpush.msra.mxu0 0.0
    %2941 = vmatpush.msra.mxu0 0.0
    %2942 = vmatpush.msra.mxu0 0.0
    %2943 = vmatpush.msra.mxu0 0.0
    %2944 = vmatpush.msra.mxu0 0.0
    %2945 = vmatpush.msra.mxu0 0.0
    %2946 = vmatpush.msra.mxu0 0.0
    %2947 = vmatpush.msra.mxu0 0.0
    %2948 = vmatpush.msra.mxu0 0.0
    %2949 = vmatpush.msra.mxu0 %v2832
    %2950 = vmatmul.f32.gmra.mxu0 %v2929
    %v2951 = vpop.f32.mrf.mxu0
    %v2952 = vadd.f32 0.0, %v2951
    %2953 = vmatmul.f32.gmra.mxu0 %v2932
    %v2954 = vpop.f32.mrf.mxu0
    %v2955 = vadd.f32 0.0, %v2954
    %2956 = vdwg.mxu0
    %v2957 = vadd.f32 %v2926, %v2952
    %v2958 = vadd.f32 %v2927, %v2955
    %v2959 = vadd.f32 %v2339, %v2957
    %v2960 = vadd.f32 %v2340, %v2958
    %v2961 = vsel %vm196, %v2959, 0.0
    %2962 = vadd.xlane.f32.xlu0 %v2961
    %v2963 = vpop.xlane.xlu0 %2962
    %v2964 = vsel %vm196, %v2960, 0.0
    %2965 = vadd.xlane.f32.xlu0 %v2964
    %v2966 = vpop.xlane.xlu0 %2965
    %v2967 = vmul.f32 %v2963, %v780
    %v2968 = vmul.f32 %v2966, %v780
    %v2969 = vsub.f32 %v2959, %v2967
    %v2970 = vsub.f32 %v2960, %v2968
    %v2971 = vmul.f32 %v2969, %v2969
    %v2972 = vmul.f32 %v2970, %v2970
    %v2973 = vsel %vm196, %v2971, 0.0
    %2974 = vadd.xlane.f32.xlu0 %v2973
    %v2975 = vpop.xlane.xlu0 %2974
    %v2976 = vsel %vm196, %v2972, 0.0
    %2977 = vadd.xlane.f32.xlu0 %v2976
    %v2978 = vpop.xlane.xlu0 %2977
    %v2979 = vmul.f32 %v2975, %v780
    %v2980 = vmul.f32 %v2978, %v780
    %v2981 = vadd.f32 %v2979, 1e-05
    %v2982 = vadd.f32 %v2980, 1e-05
    %v2983 = vrsqrt.pop %v2981
    %v2984 = vmul.f32 %v2983, %v2981
    %v2985 = vmul.f32 %v2984, %v2983
    %v2986 = vmul.f32 0.5, %v2985
    %v2987 = vsub.f32 1.5, %v2986
    %v2988 = vmul.f32 %v2983, %v2987
    %vm2989 = vweird.f32 %v2981
    %vm2990 = vweird.f32 %v2983
    %vm2991 = vmor %vm2989, %vm2990
    %v2992 = vsel %vm2991, %v2983, %v2988
    %v2993 = vrsqrt.pop %v2982
    %v2994 = vmul.f32 %v2993, %v2982
    %v2995 = vmul.f32 %v2994, %v2993
    %v2996 = vmul.f32 0.5, %v2995
    %v2997 = vsub.f32 1.5, %v2996
    %v2998 = vmul.f32 %v2993, %v2997
    %vm2999 = vweird.f32 %v2982
    %vm3000 = vweird.f32 %v2993
    %vm3001 = vmor %vm2999, %vm3000
    %v3002 = vsel %vm3001, %v2993, %v2998
    %v3003 = vmul.f32 %v2969, %v2992
    %v3004 = vmul.f32 %v2970, %v3002
    %v3005 = vld [vmem:[#allocation13 + $0x19] sm:$0x1]
    %v3006 = vperm.slane %v3005, 0
    %v3007 = vmul.f32 %v3003, %v3006
    %v3008 = vmul.f32 %v3004, %v3006
    %v3009 = vld [vmem:[#allocation13 + $0x23] sm:$0x1]
    %v3010 = vperm.slane %v3009, 0
    %v3011 = vadd.f32 %v3007, %v3010
    %v3012 = vadd.f32 %v3008, %v3010
    %s3013 = scalar_lea.vmem [#allocation11], 64
    %v3014 = vld [vmem:[%s3013] sm:$0xff]
    %v3015 = vld [vmem:[%s3013 + $0x8] sm:$0xff]
    %v3016 = vld [vmem:[%s3013 + $0x10] sm:$0xff]
    %v3017 = vld [vmem:[%s3013 + $0x18] sm:$0xff]
    %v3018 = vld [vmem:[#allocation13 + $0xe] sm:$0x1]
    %v3019 = vperm.slane %v3018, 0
    %v3021 = vsel %vm196, %v3011, 0
    %v3024 = vsel %vm196, %v3012, 0
    %3026 = vmatpush.msra.mxu0 0.0
    %3027 = vmatpush.msra.mxu0 0.0
    %3028 = vmatpush.msra.mxu0 0.0
    %3029 = vmatpush.msra.mxu0 0.0
    %3030 = vmatpush.msra.mxu0 0.0
    %3031 = vmatpush.msra.mxu0 0.0
    %3032 = vmatpush.msra.mxu0 0.0
    %3033 = vmatpush.msra.mxu0 0.0
    %3034 = vmatpush.msra.mxu0 0.0
    %3035 = vmatpush.msra.mxu0 0.0
    %3036 = vmatpush.msra.mxu0 0.0
    %3037 = vmatpush.msra.mxu0 0.0
    %3038 = vmatpush.msra.mxu0 %v3017
    %3039 = vmatpush.msra.mxu0 %v3016
    %3040 = vmatpush.msra.mxu0 %v3015
    %3041 = vmatpush.msra.mxu0 %v3014
    %3042 = vmatmul.f32.gmra.mxu0 %v3021
    %v3043 = vpop.f32.mrf.mxu0
    %v3044 = vadd.f32 %v3019, %v3043
    %3045 = vmatmul.f32.gmra.mxu0 %v3024
    %v3046 = vpop.f32.mrf.mxu0
    %v3047 = vadd.f32 %v3019, %v3046
    %3048 = vdwg.mxu0
    %v3049 = vmax.f32 %v3044, 0.0
    %v3050 = vmax.f32 %v3047, 0.0
    %s3051 = scalar_lea.vmem %s8, 128
    %v3052 = vld [vmem:[%s3051] sm:$0xff]
    %v3053 = vld [vmem:[%s3051 + $0x8] sm:$0xff]
    %v3054 = vld [vmem:[%s3051 + $0x10] sm:$0xff]
    %v3055 = vld [vmem:[%s3051 + $0x18] sm:$0xff]
    %v3056 = vld [vmem:[%s3051 + $0x20] sm:$0xff]
    %v3057 = vld [vmem:[%s3051 + $0x28] sm:$0xff]
    %v3058 = vld [vmem:[%s3051 + $0x30] sm:$0xff]
    %v3059 = vld [vmem:[%s3051 + $0x38] sm:$0xff]
    %v3060 = vld [vmem:[#allocation13 + $0x12] sm:$0x1]
    %v3061 = vperm.slane %v3060, 0
    %v3063 = vsel %vm354, %v3049, 0
    %v3066 = vsel %vm354, %v3050, 0
    %3068 = vmatpush.msra.mxu0 0.0
    %3069 = vmatpush.msra.mxu0 0.0
    %3070 = vmatpush.msra.mxu0 0.0
    %3071 = vmatpush.msra.mxu0 0.0
    %3072 = vmatpush.msra.mxu0 0.0
    %3073 = vmatpush.msra.mxu0 0.0
    %3074 = vmatpush.msra.mxu0 0.0
    %3075 = vmatpush.msra.mxu0 0.0
    %3076 = vmatpush.msra.mxu0 %v3059
    %3077 = vmatpush.msra.mxu0 %v3058
    %3078 = vmatpush.msra.mxu0 %v3057
    %3079 = vmatpush.msra.mxu0 %v3056
    %3080 = vmatpush.msra.mxu0 %v3055
    %3081 = vmatpush.msra.mxu0 %v3054
    %3082 = vmatpush.msra.mxu0 %v3053
    %3083 = vmatpush.msra.mxu0 %v3052
    %3084 = vmatmul.f32.gmra.mxu0 %v3063
    %v3085 = vpop.f32.mrf.mxu0
    %v3086 = vadd.f32 %v3061, %v3085
    %3087 = vmatmul.f32.gmra.mxu0 %v3066
    %v3088 = vpop.f32.mrf.mxu0
    %v3089 = vadd.f32 %v3061, %v3088
    %3090 = vdwg.mxu0
    %v3091 = vadd.f32 %v3011, %v3086
    %v3092 = vadd.f32 %v3012, %v3089
    %v3093 = vsel %vm196, %v3091, 0.0
    %3094 = vadd.xlane.f32.xlu0 %v3093
    %v3095 = vpop.xlane.xlu0 %3094
    %v3096 = vsel %vm196, %v3092, 0.0
    %3097 = vadd.xlane.f32.xlu0 %v3096
    %v3098 = vpop.xlane.xlu0 %3097
    %v3099 = vmul.f32 %v3095, %v780
    %v3100 = vmul.f32 %v3098, %v780
    %v3101 = vsub.f32 %v3091, %v3099
    %v3102 = vsub.f32 %v3092, %v3100
    %v3103 = vmul.f32 %v3101, %v3101
    %v3104 = vmul.f32 %v3102, %v3102
    %v3105 = vsel %vm196, %v3103, 0.0
    %3106 = vadd.xlane.f32.xlu0 %v3105
    %v3107 = vpop.xlane.xlu0 %3106
    %v3108 = vsel %vm196, %v3104, 0.0
    %3109 = vadd.xlane.f32.xlu0 %v3108
    %v3110 = vpop.xlane.xlu0 %3109
    %v3111 = vmul.f32 %v3107, %v780
    %v3112 = vmul.f32 %v3110, %v780
    %v3113 = vadd.f32 %v3111, 1e-05
    %v3114 = vadd.f32 %v3112, 1e-05
    %v3115 = vrsqrt.pop %v3113
    %v3116 = vmul.f32 %v3115, %v3113
    %v3117 = vmul.f32 %v3116, %v3115
    %v3118 = vmul.f32 0.5, %v3117
    %v3119 = vsub.f32 1.5, %v3118
    %v3120 = vmul.f32 %v3115, %v3119
    %vm3121 = vweird.f32 %v3113
    %vm3122 = vweird.f32 %v3115
    %vm3123 = vmor %vm3121, %vm3122
    %v3124 = vsel %vm3123, %v3115, %v3120
    %v3125 = vrsqrt.pop %v3114
    %v3126 = vmul.f32 %v3125, %v3114
    %v3127 = vmul.f32 %v3126, %v3125
    %v3128 = vmul.f32 0.5, %v3127
    %v3129 = vsub.f32 1.5, %v3128
    %v3130 = vmul.f32 %v3125, %v3129
    %vm3131 = vweird.f32 %v3114
    %vm3132 = vweird.f32 %v3125
    %vm3133 = vmor %vm3131, %vm3132
    %v3134 = vsel %vm3133, %v3125, %v3130
    %v3135 = vmul.f32 %v3101, %v3124
    %v3136 = vmul.f32 %v3102, %v3134
    %v3137 = vld [vmem:[#allocation13 + $0x1a] sm:$0x1]
    %v3138 = vperm.slane %v3137, 0
    %v3139 = vmul.f32 %v3135, %v3138
    %v3140 = vmul.f32 %v3136, %v3138
    %v3141 = vld [vmem:[#allocation13 + $0x24] sm:$0x1]
    %v3142 = vperm.slane %v3141, 0
    %v3143 = vadd.f32 %v3139, %v3142
    %v3144 = vadd.f32 %v3140, %v3142
    %s3145 = scalar_lea.vmem %s5, 128
    %v3146 = vld [vmem:[%s3145] sm:$0xff]
    %v3147 = vld [vmem:[%s3145 + $0x8] sm:$0xff]
    %v3148 = vld [vmem:[%s3145 + $0x10] sm:$0xff]
    %v3149 = vld [vmem:[%s3145 + $0x18] sm:$0xff]
    %v3150 = vld [vmem:[#allocation13 + $0x4] sm:$0x1]
    %v3151 = vperm.slane %v3150, 0
    %v3153 = vsel %vm196, %v3143, 0
    %v3156 = vsel %vm196, %v3144, 0
    %3158 = vmatpush.msra.mxu0 0.0
    %3159 = vmatpush.msra.mxu0 0.0
    %3160 = vmatpush.msra.mxu0 0.0
    %3161 = vmatpush.msra.mxu0 0.0
    %3162 = vmatpush.msra.mxu0 0.0
    %3163 = vmatpush.msra.mxu0 0.0
    %3164 = vmatpush.msra.mxu0 0.0
    %3165 = vmatpush.msra.mxu0 0.0
    %3166 = vmatpush.msra.mxu0 0.0
    %3167 = vmatpush.msra.mxu0 0.0
    %3168 = vmatpush.msra.mxu0 0.0
    %3169 = vmatpush.msra.mxu0 0.0
    %3170 = vmatpush.msra.mxu0 %v3149
    %3171 = vmatpush.msra.mxu0 %v3148
    %3172 = vmatpush.msra.mxu0 %v3147
    %3173 = vmatpush.msra.mxu0 %v3146
    %3174 = vmatmul.f32.gmra.mxu0 %v3153
    %v3175 = vpop.f32.mrf.mxu0
    %v3176 = vadd.f32 %v3151, %v3175
    %3177 = vmatmul.f32.gmra.mxu0 %v3156
    %v3178 = vpop.f32.mrf.mxu0
    %v3179 = vadd.f32 %v3151, %v3178
    %3180 = vdwg.mxu0
    %3183 = vrot.lane.b32.xlu0 %v3176, 120
    %v3184 = vpop.permute.xlu0 %3183
    %3185 = vrot.lane.b32.xlu0 %v3179, 120
    %v3186 = vpop.permute.xlu0 %3185
    %3187 = vrot.lane.b32.xlu0 %v3176, 112
    %v3188 = vpop.permute.xlu0 %3187
    %3189 = vrot.lane.b32.xlu0 %v3179, 112
    %v3190 = vpop.permute.xlu0 %3189
    %3191 = vrot.lane.b32.xlu0 %v3176, 104
    %v3192 = vpop.permute.xlu0 %3191
    %3193 = vrot.lane.b32.xlu0 %v3179, 104
    %v3194 = vpop.permute.xlu0 %3193
    %3195 = vrot.lane.b32.xlu0 %v3176, 96
    %v3196 = vpop.permute.xlu0 %3195
    %3197 = vrot.lane.b32.xlu0 %v3179, 96
    %v3198 = vpop.permute.xlu0 %3197
    %3199 = vrot.lane.b32.xlu0 %v3184, 96
    %v3200 = vpop.permute.xlu0 %3199
    %3201 = vrot.lane.b32.xlu0 %v3186, 96
    %v3202 = vpop.permute.xlu0 %3201
    %3203 = vrot.lane.b32.xlu0 %v3188, 96
    %v3204 = vpop.permute.xlu0 %3203
    %3205 = vrot.lane.b32.xlu0 %v3190, 96
    %v3206 = vpop.permute.xlu0 %3205
    %3207 = vrot.lane.b32.xlu0 %v3192, 96
    %v3208 = vpop.permute.xlu0 %3207
    %3209 = vrot.lane.b32.xlu0 %v3194, 96
    %v3210 = vpop.permute.xlu0 %3209
    %v3211 = vsel %vm256, %v3176, 0
    %v3213 = vsel %vm256, %v3179, 0
    %v3215 = vsel %vm256, %v3184, 0
    %v3217 = vsel %vm256, %v3186, 0
    %v3219 = vsel %vm256, %v3188, 0
    %v3221 = vsel %vm256, %v3190, 0
    %v3223 = vsel %vm256, %v3192, 0
    %v3225 = vsel %vm256, %v3194, 0
    %v3227 = vsel %vm256, %v3196, 0
    %v3229 = vsel %vm256, %v3198, 0
    %v3231 = vsel %vm256, %v3200, 0
    %v3233 = vsel %vm256, %v3202, 0
    %v3235 = vsel %vm256, %v3204, 0
    %v3237 = vsel %vm256, %v3206, 0
    %v3239 = vsel %vm256, %v3208, 0
    %v3241 = vsel %vm256, %v3210, 0
    %3243 = vmatpush.xpose.msra.mxu0 0.0
    %3244 = vmatpush.xpose.msra.mxu0 0.0
    %3245 = vmatpush.xpose.msra.mxu0 0.0
    %3246 = vmatpush.xpose.msra.mxu0 0.0
    %3247 = vmatpush.xpose.msra.mxu0 0.0
    %3248 = vmatpush.xpose.msra.mxu0 0.0
    %3249 = vmatpush.xpose.msra.mxu0 0.0
    %3250 = vmatpush.xpose.msra.mxu0 0.0
    %3251 = vmatpush.xpose.msra.mxu0 %v3241
    %3252 = vmatpush.xpose.msra.mxu0 %v3239
    %3253 = vmatpush.xpose.msra.mxu0 %v3237
    %3254 = vmatpush.xpose.msra.mxu0 %v3235
    %3255 = vmatpush.xpose.msra.mxu0 %v3233
    %3256 = vmatpush.xpose.msra.mxu0 %v3231
    %3257 = vmatpush.xpose.msra.mxu0 %v3229
    %3258 = vmatpush.xpose.msra.mxu0 %v3227
    %3259 = vmatmul.f32.gmra.mxu0 %v3211
    %v3260 = vpop.f32.mrf.mxu0
    %v3261 = vadd.f32 0.0, %v3260
    %3262 = vmatmul.f32.gmra.mxu0 %v3213
    %v3263 = vpop.f32.mrf.mxu0
    %v3264 = vadd.f32 0.0, %v3263
    %3265 = vmatmul.f32.gmra.mxu0 %v3215
    %v3266 = vpop.f32.mrf.mxu0
    %v3267 = vadd.f32 0.0, %v3266
    %3268 = vmatmul.f32.gmra.mxu0 %v3217
    %v3269 = vpop.f32.mrf.mxu0
    %v3270 = vadd.f32 0.0, %v3269
    %3271 = vmatmul.f32.gmra.mxu0 %v3219
    %v3272 = vpop.f32.mrf.mxu0
    %v3273 = vadd.f32 0.0, %v3272
    %3274 = vmatmul.f32.gmra.mxu0 %v3221
    %v3275 = vpop.f32.mrf.mxu0
    %v3276 = vadd.f32 0.0, %v3275
    %3277 = vmatmul.f32.gmra.mxu0 %v3223
    %v3278 = vpop.f32.mrf.mxu0
    %v3279 = vadd.f32 0.0, %v3278
    %3280 = vmatmul.f32.gmra.mxu0 %v3225
    %v3281 = vpop.f32.mrf.mxu0
    %v3282 = vadd.f32 0.0, %v3281
    %3283 = vdwg.mxu0
    %v3284 = vmul.f32 %v3261, 0.17677669
    %v3285 = vmul.f32 %v3264, 0.17677669
    %v3286 = vmul.f32 %v3267, 0.17677669
    %v3287 = vmul.f32 %v3270, 0.17677669
    %v3288 = vmul.f32 %v3273, 0.17677669
    %v3289 = vmul.f32 %v3276, 0.17677669
    %v3290 = vmul.f32 %v3279, 0.17677669
    %v3291 = vmul.f32 %v3282, 0.17677669
    %v3292 = vsel %vm1859, %v3284, %v172
    %v3293 = vsel %vm1860, %v3285, %v173
    %v3294 = vsel %vm1861, %v3286, %v174
    %v3295 = vsel %vm1862, %v3287, %v175
    %v3296 = vsel %vm1863, %v3288, %v176
    %v3297 = vsel %vm1864, %v3289, %v177
    %v3298 = vsel %vm1865, %v3290, %v178
    %v3299 = vsel %vm1866, %v3291, %v179
    %v3300 = vsel %vm354, %v3292, -inf
    %3301 = vmax.xlane.f32.xlu0 %v3300
    %v3302 = vpop.xlane.xlu0 %3301
    %v3303 = vsel %vm354, %v3293, -inf
    %3304 = vmax.xlane.f32.xlu0 %v3303
    %v3305 = vpop.xlane.xlu0 %3304
    %v3306 = vsel %vm354, %v3294, -inf
    %3307 = vmax.xlane.f32.xlu0 %v3306
    %v3308 = vpop.xlane.xlu0 %3307
    %v3309 = vsel %vm354, %v3295, -inf
    %3310 = vmax.xlane.f32.xlu0 %v3309
    %v3311 = vpop.xlane.xlu0 %3310
    %v3312 = vsel %vm354, %v3296, -inf
    %3313 = vmax.xlane.f32.xlu0 %v3312
    %v3314 = vpop.xlane.xlu0 %3313
    %v3315 = vsel %vm354, %v3297, -inf
    %3316 = vmax.xlane.f32.xlu0 %v3315
    %v3317 = vpop.xlane.xlu0 %3316
    %v3318 = vsel %vm354, %v3298, -inf
    %3319 = vmax.xlane.f32.xlu0 %v3318
    %v3320 = vpop.xlane.xlu0 %3319
    %v3321 = vsel %vm354, %v3299, -inf
    %3322 = vmax.xlane.f32.xlu0 %v3321
    %v3323 = vpop.xlane.xlu0 %3322
    %v3324 = vsub.f32 %v3292, %v3302
    %v3325 = vsub.f32 %v3293, %v3305
    %v3326 = vsub.f32 %v3294, %v3308
    %v3327 = vsub.f32 %v3295, %v3311
    %v3328 = vsub.f32 %v3296, %v3314
    %v3329 = vsub.f32 %v3297, %v3317
    %v3330 = vsub.f32 %v3298, %v3320
    %v3331 = vsub.f32 %v3299, %v3323
    %v3332 = vmul.f32 %v3324, 1.442695
    %v3333 = vpow.pop %v3332
    %v3334 = vmul.f32 %v3325, 1.442695
    %v3335 = vpow.pop %v3334
    %v3336 = vmul.f32 %v3326, 1.442695
    %v3337 = vpow.pop %v3336
    %v3338 = vmul.f32 %v3327, 1.442695
    %v3339 = vpow.pop %v3338
    %v3340 = vmul.f32 %v3328, 1.442695
    %v3341 = vpow.pop %v3340
    %v3342 = vmul.f32 %v3329, 1.442695
    %v3343 = vpow.pop %v3342
    %v3344 = vmul.f32 %v3330, 1.442695
    %v3345 = vpow.pop %v3344
    %v3346 = vmul.f32 %v3331, 1.442695
    %v3347 = vpow.pop %v3346
    %v3348 = vsel %vm354, %v3333, 0.0
    %3349 = vadd.xlane.f32.xlu0 %v3348
    %v3350 = vpop.xlane.xlu0 %3349
    %v3351 = vsel %vm354, %v3335, 0.0
    %3352 = vadd.xlane.f32.xlu0 %v3351
    %v3353 = vpop.xlane.xlu0 %3352
    %v3354 = vsel %vm354, %v3337, 0.0
    %3355 = vadd.xlane.f32.xlu0 %v3354
    %v3356 = vpop.xlane.xlu0 %3355
    %v3357 = vsel %vm354, %v3339, 0.0
    %3358 = vadd.xlane.f32.xlu0 %v3357
    %v3359 = vpop.xlane.xlu0 %3358
    %v3360 = vsel %vm354, %v3341, 0.0
    %3361 = vadd.xlane.f32.xlu0 %v3360
    %v3362 = vpop.xlane.xlu0 %3361
    %v3363 = vsel %vm354, %v3343, 0.0
    %3364 = vadd.xlane.f32.xlu0 %v3363
    %v3365 = vpop.xlane.xlu0 %3364
    %v3366 = vsel %vm354, %v3345, 0.0
    %3367 = vadd.xlane.f32.xlu0 %v3366
    %v3368 = vpop.xlane.xlu0 %3367
    %v3369 = vsel %vm354, %v3347, 0.0
    %3370 = vadd.xlane.f32.xlu0 %v3369
    %v3371 = vpop.xlane.xlu0 %3370
    %v3372 = vrcp.pop %v3350
    %v3373 = vmul.f32 %v3350, %v3372
    %v3374 = vsub.f32 1.0, %v3373
    %v3375 = vmul.f32 %v3372, %v3374
    %v3376 = vadd.f32 %v3372, %v3375
    %vm3377 = vweird.f32 %v3350
    %vm3378 = vweird.f32 %v3372
    %vm3379 = vmor %vm3377, %vm3378
    %v3380 = vsel %vm3379, %v3372, %v3376
    %v3381 = vand.u32 2147483647, %v3350
    %vm3382 = vcmp.eq.f32.partialorder %v3381, 8.507059e+37
    %v3383 = vand.u32 %v3350, 2147483648
    %v3384 = vor.u32 1.1754944e-38, %v3383
    %v3385 = vsel %vm3382, %v3384, %v3380
    %v3386 = vrcp.pop %v3353
    %v3387 = vmul.f32 %v3353, %v3386
    %v3388 = vsub.f32 1.0, %v3387
    %v3389 = vmul.f32 %v3386, %v3388
    %v3390 = vadd.f32 %v3386, %v3389
    %vm3391 = vweird.f32 %v3353
    %vm3392 = vweird.f32 %v3386
    %vm3393 = vmor %vm3391, %vm3392
    %v3394 = vsel %vm3393, %v3386, %v3390
    %v3395 = vand.u32 2147483647, %v3353
    %vm3396 = vcmp.eq.f32.partialorder %v3395, 8.507059e+37
    %v3397 = vand.u32 %v3353, 2147483648
    %v3398 = vor.u32 1.1754944e-38, %v3397
    %v3399 = vsel %vm3396, %v3398, %v3394
    %v3400 = vrcp.pop %v3356
    %v3401 = vmul.f32 %v3356, %v3400
    %v3402 = vsub.f32 1.0, %v3401
    %v3403 = vmul.f32 %v3400, %v3402
    %v3404 = vadd.f32 %v3400, %v3403
    %vm3405 = vweird.f32 %v3356
    %vm3406 = vweird.f32 %v3400
    %vm3407 = vmor %vm3405, %vm3406
    %v3408 = vsel %vm3407, %v3400, %v3404
    %v3409 = vand.u32 2147483647, %v3356
    %vm3410 = vcmp.eq.f32.partialorder %v3409, 8.507059e+37
    %v3411 = vand.u32 %v3356, 2147483648
    %v3412 = vor.u32 1.1754944e-38, %v3411
    %v3413 = vsel %vm3410, %v3412, %v3408
    %v3414 = vrcp.pop %v3359
    %v3415 = vmul.f32 %v3359, %v3414
    %v3416 = vsub.f32 1.0, %v3415
    %v3417 = vmul.f32 %v3414, %v3416
    %v3418 = vadd.f32 %v3414, %v3417
    %vm3419 = vweird.f32 %v3359
    %vm3420 = vweird.f32 %v3414
    %vm3421 = vmor %vm3419, %vm3420
    %v3422 = vsel %vm3421, %v3414, %v3418
    %v3423 = vand.u32 2147483647, %v3359
    %vm3424 = vcmp.eq.f32.partialorder %v3423, 8.507059e+37
    %v3425 = vand.u32 %v3359, 2147483648
    %v3426 = vor.u32 1.1754944e-38, %v3425
    %v3427 = vsel %vm3424, %v3426, %v3422
    %v3428 = vrcp.pop %v3362
    %v3429 = vmul.f32 %v3362, %v3428
    %v3430 = vsub.f32 1.0, %v3429
    %v3431 = vmul.f32 %v3428, %v3430
    %v3432 = vadd.f32 %v3428, %v3431
    %vm3433 = vweird.f32 %v3362
    %vm3434 = vweird.f32 %v3428
    %vm3435 = vmor %vm3433, %vm3434
    %v3436 = vsel %vm3435, %v3428, %v3432
    %v3437 = vand.u32 2147483647, %v3362
    %vm3438 = vcmp.eq.f32.partialorder %v3437, 8.507059e+37
    %v3439 = vand.u32 %v3362, 2147483648
    %v3440 = vor.u32 1.1754944e-38, %v3439
    %v3441 = vsel %vm3438, %v3440, %v3436
    %v3442 = vrcp.pop %v3365
    %v3443 = vmul.f32 %v3365, %v3442
    %v3444 = vsub.f32 1.0, %v3443
    %v3445 = vmul.f32 %v3442, %v3444
    %v3446 = vadd.f32 %v3442, %v3445
    %vm3447 = vweird.f32 %v3365
    %vm3448 = vweird.f32 %v3442
    %vm3449 = vmor %vm3447, %vm3448
    %v3450 = vsel %vm3449, %v3442, %v3446
    %v3451 = vand.u32 2147483647, %v3365
    %vm3452 = vcmp.eq.f32.partialorder %v3451, 8.507059e+37
    %v3453 = vand.u32 %v3365, 2147483648
    %v3454 = vor.u32 1.1754944e-38, %v3453
    %v3455 = vsel %vm3452, %v3454, %v3450
    %v3456 = vrcp.pop %v3368
    %v3457 = vmul.f32 %v3368, %v3456
    %v3458 = vsub.f32 1.0, %v3457
    %v3459 = vmul.f32 %v3456, %v3458
    %v3460 = vadd.f32 %v3456, %v3459
    %vm3461 = vweird.f32 %v3368
    %vm3462 = vweird.f32 %v3456
    %vm3463 = vmor %vm3461, %vm3462
    %v3464 = vsel %vm3463, %v3456, %v3460
    %v3465 = vand.u32 2147483647, %v3368
    %vm3466 = vcmp.eq.f32.partialorder %v3465, 8.507059e+37
    %v3467 = vand.u32 %v3368, 2147483648
    %v3468 = vor.u32 1.1754944e-38, %v3467
    %v3469 = vsel %vm3466, %v3468, %v3464
    %v3470 = vrcp.pop %v3371
    %v3471 = vmul.f32 %v3371, %v3470
    %v3472 = vsub.f32 1.0, %v3471
    %v3473 = vmul.f32 %v3470, %v3472
    %v3474 = vadd.f32 %v3470, %v3473
    %vm3475 = vweird.f32 %v3371
    %vm3476 = vweird.f32 %v3470
    %vm3477 = vmor %vm3475, %vm3476
    %v3478 = vsel %vm3477, %v3470, %v3474
    %v3479 = vand.u32 2147483647, %v3371
    %vm3480 = vcmp.eq.f32.partialorder %v3479, 8.507059e+37
    %v3481 = vand.u32 %v3371, 2147483648
    %v3482 = vor.u32 1.1754944e-38, %v3481
    %v3483 = vsel %vm3480, %v3482, %v3478
    %v3484 = vmul.f32 %v3333, %v3385
    %v3485 = vmul.f32 %v3335, %v3399
    %v3486 = vmul.f32 %v3337, %v3413
    %v3487 = vmul.f32 %v3339, %v3427
    %v3488 = vmul.f32 %v3341, %v3441
    %v3489 = vmul.f32 %v3343, %v3455
    %v3490 = vmul.f32 %v3345, %v3469
    %v3491 = vmul.f32 %v3347, %v3483
    %3492 = vrot.lane.b32.xlu0 %v3176, 64
    %v3493 = vpop.permute.xlu0 %3492
    %3494 = vrot.lane.b32.xlu0 %v3179, 64
    %v3495 = vpop.permute.xlu0 %3494
    %3496 = vrot.lane.b32.xlu0 %v3184, 64
    %v3497 = vpop.permute.xlu0 %3496
    %3498 = vrot.lane.b32.xlu0 %v3186, 64
    %v3499 = vpop.permute.xlu0 %3498
    %3500 = vrot.lane.b32.xlu0 %v3188, 64
    %v3501 = vpop.permute.xlu0 %3500
    %3502 = vrot.lane.b32.xlu0 %v3190, 64
    %v3503 = vpop.permute.xlu0 %3502
    %3504 = vrot.lane.b32.xlu0 %v3192, 64
    %v3505 = vpop.permute.xlu0 %3504
    %3506 = vrot.lane.b32.xlu0 %v3194, 64
    %v3507 = vpop.permute.xlu0 %3506
    %v3517 = vsel %vm354, %v3484, 0
    %v3520 = vsel %vm354, %v3485, 0
    %v3523 = vsel %vm354, %v3486, 0
    %v3526 = vsel %vm354, %v3487, 0
    %v3529 = vsel %vm354, %v3488, 0
    %v3532 = vsel %vm354, %v3489, 0
    %v3535 = vsel %vm354, %v3490, 0
    %v3538 = vsel %vm354, %v3491, 0
    %3540 = vmatpush.msra.mxu0 0.0
    %3541 = vmatpush.msra.mxu0 0.0
    %3542 = vmatpush.msra.mxu0 0.0
    %3543 = vmatpush.msra.mxu0 0.0
    %3544 = vmatpush.msra.mxu0 0.0
    %3545 = vmatpush.msra.mxu0 0.0
    %3546 = vmatpush.msra.mxu0 0.0
    %3547 = vmatpush.msra.mxu0 0.0
    %3548 = vmatpush.msra.mxu0 %v3507
    %3549 = vmatpush.msra.mxu0 %v3505
    %3550 = vmatpush.msra.mxu0 %v3503
    %3551 = vmatpush.msra.mxu0 %v3501
    %3552 = vmatpush.msra.mxu0 %v3499
    %3553 = vmatpush.msra.mxu0 %v3497
    %3554 = vmatpush.msra.mxu0 %v3495
    %3555 = vmatpush.msra.mxu0 %v3493
    %3556 = vmatmul.f32.gmra.mxu0 %v3517
    %v3557 = vpop.f32.mrf.mxu0
    %v3558 = vadd.f32 0.0, %v3557
    %3559 = vmatmul.f32.gmra.mxu0 %v3520
    %v3560 = vpop.f32.mrf.mxu0
    %v3561 = vadd.f32 0.0, %v3560
    %3562 = vmatmul.f32.gmra.mxu0 %v3523
    %v3563 = vpop.f32.mrf.mxu0
    %v3564 = vadd.f32 0.0, %v3563
    %3565 = vmatmul.f32.gmra.mxu0 %v3526
    %v3566 = vpop.f32.mrf.mxu0
    %v3567 = vadd.f32 0.0, %v3566
    %3568 = vmatmul.f32.gmra.mxu0 %v3529
    %v3569 = vpop.f32.mrf.mxu0
    %v3570 = vadd.f32 0.0, %v3569
    %3571 = vmatmul.f32.gmra.mxu0 %v3532
    %v3572 = vpop.f32.mrf.mxu0
    %v3573 = vadd.f32 0.0, %v3572
    %3574 = vmatmul.f32.gmra.mxu0 %v3535
    %v3575 = vpop.f32.mrf.mxu0
    %v3576 = vadd.f32 0.0, %v3575
    %3577 = vmatmul.f32.gmra.mxu0 %v3538
    %v3578 = vpop.f32.mrf.mxu0
    %v3579 = vadd.f32 0.0, %v3578
    %3580 = vdwg.mxu0
    %s3581 = scalar_lea.vmem %s6, 128
    %v3582 = vld [vmem:[%s3581] sm:$0xff]
    %v3583 = vld [vmem:[%s3581 + $0x8] sm:$0xff]
    %v3584 = vld [vmem:[%s3581 + $0x10] sm:$0xff]
    %v3585 = vld [vmem:[%s3581 + $0x18] sm:$0xff]
    %v3586 = vld [vmem:[#allocation13 + $0xa] sm:$0x1]
    %v3588 = vsel %vm256, %v3558, 0
    %v3591 = vsel %vm256, %v3561, 0
    %3593 = vmatpush.msra.mxu0 0.0
    %3594 = vmatpush.msra.mxu0 0.0
    %3595 = vmatpush.msra.mxu0 0.0
    %3596 = vmatpush.msra.mxu0 0.0
    %3597 = vmatpush.msra.mxu0 0.0
    %3598 = vmatpush.msra.mxu0 0.0
    %3599 = vmatpush.msra.mxu0 0.0
    %3600 = vmatpush.msra.mxu0 0.0
    %3601 = vmatpush.msra.mxu0 0.0
    %3602 = vmatpush.msra.mxu0 0.0
    %3603 = vmatpush.msra.mxu0 0.0
    %3604 = vmatpush.msra.mxu0 0.0
    %3605 = vmatpush.msra.mxu0 0.0
    %3606 = vmatpush.msra.mxu0 0.0
    %3607 = vmatpush.msra.mxu0 0.0
    %3608 = vmatpush.msra.mxu0 %v3582
    %3609 = vmatmul.f32.gmra.mxu0 %v3588
    %v3610 = vpop.f32.mrf.mxu0
    %v3611 = vadd.f32 0.0, %v3610
    %3612 = vmatmul.f32.gmra.mxu0 %v3591
    %v3613 = vpop.f32.mrf.mxu0
    %v3614 = vadd.f32 0.0, %v3613
    %3615 = vdwg.mxu0
    %v3616 = vperm.slane %v3586, 0
    %v3617 = vadd.f32 %v3616, %v3611
    %v3618 = vadd.f32 %v3616, %v3614
    %v3620 = vsel %vm256, %v3564, 0
    %v3623 = vsel %vm256, %v3567, 0
    %3625 = vmatpush.msra.mxu0 0.0
    %3626 = vmatpush.msra.mxu0 0.0
    %3627 = vmatpush.msra.mxu0 0.0
    %3628 = vmatpush.msra.mxu0 0.0
    %3629 = vmatpush.msra.mxu0 0.0
    %3630 = vmatpush.msra.mxu0 0.0
    %3631 = vmatpush.msra.mxu0 0.0
    %3632 = vmatpush.msra.mxu0 0.0
    %3633 = vmatpush.msra.mxu0 0.0
    %3634 = vmatpush.msra.mxu0 0.0
    %3635 = vmatpush.msra.mxu0 0.0
    %3636 = vmatpush.msra.mxu0 0.0
    %3637 = vmatpush.msra.mxu0 0.0
    %3638 = vmatpush.msra.mxu0 0.0
    %3639 = vmatpush.msra.mxu0 0.0
    %3640 = vmatpush.msra.mxu0 %v3583
    %3641 = vmatmul.f32.gmra.mxu0 %v3620
    %v3642 = vpop.f32.mrf.mxu0
    %v3643 = vadd.f32 0.0, %v3642
    %3644 = vmatmul.f32.gmra.mxu0 %v3623
    %v3645 = vpop.f32.mrf.mxu0
    %v3646 = vadd.f32 0.0, %v3645
    %3647 = vdwg.mxu0
    %v3648 = vadd.f32 %v3617, %v3643
    %v3649 = vadd.f32 %v3618, %v3646
    %v3651 = vsel %vm256, %v3570, 0
    %v3654 = vsel %vm256, %v3573, 0
    %3656 = vmatpush.msra.mxu0 0.0
    %3657 = vmatpush.msra.mxu0 0.0
    %3658 = vmatpush.msra.mxu0 0.0
    %3659 = vmatpush.msra.mxu0 0.0
    %3660 = vmatpush.msra.mxu0 0.0
    %3661 = vmatpush.msra.mxu0 0.0
    %3662 = vmatpush.msra.mxu0 0.0
    %3663 = vmatpush.msra.mxu0 0.0
    %3664 = vmatpush.msra.mxu0 0.0
    %3665 = vmatpush.msra.mxu0 0.0
    %3666 = vmatpush.msra.mxu0 0.0
    %3667 = vmatpush.msra.mxu0 0.0
    %3668 = vmatpush.msra.mxu0 0.0
    %3669 = vmatpush.msra.mxu0 0.0
    %3670 = vmatpush.msra.mxu0 0.0
    %3671 = vmatpush.msra.mxu0 %v3584
    %3672 = vmatmul.f32.gmra.mxu0 %v3651
    %v3673 = vpop.f32.mrf.mxu0
    %v3674 = vadd.f32 0.0, %v3673
    %3675 = vmatmul.f32.gmra.mxu0 %v3654
    %v3676 = vpop.f32.mrf.mxu0
    %v3677 = vadd.f32 0.0, %v3676
    %3678 = vdwg.mxu0
    %v3679 = vadd.f32 %v3648, %v3674
    %v3680 = vadd.f32 %v3649, %v3677
    %v3682 = vsel %vm256, %v3576, 0
    %v3685 = vsel %vm256, %v3579, 0
    %3687 = vmatpush.msra.mxu0 0.0
    %3688 = vmatpush.msra.mxu0 0.0
    %3689 = vmatpush.msra.mxu0 0.0
    %3690 = vmatpush.msra.mxu0 0.0
    %3691 = vmatpush.msra.mxu0 0.0
    %3692 = vmatpush.msra.mxu0 0.0
    %3693 = vmatpush.msra.mxu0 0.0
    %3694 = vmatpush.msra.mxu0 0.0
    %3695 = vmatpush.msra.mxu0 0.0
    %3696 = vmatpush.msra.mxu0 0.0
    %3697 = vmatpush.msra.mxu0 0.0
    %3698 = vmatpush.msra.mxu0 0.0
    %3699 = vmatpush.msra.mxu0 0.0
    %3700 = vmatpush.msra.mxu0 0.0
    %3701 = vmatpush.msra.mxu0 0.0
    %3702 = vmatpush.msra.mxu0 %v3585
    %3703 = vmatmul.f32.gmra.mxu0 %v3682
    %v3704 = vpop.f32.mrf.mxu0
    %v3705 = vadd.f32 0.0, %v3704
    %3706 = vmatmul.f32.gmra.mxu0 %v3685
    %v3707 = vpop.f32.mrf.mxu0
    %v3708 = vadd.f32 0.0, %v3707
    %3709 = vdwg.mxu0
    %v3710 = vadd.f32 %v3679, %v3705
    %v3711 = vadd.f32 %v3680, %v3708
    %v3712 = vadd.f32 %v3143, %v3710
    %v3713 = vadd.f32 %v3144, %v3711
    %v3714 = vsel %vm196, %v3712, 0.0
    %3715 = vadd.xlane.f32.xlu0 %v3714
    %v3716 = vpop.xlane.xlu0 %3715
    %v3717 = vsel %vm196, %v3713, 0.0
    %3718 = vadd.xlane.f32.xlu0 %v3717
    %v3719 = vpop.xlane.xlu0 %3718
    %v3720 = vmul.f32 %v3716, %v780
    %v3721 = vmul.f32 %v3719, %v780
    %v3722 = vsub.f32 %v3712, %v3720
    %v3723 = vsub.f32 %v3713, %v3721
    %v3724 = vmul.f32 %v3722, %v3722
    %v3725 = vmul.f32 %v3723, %v3723
    %v3726 = vsel %vm196, %v3724, 0.0
    %3727 = vadd.xlane.f32.xlu0 %v3726
    %v3728 = vpop.xlane.xlu0 %3727
    %v3729 = vsel %vm196, %v3725, 0.0
    %3730 = vadd.xlane.f32.xlu0 %v3729
    %v3731 = vpop.xlane.xlu0 %3730
    %v3732 = vmul.f32 %v3728, %v780
    %v3733 = vmul.f32 %v3731, %v780
    %v3734 = vadd.f32 %v3732, 1e-05
    %v3735 = vadd.f32 %v3733, 1e-05
    %v3736 = vrsqrt.pop %v3734
    %v3737 = vmul.f32 %v3736, %v3734
    %v3738 = vmul.f32 %v3737, %v3736
    %v3739 = vmul.f32 0.5, %v3738
    %v3740 = vsub.f32 1.5, %v3739
    %v3741 = vmul.f32 %v3736, %v3740
    %vm3742 = vweird.f32 %v3734
    %vm3743 = vweird.f32 %v3736
    %vm3744 = vmor %vm3742, %vm3743
    %v3745 = vsel %vm3744, %v3736, %v3741
    %v3746 = vrsqrt.pop %v3735
    %v3747 = vmul.f32 %v3746, %v3735
    %v3748 = vmul.f32 %v3747, %v3746
    %v3749 = vmul.f32 0.5, %v3748
    %v3750 = vsub.f32 1.5, %v3749
    %v3751 = vmul.f32 %v3746, %v3750
    %vm3752 = vweird.f32 %v3735
    %vm3753 = vweird.f32 %v3746
    %vm3754 = vmor %vm3752, %vm3753
    %v3755 = vsel %vm3754, %v3746, %v3751
    %v3756 = vmul.f32 %v3722, %v3745
    %v3757 = vmul.f32 %v3723, %v3755
    %v3758 = vld [vmem:[#allocation13 + $0x1b] sm:$0x1]
    %v3759 = vperm.slane %v3758, 0
    %v3760 = vmul.f32 %v3756, %v3759
    %v3761 = vmul.f32 %v3757, %v3759
    %v3762 = vld [vmem:[#allocation13 + $0x25] sm:$0x1]
    %v3763 = vperm.slane %v3762, 0
    %v3764 = vadd.f32 %v3760, %v3763
    %v3765 = vadd.f32 %v3761, %v3763
    %s3766 = scalar_lea.vmem %s5, 160
    %v3767 = vld [vmem:[%s3766] sm:$0xff]
    %v3768 = vld [vmem:[%s3766 + $0x8] sm:$0xff]
    %v3769 = vld [vmem:[%s3766 + $0x10] sm:$0xff]
    %v3770 = vld [vmem:[%s3766 + $0x18] sm:$0xff]
    %v3771 = vld [vmem:[#allocation13 + $0x5] sm:$0x1]
    %v3772 = vperm.slane %v3771, 0
    %v3774 = vsel %vm196, %v3764, 0
    %v3777 = vsel %vm196, %v3765, 0
    %3779 = vmatpush.msra.mxu0 0.0
    %3780 = vmatpush.msra.mxu0 0.0
    %3781 = vmatpush.msra.mxu0 0.0
    %3782 = vmatpush.msra.mxu0 0.0
    %3783 = vmatpush.msra.mxu0 0.0
    %3784 = vmatpush.msra.mxu0 0.0
    %3785 = vmatpush.msra.mxu0 0.0
    %3786 = vmatpush.msra.mxu0 0.0
    %3787 = vmatpush.msra.mxu0 0.0
    %3788 = vmatpush.msra.mxu0 0.0
    %3789 = vmatpush.msra.mxu0 0.0
    %3790 = vmatpush.msra.mxu0 0.0
    %3791 = vmatpush.msra.mxu0 %v3770
    %3792 = vmatpush.msra.mxu0 %v3769
    %3793 = vmatpush.msra.mxu0 %v3768
    %3794 = vmatpush.msra.mxu0 %v3767
    %3795 = vmatmul.f32.gmra.mxu0 %v3774
    %v3796 = vpop.f32.mrf.mxu0
    %v3797 = vadd.f32 %v3772, %v3796
    %3798 = vmatmul.f32.gmra.mxu0 %v3777
    %v3799 = vpop.f32.mrf.mxu0
    %v3800 = vadd.f32 %v3772, %v3799
    %3801 = vdwg.mxu0
    %3802 = vmatpush.msra.mxu0 0.0
    %3803 = vmatpush.msra.mxu0 0.0
    %3804 = vmatpush.msra.mxu0 0.0
    %3805 = vmatpush.msra.mxu0 0.0
    %3806 = vmatpush.msra.mxu0 0.0
    %3807 = vmatpush.msra.mxu0 0.0
    %3808 = vmatpush.msra.mxu0 0.0
    %3809 = vmatpush.msra.mxu0 0.0
    %3810 = vmatpush.msra.mxu0 0.0
    %3811 = vmatpush.msra.mxu0 0.0
    %3812 = vmatpush.msra.mxu0 0.0
    %3813 = vmatpush.msra.mxu0 0.0
    %3814 = vmatpush.msra.mxu0 %v3770
    %3815 = vmatpush.msra.mxu0 %v3769
    %3816 = vmatpush.msra.mxu0 %v3768
    %3817 = vmatpush.msra.mxu0 %v3767
    %3818 = vmatmul.f32.gmra.mxu0 %v2378
    %v3819 = vpop.f32.mrf.mxu0
    %v3820 = vadd.f32 %v3772, %v3819
    %3821 = vmatmul.f32.gmra.mxu0 %v2381
    %v3822 = vpop.f32.mrf.mxu0
    %v3823 = vadd.f32 %v3772, %v3822
    %3824 = vdwg.mxu0
    %3827 = vrot.lane.b32.xlu0 %v3797, 120
    %v3828 = vpop.permute.xlu0 %3827
    %3829 = vrot.lane.b32.xlu0 %v3800, 120
    %v3830 = vpop.permute.xlu0 %3829
    %3831 = vrot.lane.b32.xlu0 %v3797, 112
    %v3832 = vpop.permute.xlu0 %3831
    %3833 = vrot.lane.b32.xlu0 %v3800, 112
    %v3834 = vpop.permute.xlu0 %3833
    %3835 = vrot.lane.b32.xlu0 %v3797, 104
    %v3836 = vpop.permute.xlu0 %3835
    %3837 = vrot.lane.b32.xlu0 %v3800, 104
    %v3838 = vpop.permute.xlu0 %3837
    %3841 = vrot.lane.b32.xlu0 %v3820, 120
    %v3842 = vpop.permute.xlu0 %3841
    %3843 = vrot.lane.b32.xlu0 %v3823, 120
    %v3844 = vpop.permute.xlu0 %3843
    %3845 = vrot.lane.b32.xlu0 %v3820, 112
    %v3846 = vpop.permute.xlu0 %3845
    %3847 = vrot.lane.b32.xlu0 %v3823, 112
    %v3848 = vpop.permute.xlu0 %3847
    %3849 = vrot.lane.b32.xlu0 %v3820, 104
    %v3850 = vpop.permute.xlu0 %3849
    %3851 = vrot.lane.b32.xlu0 %v3823, 104
    %v3852 = vpop.permute.xlu0 %3851
    %3853 = vrot.lane.b32.xlu0 %v3820, 96
    %v3854 = vpop.permute.xlu0 %3853
    %3855 = vrot.lane.b32.xlu0 %v3823, 96
    %v3856 = vpop.permute.xlu0 %3855
    %3857 = vrot.lane.b32.xlu0 %v3842, 96
    %v3858 = vpop.permute.xlu0 %3857
    %3859 = vrot.lane.b32.xlu0 %v3844, 96
    %v3860 = vpop.permute.xlu0 %3859
    %3861 = vrot.lane.b32.xlu0 %v3846, 96
    %v3862 = vpop.permute.xlu0 %3861
    %3863 = vrot.lane.b32.xlu0 %v3848, 96
    %v3864 = vpop.permute.xlu0 %3863
    %3865 = vrot.lane.b32.xlu0 %v3850, 96
    %v3866 = vpop.permute.xlu0 %3865
    %3867 = vrot.lane.b32.xlu0 %v3852, 96
    %v3868 = vpop.permute.xlu0 %3867
    %v3869 = vsel %vm256, %v3797, 0
    %v3871 = vsel %vm256, %v3800, 0
    %v3873 = vsel %vm256, %v3828, 0
    %v3875 = vsel %vm256, %v3830, 0
    %v3877 = vsel %vm256, %v3832, 0
    %v3879 = vsel %vm256, %v3834, 0
    %v3881 = vsel %vm256, %v3836, 0
    %v3883 = vsel %vm256, %v3838, 0
    %v3885 = vsel %vm256, %v3854, 0
    %v3887 = vsel %vm256, %v3856, 0
    %v3889 = vsel %vm256, %v3858, 0
    %v3891 = vsel %vm256, %v3860, 0
    %v3893 = vsel %vm256, %v3862, 0
    %v3895 = vsel %vm256, %v3864, 0
    %v3897 = vsel %vm256, %v3866, 0
    %v3899 = vsel %vm256, %v3868, 0
    %3901 = vmatpush.xpose.msra.mxu0 0.0
    %3902 = vmatpush.xpose.msra.mxu0 0.0
    %3903 = vmatpush.xpose.msra.mxu0 0.0
    %3904 = vmatpush.xpose.msra.mxu0 0.0
    %3905 = vmatpush.xpose.msra.mxu0 0.0
    %3906 = vmatpush.xpose.msra.mxu0 0.0
    %3907 = vmatpush.xpose.msra.mxu0 0.0
    %3908 = vmatpush.xpose.msra.mxu0 0.0
    %3909 = vmatpush.xpose.msra.mxu0 %v3899
    %3910 = vmatpush.xpose.msra.mxu0 %v3897
    %3911 = vmatpush.xpose.msra.mxu0 %v3895
    %3912 = vmatpush.xpose.msra.mxu0 %v3893
    %3913 = vmatpush.xpose.msra.mxu0 %v3891
    %3914 = vmatpush.xpose.msra.mxu0 %v3889
    %3915 = vmatpush.xpose.msra.mxu0 %v3887
    %3916 = vmatpush.xpose.msra.mxu0 %v3885
    %3917 = vmatmul.f32.gmra.mxu0 %v3869
    %v3918 = vpop.f32.mrf.mxu0
    %v3919 = vadd.f32 0.0, %v3918
    %3920 = vmatmul.f32.gmra.mxu0 %v3871
    %v3921 = vpop.f32.mrf.mxu0
    %v3922 = vadd.f32 0.0, %v3921
    %3923 = vmatmul.f32.gmra.mxu0 %v3873
    %v3924 = vpop.f32.mrf.mxu0
    %v3925 = vadd.f32 0.0, %v3924
    %3926 = vmatmul.f32.gmra.mxu0 %v3875
    %v3927 = vpop.f32.mrf.mxu0
    %v3928 = vadd.f32 0.0, %v3927
    %3929 = vmatmul.f32.gmra.mxu0 %v3877
    %v3930 = vpop.f32.mrf.mxu0
    %v3931 = vadd.f32 0.0, %v3930
    %3932 = vmatmul.f32.gmra.mxu0 %v3879
    %v3933 = vpop.f32.mrf.mxu0
    %v3934 = vadd.f32 0.0, %v3933
    %3935 = vmatmul.f32.gmra.mxu0 %v3881
    %v3936 = vpop.f32.mrf.mxu0
    %v3937 = vadd.f32 0.0, %v3936
    %3938 = vmatmul.f32.gmra.mxu0 %v3883
    %v3939 = vpop.f32.mrf.mxu0
    %v3940 = vadd.f32 0.0, %v3939
    %3941 = vdwg.mxu0
    %v3942 = vmul.f32 %v3919, 0.17677669
    %v3943 = vmul.f32 %v3922, 0.17677669
    %v3944 = vmul.f32 %v3925, 0.17677669
    %v3945 = vmul.f32 %v3928, 0.17677669
    %v3946 = vmul.f32 %v3931, 0.17677669
    %v3947 = vmul.f32 %v3934, 0.17677669
    %v3948 = vmul.f32 %v3937, 0.17677669
    %v3949 = vmul.f32 %v3940, 0.17677669
    %v3950 = vsel %vm2531, %v3942, %v180
    %v3951 = vsel %vm2532, %v3943, %v181
    %v3952 = vsel %vm2533, %v3944, %v182
    %v3953 = vsel %vm2534, %v3945, %v183
    %v3954 = vsel %vm2535, %v3946, %v184
    %v3955 = vsel %vm2536, %v3947, %v185
    %v3956 = vsel %vm2537, %v3948, %v186
    %v3957 = vsel %vm2538, %v3949, %v187
    %v3958 = vsel %vm354, %v3950, -inf
    %3959 = vmax.xlane.f32.xlu0 %v3958
    %v3960 = vpop.xlane.xlu0 %3959
    %v3961 = vsel %vm354, %v3951, -inf
    %3962 = vmax.xlane.f32.xlu0 %v3961
    %v3963 = vpop.xlane.xlu0 %3962
    %v3964 = vsel %vm354, %v3952, -inf
    %3965 = vmax.xlane.f32.xlu0 %v3964
    %v3966 = vpop.xlane.xlu0 %3965
    %v3967 = vsel %vm354, %v3953, -inf
    %3968 = vmax.xlane.f32.xlu0 %v3967
    %v3969 = vpop.xlane.xlu0 %3968
    %v3970 = vsel %vm354, %v3954, -inf
    %3971 = vmax.xlane.f32.xlu0 %v3970
    %v3972 = vpop.xlane.xlu0 %3971
    %v3973 = vsel %vm354, %v3955, -inf
    %3974 = vmax.xlane.f32.xlu0 %v3973
    %v3975 = vpop.xlane.xlu0 %3974
    %v3976 = vsel %vm354, %v3956, -inf
    %3977 = vmax.xlane.f32.xlu0 %v3976
    %v3978 = vpop.xlane.xlu0 %3977
    %v3979 = vsel %vm354, %v3957, -inf
    %3980 = vmax.xlane.f32.xlu0 %v3979
    %v3981 = vpop.xlane.xlu0 %3980
    %v3982 = vsub.f32 %v3950, %v3960
    %v3983 = vsub.f32 %v3951, %v3963
    %v3984 = vsub.f32 %v3952, %v3966
    %v3985 = vsub.f32 %v3953, %v3969
    %v3986 = vsub.f32 %v3954, %v3972
    %v3987 = vsub.f32 %v3955, %v3975
    %v3988 = vsub.f32 %v3956, %v3978
    %v3989 = vsub.f32 %v3957, %v3981
    %v3990 = vmul.f32 %v3982, 1.442695
    %v3991 = vpow.pop %v3990
    %v3992 = vmul.f32 %v3983, 1.442695
    %v3993 = vpow.pop %v3992
    %v3994 = vmul.f32 %v3984, 1.442695
    %v3995 = vpow.pop %v3994
    %v3996 = vmul.f32 %v3985, 1.442695
    %v3997 = vpow.pop %v3996
    %v3998 = vmul.f32 %v3986, 1.442695
    %v3999 = vpow.pop %v3998
    %v4000 = vmul.f32 %v3987, 1.442695
    %v4001 = vpow.pop %v4000
    %v4002 = vmul.f32 %v3988, 1.442695
    %v4003 = vpow.pop %v4002
    %v4004 = vmul.f32 %v3989, 1.442695
    %v4005 = vpow.pop %v4004
    %v4006 = vsel %vm354, %v3991, 0.0
    %4007 = vadd.xlane.f32.xlu0 %v4006
    %v4008 = vpop.xlane.xlu0 %4007
    %v4009 = vsel %vm354, %v3993, 0.0
    %4010 = vadd.xlane.f32.xlu0 %v4009
    %v4011 = vpop.xlane.xlu0 %4010
    %v4012 = vsel %vm354, %v3995, 0.0
    %4013 = vadd.xlane.f32.xlu0 %v4012
    %v4014 = vpop.xlane.xlu0 %4013
    %v4015 = vsel %vm354, %v3997, 0.0
    %4016 = vadd.xlane.f32.xlu0 %v4015
    %v4017 = vpop.xlane.xlu0 %4016
    %v4018 = vsel %vm354, %v3999, 0.0
    %4019 = vadd.xlane.f32.xlu0 %v4018
    %v4020 = vpop.xlane.xlu0 %4019
    %v4021 = vsel %vm354, %v4001, 0.0
    %4022 = vadd.xlane.f32.xlu0 %v4021
    %v4023 = vpop.xlane.xlu0 %4022
    %v4024 = vsel %vm354, %v4003, 0.0
    %4025 = vadd.xlane.f32.xlu0 %v4024
    %v4026 = vpop.xlane.xlu0 %4025
    %v4027 = vsel %vm354, %v4005, 0.0
    %4028 = vadd.xlane.f32.xlu0 %v4027
    %v4029 = vpop.xlane.xlu0 %4028
    %v4030 = vrcp.pop %v4008
    %v4031 = vmul.f32 %v4008, %v4030
    %v4032 = vsub.f32 1.0, %v4031
    %v4033 = vmul.f32 %v4030, %v4032
    %v4034 = vadd.f32 %v4030, %v4033
    %vm4035 = vweird.f32 %v4008
    %vm4036 = vweird.f32 %v4030
    %vm4037 = vmor %vm4035, %vm4036
    %v4038 = vsel %vm4037, %v4030, %v4034
    %v4039 = vand.u32 2147483647, %v4008
    %vm4040 = vcmp.eq.f32.partialorder %v4039, 8.507059e+37
    %v4041 = vand.u32 %v4008, 2147483648
    %v4042 = vor.u32 1.1754944e-38, %v4041
    %v4043 = vsel %vm4040, %v4042, %v4038
    %v4044 = vrcp.pop %v4011
    %v4045 = vmul.f32 %v4011, %v4044
    %v4046 = vsub.f32 1.0, %v4045
    %v4047 = vmul.f32 %v4044, %v4046
    %v4048 = vadd.f32 %v4044, %v4047
    %vm4049 = vweird.f32 %v4011
    %vm4050 = vweird.f32 %v4044
    %vm4051 = vmor %vm4049, %vm4050
    %v4052 = vsel %vm4051, %v4044, %v4048
    %v4053 = vand.u32 2147483647, %v4011
    %vm4054 = vcmp.eq.f32.partialorder %v4053, 8.507059e+37
    %v4055 = vand.u32 %v4011, 2147483648
    %v4056 = vor.u32 1.1754944e-38, %v4055
    %v4057 = vsel %vm4054, %v4056, %v4052
    %v4058 = vrcp.pop %v4014
    %v4059 = vmul.f32 %v4014, %v4058
    %v4060 = vsub.f32 1.0, %v4059
    %v4061 = vmul.f32 %v4058, %v4060
    %v4062 = vadd.f32 %v4058, %v4061
    %vm4063 = vweird.f32 %v4014
    %vm4064 = vweird.f32 %v4058
    %vm4065 = vmor %vm4063, %vm4064
    %v4066 = vsel %vm4065, %v4058, %v4062
    %v4067 = vand.u32 2147483647, %v4014
    %vm4068 = vcmp.eq.f32.partialorder %v4067, 8.507059e+37
    %v4069 = vand.u32 %v4014, 2147483648
    %v4070 = vor.u32 1.1754944e-38, %v4069
    %v4071 = vsel %vm4068, %v4070, %v4066
    %v4072 = vrcp.pop %v4017
    %v4073 = vmul.f32 %v4017, %v4072
    %v4074 = vsub.f32 1.0, %v4073
    %v4075 = vmul.f32 %v4072, %v4074
    %v4076 = vadd.f32 %v4072, %v4075
    %vm4077 = vweird.f32 %v4017
    %vm4078 = vweird.f32 %v4072
    %vm4079 = vmor %vm4077, %vm4078
    %v4080 = vsel %vm4079, %v4072, %v4076
    %v4081 = vand.u32 2147483647, %v4017
    %vm4082 = vcmp.eq.f32.partialorder %v4081, 8.507059e+37
    %v4083 = vand.u32 %v4017, 2147483648
    %v4084 = vor.u32 1.1754944e-38, %v4083
    %v4085 = vsel %vm4082, %v4084, %v4080
    %v4086 = vrcp.pop %v4020
    %v4087 = vmul.f32 %v4020, %v4086
    %v4088 = vsub.f32 1.0, %v4087
    %v4089 = vmul.f32 %v4086, %v4088
    %v4090 = vadd.f32 %v4086, %v4089
    %vm4091 = vweird.f32 %v4020
    %vm4092 = vweird.f32 %v4086
    %vm4093 = vmor %vm4091, %vm4092
    %v4094 = vsel %vm4093, %v4086, %v4090
    %v4095 = vand.u32 2147483647, %v4020
    %vm4096 = vcmp.eq.f32.partialorder %v4095, 8.507059e+37
    %v4097 = vand.u32 %v4020, 2147483648
    %v4098 = vor.u32 1.1754944e-38, %v4097
    %v4099 = vsel %vm4096, %v4098, %v4094
    %v4100 = vrcp.pop %v4023
    %v4101 = vmul.f32 %v4023, %v4100
    %v4102 = vsub.f32 1.0, %v4101
    %v4103 = vmul.f32 %v4100, %v4102
    %v4104 = vadd.f32 %v4100, %v4103
    %vm4105 = vweird.f32 %v4023
    %vm4106 = vweird.f32 %v4100
    %vm4107 = vmor %vm4105, %vm4106
    %v4108 = vsel %vm4107, %v4100, %v4104
    %v4109 = vand.u32 2147483647, %v4023
    %vm4110 = vcmp.eq.f32.partialorder %v4109, 8.507059e+37
    %v4111 = vand.u32 %v4023, 2147483648
    %v4112 = vor.u32 1.1754944e-38, %v4111
    %v4113 = vsel %vm4110, %v4112, %v4108
    %v4114 = vrcp.pop %v4026
    %v4115 = vmul.f32 %v4026, %v4114
    %v4116 = vsub.f32 1.0, %v4115
    %v4117 = vmul.f32 %v4114, %v4116
    %v4118 = vadd.f32 %v4114, %v4117
    %vm4119 = vweird.f32 %v4026
    %vm4120 = vweird.f32 %v4114
    %vm4121 = vmor %vm4119, %vm4120
    %v4122 = vsel %vm4121, %v4114, %v4118
    %v4123 = vand.u32 2147483647, %v4026
    %vm4124 = vcmp.eq.f32.partialorder %v4123, 8.507059e+37
    %v4125 = vand.u32 %v4026, 2147483648
    %v4126 = vor.u32 1.1754944e-38, %v4125
    %v4127 = vsel %vm4124, %v4126, %v4122
    %v4128 = vrcp.pop %v4029
    %v4129 = vmul.f32 %v4029, %v4128
    %v4130 = vsub.f32 1.0, %v4129
    %v4131 = vmul.f32 %v4128, %v4130
    %v4132 = vadd.f32 %v4128, %v4131
    %vm4133 = vweird.f32 %v4029
    %vm4134 = vweird.f32 %v4128
    %vm4135 = vmor %vm4133, %vm4134
    %v4136 = vsel %vm4135, %v4128, %v4132
    %v4137 = vand.u32 2147483647, %v4029
    %vm4138 = vcmp.eq.f32.partialorder %v4137, 8.507059e+37
    %v4139 = vand.u32 %v4029, 2147483648
    %v4140 = vor.u32 1.1754944e-38, %v4139
    %v4141 = vsel %vm4138, %v4140, %v4136
    %v4142 = vmul.f32 %v3991, %v4043
    %v4143 = vmul.f32 %v3993, %v4057
    %v4144 = vmul.f32 %v3995, %v4071
    %v4145 = vmul.f32 %v3997, %v4085
    %v4146 = vmul.f32 %v3999, %v4099
    %v4147 = vmul.f32 %v4001, %v4113
    %v4148 = vmul.f32 %v4003, %v4127
    %v4149 = vmul.f32 %v4005, %v4141
    %4150 = vrot.lane.b32.xlu0 %v3820, 64
    %v4151 = vpop.permute.xlu0 %4150
    %4152 = vrot.lane.b32.xlu0 %v3823, 64
    %v4153 = vpop.permute.xlu0 %4152
    %4154 = vrot.lane.b32.xlu0 %v3842, 64
    %v4155 = vpop.permute.xlu0 %4154
    %4156 = vrot.lane.b32.xlu0 %v3844, 64
    %v4157 = vpop.permute.xlu0 %4156
    %4158 = vrot.lane.b32.xlu0 %v3846, 64
    %v4159 = vpop.permute.xlu0 %4158
    %4160 = vrot.lane.b32.xlu0 %v3848, 64
    %v4161 = vpop.permute.xlu0 %4160
    %4162 = vrot.lane.b32.xlu0 %v3850, 64
    %v4163 = vpop.permute.xlu0 %4162
    %4164 = vrot.lane.b32.xlu0 %v3852, 64
    %v4165 = vpop.permute.xlu0 %4164
    %v4175 = vsel %vm354, %v4142, 0
    %v4178 = vsel %vm354, %v4143, 0
    %v4181 = vsel %vm354, %v4144, 0
    %v4184 = vsel %vm354, %v4145, 0
    %v4187 = vsel %vm354, %v4146, 0
    %v4190 = vsel %vm354, %v4147, 0
    %v4193 = vsel %vm354, %v4148, 0
    %v4196 = vsel %vm354, %v4149, 0
    %4198 = vmatpush.msra.mxu0 0.0
    %4199 = vmatpush.msra.mxu0 0.0
    %4200 = vmatpush.msra.mxu0 0.0
    %4201 = vmatpush.msra.mxu0 0.0
    %4202 = vmatpush.msra.mxu0 0.0
    %4203 = vmatpush.msra.mxu0 0.0
    %4204 = vmatpush.msra.mxu0 0.0
    %4205 = vmatpush.msra.mxu0 0.0
    %4206 = vmatpush.msra.mxu0 %v4165
    %4207 = vmatpush.msra.mxu0 %v4163
    %4208 = vmatpush.msra.mxu0 %v4161
    %4209 = vmatpush.msra.mxu0 %v4159
    %4210 = vmatpush.msra.mxu0 %v4157
    %4211 = vmatpush.msra.mxu0 %v4155
    %4212 = vmatpush.msra.mxu0 %v4153
    %4213 = vmatpush.msra.mxu0 %v4151
    %4214 = vmatmul.f32.gmra.mxu0 %v4175
    %v4215 = vpop.f32.mrf.mxu0
    %v4216 = vadd.f32 0.0, %v4215
    %4217 = vmatmul.f32.gmra.mxu0 %v4178
    %v4218 = vpop.f32.mrf.mxu0
    %v4219 = vadd.f32 0.0, %v4218
    %4220 = vmatmul.f32.gmra.mxu0 %v4181
    %v4221 = vpop.f32.mrf.mxu0
    %v4222 = vadd.f32 0.0, %v4221
    %4223 = vmatmul.f32.gmra.mxu0 %v4184
    %v4224 = vpop.f32.mrf.mxu0
    %v4225 = vadd.f32 0.0, %v4224
    %4226 = vmatmul.f32.gmra.mxu0 %v4187
    %v4227 = vpop.f32.mrf.mxu0
    %v4228 = vadd.f32 0.0, %v4227
    %4229 = vmatmul.f32.gmra.mxu0 %v4190
    %v4230 = vpop.f32.mrf.mxu0
    %v4231 = vadd.f32 0.0, %v4230
    %4232 = vmatmul.f32.gmra.mxu0 %v4193
    %v4233 = vpop.f32.mrf.mxu0
    %v4234 = vadd.f32 0.0, %v4233
    %4235 = vmatmul.f32.gmra.mxu0 %v4196
    %v4236 = vpop.f32.mrf.mxu0
    %v4237 = vadd.f32 0.0, %v4236
    %4238 = vdwg.mxu0
    %s4239 = scalar_lea.vmem %s6, 160
    %v4240 = vld [vmem:[%s4239] sm:$0xff]
    %v4241 = vld [vmem:[%s4239 + $0x8] sm:$0xff]
    %v4242 = vld [vmem:[%s4239 + $0x10] sm:$0xff]
    %v4243 = vld [vmem:[%s4239 + $0x18] sm:$0xff]
    %v4244 = vld [vmem:[#allocation13 + $0xb] sm:$0x1]
    %v4246 = vsel %vm256, %v4216, 0
    %v4249 = vsel %vm256, %v4219, 0
    %4251 = vmatpush.msra.mxu0 0.0
    %4252 = vmatpush.msra.mxu0 0.0
    %4253 = vmatpush.msra.mxu0 0.0
    %4254 = vmatpush.msra.mxu0 0.0
    %4255 = vmatpush.msra.mxu0 0.0
    %4256 = vmatpush.msra.mxu0 0.0
    %4257 = vmatpush.msra.mxu0 0.0
    %4258 = vmatpush.msra.mxu0 0.0
    %4259 = vmatpush.msra.mxu0 0.0
    %4260 = vmatpush.msra.mxu0 0.0
    %4261 = vmatpush.msra.mxu0 0.0
    %4262 = vmatpush.msra.mxu0 0.0
    %4263 = vmatpush.msra.mxu0 0.0
    %4264 = vmatpush.msra.mxu0 0.0
    %4265 = vmatpush.msra.mxu0 0.0
    %4266 = vmatpush.msra.mxu0 %v4240
    %4267 = vmatmul.f32.gmra.mxu0 %v4246
    %v4268 = vpop.f32.mrf.mxu0
    %v4269 = vadd.f32 0.0, %v4268
    %4270 = vmatmul.f32.gmra.mxu0 %v4249
    %v4271 = vpop.f32.mrf.mxu0
    %v4272 = vadd.f32 0.0, %v4271
    %4273 = vdwg.mxu0
    %v4274 = vperm.slane %v4244, 0
    %v4275 = vadd.f32 %v4274, %v4269
    %v4276 = vadd.f32 %v4274, %v4272
    %v4278 = vsel %vm256, %v4222, 0
    %v4281 = vsel %vm256, %v4225, 0
    %4283 = vmatpush.msra.mxu0 0.0
    %4284 = vmatpush.msra.mxu0 0.0
    %4285 = vmatpush.msra.mxu0 0.0
    %4286 = vmatpush.msra.mxu0 0.0
    %4287 = vmatpush.msra.mxu0 0.0
    %4288 = vmatpush.msra.mxu0 0.0
    %4289 = vmatpush.msra.mxu0 0.0
    %4290 = vmatpush.msra.mxu0 0.0
    %4291 = vmatpush.msra.mxu0 0.0
    %4292 = vmatpush.msra.mxu0 0.0
    %4293 = vmatpush.msra.mxu0 0.0
    %4294 = vmatpush.msra.mxu0 0.0
    %4295 = vmatpush.msra.mxu0 0.0
    %4296 = vmatpush.msra.mxu0 0.0
    %4297 = vmatpush.msra.mxu0 0.0
    %4298 = vmatpush.msra.mxu0 %v4241
    %4299 = vmatmul.f32.gmra.mxu0 %v4278
    %v4300 = vpop.f32.mrf.mxu0
    %v4301 = vadd.f32 0.0, %v4300
    %4302 = vmatmul.f32.gmra.mxu0 %v4281
    %v4303 = vpop.f32.mrf.mxu0
    %v4304 = vadd.f32 0.0, %v4303
    %4305 = vdwg.mxu0
    %v4306 = vadd.f32 %v4275, %v4301
    %v4307 = vadd.f32 %v4276, %v4304
    %v4309 = vsel %vm256, %v4228, 0
    %v4312 = vsel %vm256, %v4231, 0
    %4314 = vmatpush.msra.mxu0 0.0
    %4315 = vmatpush.msra.mxu0 0.0
    %4316 = vmatpush.msra.mxu0 0.0
    %4317 = vmatpush.msra.mxu0 0.0
    %4318 = vmatpush.msra.mxu0 0.0
    %4319 = vmatpush.msra.mxu0 0.0
    %4320 = vmatpush.msra.mxu0 0.0
    %4321 = vmatpush.msra.mxu0 0.0
    %4322 = vmatpush.msra.mxu0 0.0
    %4323 = vmatpush.msra.mxu0 0.0
    %4324 = vmatpush.msra.mxu0 0.0
    %4325 = vmatpush.msra.mxu0 0.0
    %4326 = vmatpush.msra.mxu0 0.0
    %4327 = vmatpush.msra.mxu0 0.0
    %4328 = vmatpush.msra.mxu0 0.0
    %4329 = vmatpush.msra.mxu0 %v4242
    %4330 = vmatmul.f32.gmra.mxu0 %v4309
    %v4331 = vpop.f32.mrf.mxu0
    %v4332 = vadd.f32 0.0, %v4331
    %4333 = vmatmul.f32.gmra.mxu0 %v4312
    %v4334 = vpop.f32.mrf.mxu0
    %v4335 = vadd.f32 0.0, %v4334
    %4336 = vdwg.mxu0
    %v4337 = vadd.f32 %v4306, %v4332
    %v4338 = vadd.f32 %v4307, %v4335
    %v4340 = vsel %vm256, %v4234, 0
    %v4343 = vsel %vm256, %v4237, 0
    %4345 = vmatpush.msra.mxu0 0.0
    %4346 = vmatpush.msra.mxu0 0.0
    %4347 = vmatpush.msra.mxu0 0.0
    %4348 = vmatpush.msra.mxu0 0.0
    %4349 = vmatpush.msra.mxu0 0.0
    %4350 = vmatpush.msra.mxu0 0.0
    %4351 = vmatpush.msra.mxu0 0.0
    %4352 = vmatpush.msra.mxu0 0.0
    %4353 = vmatpush.msra.mxu0 0.0
    %4354 = vmatpush.msra.mxu0 0.0
    %4355 = vmatpush.msra.mxu0 0.0
    %4356 = vmatpush.msra.mxu0 0.0
    %4357 = vmatpush.msra.mxu0 0.0
    %4358 = vmatpush.msra.mxu0 0.0
    %4359 = vmatpush.msra.mxu0 0.0
    %4360 = vmatpush.msra.mxu0 %v4243
    %4361 = vmatmul.f32.gmra.mxu0 %v4340
    %v4362 = vpop.f32.mrf.mxu0
    %v4363 = vadd.f32 0.0, %v4362
    %4364 = vmatmul.f32.gmra.mxu0 %v4343
    %v4365 = vpop.f32.mrf.mxu0
    %v4366 = vadd.f32 0.0, %v4365
    %4367 = vdwg.mxu0
    %v4368 = vadd.f32 %v4337, %v4363
    %v4369 = vadd.f32 %v4338, %v4366
    %v4370 = vadd.f32 %v3764, %v4368
    %v4371 = vadd.f32 %v3765, %v4369
    %v4372 = vsel %vm196, %v4370, 0.0
    %4373 = vadd.xlane.f32.xlu0 %v4372
    %v4374 = vpop.xlane.xlu0 %4373
    %v4375 = vsel %vm196, %v4371, 0.0
    %4376 = vadd.xlane.f32.xlu0 %v4375
    %v4377 = vpop.xlane.xlu0 %4376
    %v4378 = vmul.f32 %v4374, %v780
    %v4379 = vmul.f32 %v4377, %v780
    %v4380 = vsub.f32 %v4370, %v4378
    %v4381 = vsub.f32 %v4371, %v4379
    %v4382 = vmul.f32 %v4380, %v4380
    %v4383 = vmul.f32 %v4381, %v4381
    %v4384 = vsel %vm196, %v4382, 0.0
    %4385 = vadd.xlane.f32.xlu0 %v4384
    %v4386 = vpop.xlane.xlu0 %4385
    %v4387 = vsel %vm196, %v4383, 0.0
    %4388 = vadd.xlane.f32.xlu0 %v4387
    %v4389 = vpop.xlane.xlu0 %4388
    %v4390 = vmul.f32 %v4386, %v780
    %v4391 = vmul.f32 %v4389, %v780
    %v4392 = vadd.f32 %v4390, 1e-05
    %v4393 = vadd.f32 %v4391, 1e-05
    %v4394 = vrsqrt.pop %v4392
    %v4395 = vmul.f32 %v4394, %v4392
    %v4396 = vmul.f32 %v4395, %v4394
    %v4397 = vmul.f32 0.5, %v4396
    %v4398 = vsub.f32 1.5, %v4397
    %v4399 = vmul.f32 %v4394, %v4398
    %vm4400 = vweird.f32 %v4392
    %vm4401 = vweird.f32 %v4394
    %vm4402 = vmor %vm4400, %vm4401
    %v4403 = vsel %vm4402, %v4394, %v4399
    %v4404 = vrsqrt.pop %v4393
    %v4405 = vmul.f32 %v4404, %v4393
    %v4406 = vmul.f32 %v4405, %v4404
    %v4407 = vmul.f32 0.5, %v4406
    %v4408 = vsub.f32 1.5, %v4407
    %v4409 = vmul.f32 %v4404, %v4408
    %vm4410 = vweird.f32 %v4393
    %vm4411 = vweird.f32 %v4404
    %vm4412 = vmor %vm4410, %vm4411
    %v4413 = vsel %vm4412, %v4404, %v4409
    %v4414 = vmul.f32 %v4380, %v4403
    %v4415 = vmul.f32 %v4381, %v4413
    %v4416 = vld [vmem:[#allocation13 + $0x1c] sm:$0x1]
    %v4417 = vperm.slane %v4416, 0
    %v4418 = vmul.f32 %v4414, %v4417
    %v4419 = vmul.f32 %v4415, %v4417
    %v4420 = vld [vmem:[#allocation13 + $0x26] sm:$0x1]
    %v4421 = vperm.slane %v4420, 0
    %v4422 = vadd.f32 %v4418, %v4421
    %v4423 = vadd.f32 %v4419, %v4421
    %s4424 = scalar_lea.vmem [#allocation11], 96
    %v4425 = vld [vmem:[%s4424] sm:$0xff]
    %v4426 = vld [vmem:[%s4424 + $0x8] sm:$0xff]
    %v4427 = vld [vmem:[%s4424 + $0x10] sm:$0xff]
    %v4428 = vld [vmem:[%s4424 + $0x18] sm:$0xff]
    %v4429 = vld [vmem:[#allocation13 + $0xf] sm:$0x1]
    %v4430 = vperm.slane %v4429, 0
    %v4432 = vsel %vm196, %v4422, 0
    %v4435 = vsel %vm196, %v4423, 0
    %4437 = vmatpush.msra.mxu0 0.0
    %4438 = vmatpush.msra.mxu0 0.0
    %4439 = vmatpush.msra.mxu0 0.0
    %4440 = vmatpush.msra.mxu0 0.0
    %4441 = vmatpush.msra.mxu0 0.0
    %4442 = vmatpush.msra.mxu0 0.0
    %4443 = vmatpush.msra.mxu0 0.0
    %4444 = vmatpush.msra.mxu0 0.0
    %4445 = vmatpush.msra.mxu0 0.0
    %4446 = vmatpush.msra.mxu0 0.0
    %4447 = vmatpush.msra.mxu0 0.0
    %4448 = vmatpush.msra.mxu0 0.0
    %4449 = vmatpush.msra.mxu0 %v4428
    %4450 = vmatpush.msra.mxu0 %v4427
    %4451 = vmatpush.msra.mxu0 %v4426
    %4452 = vmatpush.msra.mxu0 %v4425
    %4453 = vmatmul.f32.gmra.mxu0 %v4432
    %v4454 = vpop.f32.mrf.mxu0
    %v4455 = vadd.f32 %v4430, %v4454
    %4456 = vmatmul.f32.gmra.mxu0 %v4435
    %v4457 = vpop.f32.mrf.mxu0
    %v4458 = vadd.f32 %v4430, %v4457
    %4459 = vdwg.mxu0
    %v4460 = vmax.f32 %v4455, 0.0
    %v4461 = vmax.f32 %v4458, 0.0
    %s4462 = scalar_lea.vmem %s8, 192
    %v4463 = vld [vmem:[%s4462] sm:$0xff]
    %v4464 = vld [vmem:[%s4462 + $0x8] sm:$0xff]
    %v4465 = vld [vmem:[%s4462 + $0x10] sm:$0xff]
    %v4466 = vld [vmem:[%s4462 + $0x18] sm:$0xff]
    %v4467 = vld [vmem:[%s4462 + $0x20] sm:$0xff]
    %v4468 = vld [vmem:[%s4462 + $0x28] sm:$0xff]
    %v4469 = vld [vmem:[%s4462 + $0x30] sm:$0xff]
    %v4470 = vld [vmem:[%s4462 + $0x38] sm:$0xff]
    %v4471 = vld [vmem:[#allocation13 + $0x13] sm:$0x1]
    %v4472 = vperm.slane %v4471, 0
    %v4474 = vsel %vm354, %v4460, 0
    %v4477 = vsel %vm354, %v4461, 0
    %4479 = vmatpush.msra.mxu0 0.0
    %4480 = vmatpush.msra.mxu0 0.0
    %4481 = vmatpush.msra.mxu0 0.0
    %4482 = vmatpush.msra.mxu0 0.0
    %4483 = vmatpush.msra.mxu0 0.0
    %4484 = vmatpush.msra.mxu0 0.0
    %4485 = vmatpush.msra.mxu0 0.0
    %4486 = vmatpush.msra.mxu0 0.0
    %4487 = vmatpush.msra.mxu0 %v4470
    %4488 = vmatpush.msra.mxu0 %v4469
    %4489 = vmatpush.msra.mxu0 %v4468
    %4490 = vmatpush.msra.mxu0 %v4467
    %4491 = vmatpush.msra.mxu0 %v4466
    %4492 = vmatpush.msra.mxu0 %v4465
    %4493 = vmatpush.msra.mxu0 %v4464
    %4494 = vmatpush.msra.mxu0 %v4463
    %4495 = vmatmul.f32.gmra.mxu0 %v4474
    %v4496 = vpop.f32.mrf.mxu0
    %v4497 = vadd.f32 %v4472, %v4496
    %4498 = vmatmul.f32.gmra.mxu0 %v4477
    %v4499 = vpop.f32.mrf.mxu0
    %v4500 = vadd.f32 %v4472, %v4499
    %4501 = vdwg.mxu0
    %v4502 = vadd.f32 %v4422, %v4497
    %v4503 = vadd.f32 %v4423, %v4500
    %v4504 = vsel %vm196, %v4502, 0.0
    %4505 = vadd.xlane.f32.xlu0 %v4504
    %v4506 = vpop.xlane.xlu0 %4505
    %v4507 = vsel %vm196, %v4503, 0.0
    %4508 = vadd.xlane.f32.xlu0 %v4507
    %v4509 = vpop.xlane.xlu0 %4508
    %v4510 = vmul.f32 %v4506, %v780
    %v4511 = vmul.f32 %v4509, %v780
    %v4512 = vsub.f32 %v4502, %v4510
    %v4513 = vsub.f32 %v4503, %v4511
    %v4514 = vmul.f32 %v4512, %v4512
    %v4515 = vmul.f32 %v4513, %v4513
    %v4516 = vsel %vm196, %v4514, 0.0
    %4517 = vadd.xlane.f32.xlu0 %v4516
    %v4518 = vpop.xlane.xlu0 %4517
    %v4519 = vsel %vm196, %v4515, 0.0
    %4520 = vadd.xlane.f32.xlu0 %v4519
    %v4521 = vpop.xlane.xlu0 %4520
    %v4522 = vmul.f32 %v4518, %v780
    %v4523 = vmul.f32 %v4521, %v780
    %v4524 = vadd.f32 %v4522, 1e-05
    %v4525 = vadd.f32 %v4523, 1e-05
    %v4526 = vrsqrt.pop %v4524
    %v4527 = vmul.f32 %v4526, %v4524
    %v4528 = vmul.f32 %v4527, %v4526
    %v4529 = vmul.f32 0.5, %v4528
    %v4530 = vsub.f32 1.5, %v4529
    %v4531 = vmul.f32 %v4526, %v4530
    %vm4532 = vweird.f32 %v4524
    %vm4533 = vweird.f32 %v4526
    %vm4534 = vmor %vm4532, %vm4533
    %v4535 = vsel %vm4534, %v4526, %v4531
    %v4536 = vrsqrt.pop %v4525
    %v4537 = vmul.f32 %v4536, %v4525
    %v4538 = vmul.f32 %v4537, %v4536
    %v4539 = vmul.f32 0.5, %v4538
    %v4540 = vsub.f32 1.5, %v4539
    %v4541 = vmul.f32 %v4536, %v4540
    %vm4542 = vweird.f32 %v4525
    %vm4543 = vweird.f32 %v4536
    %vm4544 = vmor %vm4542, %vm4543
    %v4545 = vsel %vm4544, %v4536, %v4541
    %v4546 = vmul.f32 %v4512, %v4535
    %v4547 = vmul.f32 %v4513, %v4545
    %v4548 = vld [vmem:[#allocation13 + $0x1d] sm:$0x1]
    %v4549 = vperm.slane %v4548, 0
    %v4550 = vmul.f32 %v4546, %v4549
    %v4551 = vmul.f32 %v4547, %v4549
    %v4552 = vld [vmem:[#allocation13 + $0x27] sm:$0x1]
    %v4553 = vperm.slane %v4552, 0
    %v4554 = vadd.f32 %v4550, %v4553
    %v4555 = vadd.f32 %v4551, %v4553
    %v4556 = vld [vmem:[#allocation14] sm:$0xff]
    %v4557 = vld [vmem:[#allocation14 + $0x8] sm:$0xff]
    %v4558 = vld [vmem:[#allocation14 + $0x10] sm:$0xff]
    %v4559 = vld [vmem:[#allocation14 + $0x18] sm:$0xff]
    %v4560 = vld [vmem:[#allocation13 + $0x28] sm:$0x1]
    %v4561 = vperm.slane %v4560, 0
    %v4563 = vsel %vm196, %v4554, 0
    %v4566 = vsel %vm196, %v4555, 0
    %4568 = vmatpush.msra.mxu0 0.0
    %4569 = vmatpush.msra.mxu0 0.0
    %4570 = vmatpush.msra.mxu0 0.0
    %4571 = vmatpush.msra.mxu0 0.0
    %4572 = vmatpush.msra.mxu0 0.0
    %4573 = vmatpush.msra.mxu0 0.0
    %4574 = vmatpush.msra.mxu0 0.0
    %4575 = vmatpush.msra.mxu0 0.0
    %4576 = vmatpush.msra.mxu0 0.0
    %4577 = vmatpush.msra.mxu0 0.0
    %4578 = vmatpush.msra.mxu0 0.0
    %4579 = vmatpush.msra.mxu0 0.0
    %4580 = vmatpush.msra.mxu0 %v4559
    %4581 = vmatpush.msra.mxu0 %v4558
    %4582 = vmatpush.msra.mxu0 %v4557
    %4583 = vmatpush.msra.mxu0 %v4556
    %4584 = vmatmul.f32.gmra.mxu0 %v4563
    %v4585 = vpop.f32.mrf.mxu0
    %v4586 = vadd.f32 %v4561, %v4585
    %4587 = vmatmul.f32.gmra.mxu0 %v4566
    %v4588 = vpop.f32.mrf.mxu0
    %v4589 = vadd.f32 %v4561, %v4588
    %4590 = vdwg.mxu0
    %4591 = vst [vmem:[#allocation16] sm:$0xff] %v4586
    %4592 = vst [vmem:[#allocation16 + $0x8] sm:$0xff] %v4589
    // Predicated region
    $region78: #{tpu_custom_call.1} parent=1 // pred_check
      _
    $region79: #{tpu_custom_call.1} parent=1 // pred_check_branch
      %4594 = sbr.rel (0) target = $region81
    $region80: #{tpu_custom_call.1} parent=1 // pred_region
      %4596 = vsyncadd [#allocation4], 0
      %s4597 = sshll.u32 [#allocation16], 4
      %s4598 = int_to_ptr.vmem [resolvable:$true] %s4597
      %s4599 = sshll.u32 %s11, 4
      %s4600 = int_to_ptr.hbm [resolvable:$true] %s4599
      %4605 = dma.vmem_to_hbm [thread:$0]  %s4598, 256, %s4600, [#allocation4], 128, 128, 8
    $region81: #{tpu_custom_call.1} parent=1 // pred_fallthru
      _
    // Predicated region
    $region82: #{tpu_custom_call.1} parent=1 // pred_check
      _
    $region83: #{tpu_custom_call.1} parent=1 // pred_check_branch
      %4607 = sbr.rel (0) target = $region85
    $region84: #{tpu_custom_call.1} parent=1 // pred_region
      %4609 = dma.done [#allocation4], 256
    $region85: #{tpu_custom_call.1} parent=1 // pred_fallthru
      _
    %4610 = vsyncpa [#allocation3], 1
    %4611 = vsyncpa [#allocation6], 1
    %4612 = vsyncpa [#allocation9], 1
    %4613 = vsyncpa [#allocation12], 1
    %4614 = vsyncpa [#allocation15], 1
    %4615 = vsyncpa [#allocation4], 1

</llo_original>
